<compile_context>
chip_gen: v5e
topology: v5e:2x2
jax: 0.10.0
libtpu: 0.0.40
codegen_flags: <defaults>
</compile_context>

<pallas_src>
import functools

import jax
import jax.numpy as jnp
from jax import lax
from jax.experimental import pallas as pl
from jax.experimental.pallas import tpu as pltpu

# Hyper-parameters implied by the module:
NUM_RNK = 3            # num_rnk  (LayerNorm(3*3*out_c) => 3x3 tril slab)
SEQ = 8                # candidate sequence length pooled by AdaptiveAvgPool1d(1)
FEAT = 5 * 512         # _evaluate_coordi views pooled features as (bs, 5, 512)
KEY = 32               # key_size (evl_rnk = cat of two key_size//2 halves)
HALF = KEY // 2
OUT_C = 4              # Eval_Head out_c
FLAT = 3 * 3 * OUT_C   # 36
N_OUT = 6              # fin: Linear(36, 6, bias=False)


def _policy_kernel(crd_ref, req_ref, w1p_ref, w2p_ref, b12_ref,
                   convw36_ref, gamma_ref, beta_ref, finwt_ref, out_ref):
    hp = lax.Precision.HIGHEST
    BB = crd_ref.shape[0]

    def chunk(i, c):
        # (BB, 1, SEQ, 512) slab of candidate i, feature chunk c, cast to f32
        # right after the load so a bf16 crd input keeps f32 accumulation.
        return crd_ref[:, i:i + 1, :, c * 512:(c + 1) * 512].astype(jnp.float32)

    # --- candidate summaries, fused over (BB, NUM_RNK) ----------------------
    # Per candidate: sum the first 4 feature chunks of 512 (lane adds), then
    # sum over SEQ.  The /(4*SEQ) and /SEQ averaging lives in w1p/w2p.
    s4_list, s5_list = [], []
    for i in range(NUM_RNK):
        x4 = chunk(i, 0) + chunk(i, 1) + chunk(i, 2) + chunk(i, 3)
        s4_list.append(jnp.sum(x4, axis=(1, 2)))           # (BB, 512)
        s5_list.append(jnp.sum(chunk(i, 4), axis=(1, 2)))  # (BB, 512)
    # Candidate-major stacking (BB is a multiple of 8 -> tile-aligned concat).
    s4 = jnp.concatenate(s4_list, axis=0)                   # (3*BB, 512)
    s5 = jnp.concatenate(s5_list, axis=0)                   # (3*BB, 512)

    # Two fused MXU calls replace 6 M=1 dots per batch element.  W1 fills
    # columns [0:16) of w1p, W2 fills [16:32) of w2p, so the sum is the concat.
    e = (jnp.dot(s4, w1p_ref[...], precision=hp,
                 preferred_element_type=jnp.float32)
         + jnp.dot(s5, w2p_ref[...], precision=hp,
                   preferred_element_type=jnp.float32)
         + b12_ref[...])                                     # (3*BB, KEY)

    # F.normalize(dim=-1), eps=1e-12
    e = e / jnp.maximum(jnp.sqrt(jnp.sum(e * e, axis=1, keepdims=True)), 1e-12)
    c0 = e[0 * BB:1 * BB, :]                                 # (BB, KEY)
    c1 = e[1 * BB:2 * BB, :]
    c2 = e[2 * BB:3 * BB, :]

    r = req_ref[...].astype(jnp.float32)                     # (BB, KEY)
    r = r / jnp.maximum(jnp.sqrt(jnp.sum(r * r, axis=1, keepdims=True)), 1e-12)

    # --- strictly-lower-triangular Gram entries via lane reductions ----------
    def rowdot(a, b):
        return jnp.sum(a * b, axis=1, keepdims=True)         # (BB, 1)

    g10 = rowdot(c1, c0)
    g20 = rowdot(c2, c0)
    g21 = rowdot(c2, c1)
    g30 = rowdot(r, c0)
    g31 = rowdot(r, c1)
    g32 = rowdot(r, c2)

    zero = jnp.zeros_like(g10)
    # tril(candi @ candi^T, -1)[1:, :-1] flattened row-major over (H=3, W=3)
    res9 = jnp.concatenate(
        [g10, zero, zero, g20, g21, zero, g30, g31, g32], axis=1)   # (BB, 9)

    # --- Eval_Head -----------------------------------------------------------
    # 1x1 conv == per-channel scale; flatten(1) order is (C, H, W): replicate
    # the 9 spatial values per channel and scale by repeat(conv_w, 9).
    flat36 = jnp.concatenate([res9] * OUT_C, axis=1) * convw36_ref[...]  # (BB,36)

    # LayerNorm(36), eps=1e-5, affine
    mu = jnp.mean(flat36, axis=1, keepdims=True)
    var = jnp.mean((flat36 - mu) ** 2, axis=1, keepdims=True)
    y = (flat36 - mu) / jnp.sqrt(var + 1e-5) * gamma_ref[...] + beta_ref[...]

    # LeakyReLU(negative_slope=0.01)
    act = jnp.where(y >= 0, y, 0.01 * y)

    # fin: Linear(36, 6, bias=False); fused with result[:, :, -1, :] into one
    # (BB, 9) store -> a single output DMA per grid step.
    rnk = jnp.dot(act, finwt_ref[...], precision=hp,
                  preferred_element_type=jnp.float32)               # (BB, 6)
    out_ref[...] = jnp.concatenate([rnk, g30, g31, g32], axis=1)    # (BB, 9)


def _vmem_capacity_bytes():
    try:
        info = pltpu.get_tpu_info()
        cap = getattr(info, "vmem_capacity_bytes", None)
        if cap:
            return int(cap)
    except Exception:
        pass
    return 64 * 1024 * 1024   # conservative default (v7x-sized VMEM)


def _pick_block_b(bs):
    """Generation-aware batch block size (multiple of 8)."""
    vmem_cap = _vmem_capacity_bytes()
    big_vmem = vmem_cap >= 100 * 1024 * 1024          # v5e/v6e: 128 MiB VMEM
    bb_cap = 128 if big_vmem else 64                  # v7x: 64 MiB VMEM
    bb = 8
    for cand in (16, 32, 64, 128):
        if cand > bb_cap or bs < cand:
            break
        bb = cand
    # On v7x keep >= 2 grid steps so the "parallel" batch axis can be split
    # across the two TensorCores.
    if (not big_vmem) and bb > 32 and pl.cdiv(bs, bb) < 2:
        bb //= 2
    return bb, big_vmem


@functools.partial(jax.jit, static_argnames=("block_b", "vmem_limit"))
def _forward_jit(req, crd, p, *, block_b, vmem_limit):
    bs = req.shape[0]
    BB = block_b

    f32 = jnp.float32
    # Fold the /(4*SEQ) and /SEQ averaging into the weights and place W1/W2 on
    # disjoint output columns so the kernel needs no lane-concat of the halves.
    w1p = jnp.concatenate(
        [p['W1'].T.astype(f32) / float(4 * SEQ),
         jnp.zeros((512, HALF), f32)], axis=1)                       # (512, 32)
    w2p = jnp.concatenate(
        [jnp.zeros((512, HALF), f32),
         p['W2'].T.astype(f32) / float(SEQ)], axis=1)                # (512, 32)
    b12 = jnp.concatenate([p['b1'], p['b2']]).astype(f32).reshape(1, KEY)
    convw36 = jnp.repeat(p['conv_w'].astype(f32), 9).reshape(1, FLAT)  # (C,H,W)
    gamma = p['gamma'].astype(f32).reshape(1, FLAT)
    beta = p['beta'].astype(f32).reshape(1, FLAT)
    finwt = p['fin_w'].T.astype(f32)                                 # (36, 6)

    crd_isz = jnp.dtype(crd.dtype).itemsize
    req_isz = jnp.dtype(req.dtype).itemsize
    cost = pl.CostEstimate(
        flops=int(bs) * (NUM_RNK * SEQ * FEAT            # chunk/seq sums
                         + 4 * NUM_RNK * 512 * KEY       # fused summary dots
                         + 16 * FLAT),                   # head (tiny)
        transcendentals=0,
        bytes_accessed=int(bs) * (NUM_RNK * SEQ * FEAT * crd_isz
                                  + KEY * req_isz
                                  + (N_OUT + NUM_RNK) * 4))

    grid_spec = pltpu.PrefetchScalarGridSpec(
        num_scalar_prefetch=0,
        grid=(pl.cdiv(bs, BB),),                 # ragged last block: no pad copy
        in_specs=[
            pl.BlockSpec((BB, NUM_RNK, SEQ, FEAT), lambda b: (b, 0, 0, 0)),
            pl.BlockSpec((BB, KEY), lambda b: (b, 0)),
            pl.BlockSpec((512, KEY), lambda b: (0, 0)),
            pl.BlockSpec((512, KEY), lambda b: (0, 0)),
            pl.BlockSpec((1, KEY), lambda b: (0, 0)),
            pl.BlockSpec((1, FLAT), lambda b: (0, 0)),
            pl.BlockSpec((1, FLAT), lambda b: (0, 0)),
            pl.BlockSpec((1, FLAT), lambda b: (0, 0)),
            pl.BlockSpec((FLAT, N_OUT), lambda b: (0, 0)),
        ],
        out_specs=pl.BlockSpec((BB, N_OUT + NUM_RNK), lambda b: (b, 0)),
    )
    out9 = pl.pallas_call(
        _policy_kernel,
        out_shape=jax.ShapeDtypeStruct((bs, N_OUT + NUM_RNK), jnp.float32),
        grid_spec=grid_spec,
        compiler_params=pltpu.CompilerParams(
            dimension_semantics=("parallel",),        # v7x: shard batch over 2 TCs
            vmem_limit_bytes=vmem_limit),
        cost_estimate=cost,
    )(crd, req, w1p, w2p, b12, convw36, gamma, beta, finwt)
    return out9[:, :N_OUT], out9[:, N_OUT:]


def policy_net4_pallas(req, crd, p):
    """crd: (bs, NUM_RNK, SEQ, FEAT) in any float dtype; req: (bs, KEY)."""
    bs = req.shape[0]
    BB, big_vmem = _pick_block_b(bs)
    crd_block_bytes = BB * NUM_RNK * SEQ * FEAT * jnp.dtype(crd.dtype).itemsize
    # double-buffered crd block + headroom for in-kernel f32 temps
    want = 2 * crd_block_bytes + BB * 96 * 1024 + (8 << 20)
    cap = (112 << 20) if big_vmem else (56 << 20)
    vmem_limit = int(min(cap, max(32 << 20, want)))
    return _forward_jit(req, crd, p, block_b=BB, vmem_limit=vmem_limit)


def reference_forward(req, crd, p):
    """Pure-JAX mirror of PolicyNet4.forward for verification."""
    bs = req.shape[0]
    hp = lax.Precision.HIGHEST

    def l2n(v):
        return v / jnp.maximum(jnp.linalg.norm(v, axis=-1, keepdims=True), 1e-12)

    candi = []
    for i in range(NUM_RNK):
        enc = jnp.mean(crd[:, i], axis=1).reshape(bs, 5, 512)
        e1 = jnp.mean(jnp.einsum('bcd,kd->bck', enc[:, :4, :], p['W1'],
                                 precision=hp) + p['b1'], axis=1)
        e2 = jnp.einsum('bd,kd->bk', enc[:, 4, :], p['W2'],
                        precision=hp) + p['b2']
        candi.append(l2n(jnp.concatenate([e1, e2], axis=-1))[:, None, :])
    candi.append(l2n(req)[:, None, :])
    candi = jnp.concatenate(candi, axis=1)                      # (bs, 4, KEY)

    G = jnp.einsum('bij,bkj->bik', candi, candi, precision=hp)
    result = jnp.tril(G, k=-1)[:, 1:, :-1]                      # (bs, 3, 3)

    o1 = p['conv_w'].reshape(1, OUT_C, 1, 1) * result[:, None, :, :]
    flat = o1.reshape(bs, FLAT)
    mu = flat.mean(-1, keepdims=True)
    var = ((flat - mu) ** 2).mean(-1, keepdims=True)
    y = (flat - mu) / jnp.sqrt(var + 1e-5) * p['gamma'] + p['beta']
    act = jnp.where(y >= 0, y, 0.01 * y)
    out_rnk = jnp.einsum('bf,kf->bk', act, p['fin_w'], precision=hp)
    return out_rnk, result[:, -1, :]


if __name__ == "__main__":
    key = jax.random.PRNGKey(0)
    ks = jax.random.split(key, 12)
    # Deterministic synthetic parameters (shapes from PolicyNet4.__init__ / Eval_Head)
    params = {
        'W1': jax.random.normal(ks[0], (HALF, 512), jnp.float32) * 0.05,     # _summary1
        'b1': jax.random.normal(ks[1], (HALF,), jnp.float32) * 0.05,
        'W2': jax.random.normal(ks[2], (HALF, 512), jnp.float32) * 0.05,     # _summary2
        'b2': jax.random.normal(ks[3], (HALF,), jnp.float32) * 0.05,
        'conv_w': jax.random.normal(ks[4], (OUT_C,), jnp.float32),           # Conv2d(1,4,1,bias=False)
        'gamma': 1.0 + 0.1 * jax.random.normal(ks[5], (FLAT,), jnp.float32), # LayerNorm(36)
        'beta': 0.1 * jax.random.normal(ks[6], (FLAT,), jnp.float32),
        'fin_w': jax.random.normal(ks[7], (N_OUT, FLAT), jnp.float32) * 0.2, # Linear(36,6,bias=False)
    }

    # bs=2: block (8) larger than the batch -> fully masked ragged block.
    # bs=70: multi-step grid with a ragged last block (no pre-pad copy).
    for bs, kq, kc in ((2, ks[8], ks[9]), (70, ks[10], ks[11])):
        req = jax.random.normal(kq, (bs, KEY), jnp.float32)
        crd = jax.random.normal(kc, (bs, NUM_RNK, SEQ, FEAT), jnp.float32)

        out_rnk, out2 = policy_net4_pallas(req, crd, params)
        jax.block_until_ready((out_rnk, out2))

        ref_rnk, ref2 = reference_forward(req, crd, params)
        assert out_rnk.shape == (bs, N_OUT) and out2.shape == (bs, NUM_RNK)
        # NOTE: torch .squeeze() quirks for bs==1 are not reproduced; bs>1 assumed.
        assert jnp.allclose(out_rnk, ref_rnk, rtol=1e-3, atol=1e-3), "out_rnk mismatch"
        assert jnp.allclose(out2, ref2, rtol=1e-3, atol=1e-3), "result row mismatch"

    # bf16 crd path: the kernel reads crd at the caller's dtype (half the HBM
    # traffic) and accumulates in f32; compare against the f32 reference fed
    # the same bf16-rounded inputs.
    bs = 70
    req = jax.random.normal(ks[10], (bs, KEY), jnp.float32)
    crd_bf = jax.random.normal(ks[11], (bs, NUM_RNK, SEQ, FEAT),
                               jnp.float32).astype(jnp.bfloat16)
    out_rnk, out2 = policy_net4_pallas(req, crd_bf, params)
    jax.block_until_ready((out_rnk, out2))
    ref_rnk, ref2 = reference_forward(req, crd_bf.astype(jnp.float32), params)
    assert jnp.allclose(out_rnk, ref_rnk, rtol=1e-3, atol=1e-3), "bf16 out_rnk mismatch"
    assert jnp.allclose(out2, ref2, rtol=1e-3, atol=1e-3), "bf16 result row mismatch"

    print("KERNEL_OK")
</pallas_src>

<mosaic_0001>
module attributes {stable_mosaic.version = 11 : i64} {
  func.func @_policy_kernel(%arg0: i32, %arg1: memref<8x3x8x2560xf32, #tpu.memory_space<vmem>>, %arg2: memref<8x32xf32, #tpu.memory_space<vmem>>, %arg3: memref<512x32xf32, #tpu.memory_space<vmem>>, %arg4: memref<512x32xf32, #tpu.memory_space<vmem>>, %arg5: memref<1x32xf32, #tpu.memory_space<vmem>>, %arg6: memref<1x36xf32, #tpu.memory_space<vmem>>, %arg7: memref<1x36xf32, #tpu.memory_space<vmem>>, %arg8: memref<1x36xf32, #tpu.memory_space<vmem>>, %arg9: memref<36x6xf32, #tpu.memory_space<vmem>>, %arg10: memref<8x9xf32, #tpu.memory_space<vmem>>) attributes {dimension_semantics = [#tpu.dimension_semantics<parallel>], iteration_bounds = array<i64: 1>, scalar_prefetch = 0 : i64, scratch_operands = 0 : i64, tpu.core_type = #tpu.core_type<tc>, window_params = [{transform_indices = @transform_0, window_bounds = array<i64: 8, 3, 8, 2560>}, {transform_indices = @transform_1, window_bounds = array<i64: 8, 32>}, {pipeline_mode = #tpu.pipeline_mode<synchronous>, transform_indices = @transform_2, window_bounds = array<i64: 512, 32>}, {pipeline_mode = #tpu.pipeline_mode<synchronous>, transform_indices = @transform_3, window_bounds = array<i64: 512, 32>}, {pipeline_mode = #tpu.pipeline_mode<synchronous>, transform_indices = @transform_4, window_bounds = array<i64: 1, 32>}, {pipeline_mode = #tpu.pipeline_mode<synchronous>, transform_indices = @transform_5, window_bounds = array<i64: 1, 36>}, {pipeline_mode = #tpu.pipeline_mode<synchronous>, transform_indices = @transform_6, window_bounds = array<i64: 1, 36>}, {pipeline_mode = #tpu.pipeline_mode<synchronous>, transform_indices = @transform_7, window_bounds = array<i64: 1, 36>}, {pipeline_mode = #tpu.pipeline_mode<synchronous>, transform_indices = @transform_8, window_bounds = array<i64: 36, 6>}, {transform_indices = @transform_9, window_bounds = array<i64: 8, 9>}]} {
    %c0 = arith.constant 0 : index
    %c0_0 = arith.constant 0 : index
    %c0_1 = arith.constant 0 : index
    %c0_2 = arith.constant 0 : index
    %0 = vector.load %arg1[%c0, %c0_0, %c0_1, %c0_2] : memref<8x3x8x2560xf32, #tpu.memory_space<vmem>>, vector<8x1x8x512xf32>
    %c0_3 = arith.constant 0 : index
    %c0_4 = arith.constant 0 : index
    %c0_5 = arith.constant 0 : index
    %c512 = arith.constant 512 : index
    %1 = vector.load %arg1[%c0_3, %c0_4, %c0_5, %c512] : memref<8x3x8x2560xf32, #tpu.memory_space<vmem>>, vector<8x1x8x512xf32>
    %2 = arith.addf %0, %1 : vector<8x1x8x512xf32>
    %c0_6 = arith.constant 0 : index
    %c0_7 = arith.constant 0 : index
    %c0_8 = arith.constant 0 : index
    %c1024 = arith.constant 1024 : index
    %3 = vector.load %arg1[%c0_6, %c0_7, %c0_8, %c1024] : memref<8x3x8x2560xf32, #tpu.memory_space<vmem>>, vector<8x1x8x512xf32>
    %4 = arith.addf %2, %3 : vector<8x1x8x512xf32>
    %c0_9 = arith.constant 0 : index
    %c0_10 = arith.constant 0 : index
    %c0_11 = arith.constant 0 : index
    %c1536 = arith.constant 1536 : index
    %5 = vector.load %arg1[%c0_9, %c0_10, %c0_11, %c1536] : memref<8x3x8x2560xf32, #tpu.memory_space<vmem>>, vector<8x1x8x512xf32>
    %6 = arith.addf %4, %5 : vector<8x1x8x512xf32>
    %cst = arith.constant dense<0.000000e+00> : vector<8x512xf32>
    %7 = vector.multi_reduction <add>, %6, %cst [1, 2] : vector<8x1x8x512xf32> to vector<8x512xf32>
    %c0_12 = arith.constant 0 : index
    %c0_13 = arith.constant 0 : index
    %c0_14 = arith.constant 0 : index
    %c2048 = arith.constant 2048 : index
    %8 = vector.load %arg1[%c0_12, %c0_13, %c0_14, %c2048] : memref<8x3x8x2560xf32, #tpu.memory_space<vmem>>, vector<8x1x8x512xf32>
    %cst_15 = arith.constant dense<0.000000e+00> : vector<8x512xf32>
    %9 = vector.multi_reduction <add>, %8, %cst_15 [1, 2] : vector<8x1x8x512xf32> to vector<8x512xf32>
    %c0_16 = arith.constant 0 : index
    %c1 = arith.constant 1 : index
    %c0_17 = arith.constant 0 : index
    %c0_18 = arith.constant 0 : index
    %10 = vector.load %arg1[%c0_16, %c1, %c0_17, %c0_18] : memref<8x3x8x2560xf32, #tpu.memory_space<vmem>>, vector<8x1x8x512xf32>
    %c0_19 = arith.constant 0 : index
    %c1_20 = arith.constant 1 : index
    %c0_21 = arith.constant 0 : index
    %c512_22 = arith.constant 512 : index
    %11 = vector.load %arg1[%c0_19, %c1_20, %c0_21, %c512_22] : memref<8x3x8x2560xf32, #tpu.memory_space<vmem>>, vector<8x1x8x512xf32>
    %12 = arith.addf %10, %11 : vector<8x1x8x512xf32>
    %c0_23 = arith.constant 0 : index
    %c1_24 = arith.constant 1 : index
    %c0_25 = arith.constant 0 : index
    %c1024_26 = arith.constant 1024 : index
    %13 = vector.load %arg1[%c0_23, %c1_24, %c0_25, %c1024_26] : memref<8x3x8x2560xf32, #tpu.memory_space<vmem>>, vector<8x1x8x512xf32>
    %14 = arith.addf %12, %13 : vector<8x1x8x512xf32>
    %c0_27 = arith.constant 0 : index
    %c1_28 = arith.constant 1 : index
    %c0_29 = arith.constant 0 : index
    %c1536_30 = arith.constant 1536 : index
    %15 = vector.load %arg1[%c0_27, %c1_28, %c0_29, %c1536_30] : memref<8x3x8x2560xf32, #tpu.memory_space<vmem>>, vector<8x1x8x512xf32>
    %16 = arith.addf %14, %15 : vector<8x1x8x512xf32>
    %cst_31 = arith.constant dense<0.000000e+00> : vector<8x512xf32>
    %17 = vector.multi_reduction <add>, %16, %cst_31 [1, 2] : vector<8x1x8x512xf32> to vector<8x512xf32>
    %c0_32 = arith.constant 0 : index
    %c1_33 = arith.constant 1 : index
    %c0_34 = arith.constant 0 : index
    %c2048_35 = arith.constant 2048 : index
    %18 = vector.load %arg1[%c0_32, %c1_33, %c0_34, %c2048_35] : memref<8x3x8x2560xf32, #tpu.memory_space<vmem>>, vector<8x1x8x512xf32>
    %cst_36 = arith.constant dense<0.000000e+00> : vector<8x512xf32>
    %19 = vector.multi_reduction <add>, %18, %cst_36 [1, 2] : vector<8x1x8x512xf32> to vector<8x512xf32>
    %c0_37 = arith.constant 0 : index
    %c2 = arith.constant 2 : index
    %c0_38 = arith.constant 0 : index
    %c0_39 = arith.constant 0 : index
    %20 = vector.load %arg1[%c0_37, %c2, %c0_38, %c0_39] : memref<8x3x8x2560xf32, #tpu.memory_space<vmem>>, vector<8x1x8x512xf32>
    %c0_40 = arith.constant 0 : index
    %c2_41 = arith.constant 2 : index
    %c0_42 = arith.constant 0 : index
    %c512_43 = arith.constant 512 : index
    %21 = vector.load %arg1[%c0_40, %c2_41, %c0_42, %c512_43] : memref<8x3x8x2560xf32, #tpu.memory_space<vmem>>, vector<8x1x8x512xf32>
    %22 = arith.addf %20, %21 : vector<8x1x8x512xf32>
    %c0_44 = arith.constant 0 : index
    %c2_45 = arith.constant 2 : index
    %c0_46 = arith.constant 0 : index
    %c1024_47 = arith.constant 1024 : index
    %23 = vector.load %arg1[%c0_44, %c2_45, %c0_46, %c1024_47] : memref<8x3x8x2560xf32, #tpu.memory_space<vmem>>, vector<8x1x8x512xf32>
    %24 = arith.addf %22, %23 : vector<8x1x8x512xf32>
    %c0_48 = arith.constant 0 : index
    %c2_49 = arith.constant 2 : index
    %c0_50 = arith.constant 0 : index
    %c1536_51 = arith.constant 1536 : index
    %25 = vector.load %arg1[%c0_48, %c2_49, %c0_50, %c1536_51] : memref<8x3x8x2560xf32, #tpu.memory_space<vmem>>, vector<8x1x8x512xf32>
    %26 = arith.addf %24, %25 : vector<8x1x8x512xf32>
    %cst_52 = arith.constant dense<0.000000e+00> : vector<8x512xf32>
    %27 = vector.multi_reduction <add>, %26, %cst_52 [1, 2] : vector<8x1x8x512xf32> to vector<8x512xf32>
    %c0_53 = arith.constant 0 : index
    %c2_54 = arith.constant 2 : index
    %c0_55 = arith.constant 0 : index
    %c2048_56 = arith.constant 2048 : index
    %28 = vector.load %arg1[%c0_53, %c2_54, %c0_55, %c2048_56] : memref<8x3x8x2560xf32, #tpu.memory_space<vmem>>, vector<8x1x8x512xf32>
    %cst_57 = arith.constant dense<0.000000e+00> : vector<8x512xf32>
    %29 = vector.multi_reduction <add>, %28, %cst_57 [1, 2] : vector<8x1x8x512xf32> to vector<8x512xf32>
    %30 = tpu.concatenate %7, %17, %27 in 0 : vector<8x512xf32>, vector<8x512xf32>, vector<8x512xf32> -> vector<24x512xf32>
    %31 = tpu.concatenate %9, %19, %29 in 0 : vector<8x512xf32>, vector<8x512xf32>, vector<8x512xf32> -> vector<24x512xf32>
    %c0_58 = arith.constant 0 : index
    %c0_59 = arith.constant 0 : index
    %32 = vector.load %arg3[%c0_58, %c0_59] : memref<512x32xf32, #tpu.memory_space<vmem>>, vector<512x32xf32>
    %cst_60 = arith.constant dense<0.000000e+00> : vector<24x32xf32>
    %33 = tpu.matmul %30, %32, %cst_60 {dimension_numbers = #tpu.dot_dimension_numbers<[1], [0], [0], [1], [0, 0, 1, 1], [], []>, precision = #tpu.contract_precision<fp32>} : vector<24x512xf32>, vector<512x32xf32>, vector<24x32xf32> -> vector<24x32xf32>
    %c0_61 = arith.constant 0 : index
    %c0_62 = arith.constant 0 : index
    %34 = vector.load %arg4[%c0_61, %c0_62] : memref<512x32xf32, #tpu.memory_space<vmem>>, vector<512x32xf32>
    %cst_63 = arith.constant dense<0.000000e+00> : vector<24x32xf32>
    %35 = tpu.matmul %31, %34, %cst_63 {dimension_numbers = #tpu.dot_dimension_numbers<[1], [0], [0], [1], [0, 0, 1, 1], [], []>, precision = #tpu.contract_precision<fp32>} : vector<24x512xf32>, vector<512x32xf32>, vector<24x32xf32> -> vector<24x32xf32>
    %36 = arith.addf %33, %35 : vector<24x32xf32>
    %c0_64 = arith.constant 0 : index
    %c0_65 = arith.constant 0 : index
    %37 = vector.load %arg5[%c0_64, %c0_65] : memref<1x32xf32, #tpu.memory_space<vmem>>, vector<1x32xf32>
    %38 = vector.broadcast %37 : vector<1x32xf32> to vector<24x32xf32>
    %39 = arith.addf %36, %38 : vector<24x32xf32>
    %40 = arith.mulf %39, %39 : vector<24x32xf32>
    %cst_66 = arith.constant dense<0.000000e+00> : vector<24xf32>
    %41 = vector.multi_reduction <add>, %40, %cst_66 [1] : vector<24x32xf32> to vector<24xf32>
    %42 = vector.shape_cast %41 : vector<24xf32> to vector<24x1xf32>
    %43 = math.sqrt %42 : vector<24x1xf32>
    %cst_67 = arith.constant 9.99999996E-13 : f32
    %44 = vector.broadcast %cst_67 : f32 to vector<24x1xf32>
    %45 = arith.maximumf %43, %44 : vector<24x1xf32>
    %46 = vector.broadcast %45 : vector<24x1xf32> to vector<24x32xf32>
    %47 = arith.divf %39, %46 : vector<24x32xf32>
    %48 = vector.extract_strided_slice %47 {offsets = [0, 0], sizes = [8, 32], strides = [1, 1]} : vector<24x32xf32> to vector<8x32xf32>
    %49 = vector.extract_strided_slice %47 {offsets = [8, 0], sizes = [8, 32], strides = [1, 1]} : vector<24x32xf32> to vector<8x32xf32>
    %50 = vector.extract_strided_slice %47 {offsets = [16, 0], sizes = [8, 32], strides = [1, 1]} : vector<24x32xf32> to vector<8x32xf32>
    %c0_68 = arith.constant 0 : index
    %c0_69 = arith.constant 0 : index
    %51 = vector.load %arg2[%c0_68, %c0_69] : memref<8x32xf32, #tpu.memory_space<vmem>>, vector<8x32xf32>
    %52 = arith.mulf %51, %51 : vector<8x32xf32>
    %cst_70 = arith.constant dense<0.000000e+00> : vector<8xf32>
    %53 = vector.multi_reduction <add>, %52, %cst_70 [1] : vector<8x32xf32> to vector<8xf32>
    %54 = vector.shape_cast %53 : vector<8xf32> to vector<8x1xf32>
    %55 = math.sqrt %54 : vector<8x1xf32>
    %cst_71 = arith.constant 9.99999996E-13 : f32
    %56 = vector.broadcast %cst_71 : f32 to vector<8x1xf32>
    %57 = arith.maximumf %55, %56 : vector<8x1xf32>
    %58 = vector.broadcast %57 : vector<8x1xf32> to vector<8x32xf32>
    %59 = arith.divf %51, %58 : vector<8x32xf32>
    %60 = arith.mulf %49, %48 : vector<8x32xf32>
    %cst_72 = arith.constant dense<0.000000e+00> : vector<8xf32>
    %61 = vector.multi_reduction <add>, %60, %cst_72 [1] : vector<8x32xf32> to vector<8xf32>
    %62 = vector.shape_cast %61 : vector<8xf32> to vector<8x1xf32>
    %63 = arith.mulf %50, %48 : vector<8x32xf32>
    %cst_73 = arith.constant dense<0.000000e+00> : vector<8xf32>
    %64 = vector.multi_reduction <add>, %63, %cst_73 [1] : vector<8x32xf32> to vector<8xf32>
    %65 = vector.shape_cast %64 : vector<8xf32> to vector<8x1xf32>
    %66 = arith.mulf %50, %49 : vector<8x32xf32>
    %cst_74 = arith.constant dense<0.000000e+00> : vector<8xf32>
    %67 = vector.multi_reduction <add>, %66, %cst_74 [1] : vector<8x32xf32> to vector<8xf32>
    %68 = vector.shape_cast %67 : vector<8xf32> to vector<8x1xf32>
    %69 = arith.mulf %59, %48 : vector<8x32xf32>
    %cst_75 = arith.constant dense<0.000000e+00> : vector<8xf32>
    %70 = vector.multi_reduction <add>, %69, %cst_75 [1] : vector<8x32xf32> to vector<8xf32>
    %71 = vector.shape_cast %70 : vector<8xf32> to vector<8x1xf32>
    %72 = arith.mulf %59, %49 : vector<8x32xf32>
    %cst_76 = arith.constant dense<0.000000e+00> : vector<8xf32>
    %73 = vector.multi_reduction <add>, %72, %cst_76 [1] : vector<8x32xf32> to vector<8xf32>
    %74 = vector.shape_cast %73 : vector<8xf32> to vector<8x1xf32>
    %75 = arith.mulf %59, %50 : vector<8x32xf32>
    %cst_77 = arith.constant dense<0.000000e+00> : vector<8xf32>
    %76 = vector.multi_reduction <add>, %75, %cst_77 [1] : vector<8x32xf32> to vector<8xf32>
    %77 = vector.shape_cast %76 : vector<8xf32> to vector<8x1xf32>
    %cst_78 = arith.constant 0.000000e+00 : f32
    %78 = vector.broadcast %cst_78 : f32 to vector<8x1xf32>
    %79 = tpu.concatenate %62, %78, %78, %65, %68, %78, %71, %74, %77 in 1 : vector<8x1xf32>, vector<8x1xf32>, vector<8x1xf32>, vector<8x1xf32>, vector<8x1xf32>, vector<8x1xf32>, vector<8x1xf32>, vector<8x1xf32>, vector<8x1xf32> -> vector<8x9xf32>
    %80 = tpu.concatenate %79, %79, %79, %79 in 1 : vector<8x9xf32>, vector<8x9xf32>, vector<8x9xf32>, vector<8x9xf32> -> vector<8x36xf32>
    %c0_79 = arith.constant 0 : index
    %c0_80 = arith.constant 0 : index
    %81 = vector.load %arg6[%c0_79, %c0_80] : memref<1x36xf32, #tpu.memory_space<vmem>>, vector<1x36xf32>
    %82 = vector.broadcast %81 : vector<1x36xf32> to vector<8x36xf32>
    %83 = arith.mulf %80, %82 : vector<8x36xf32>
    %cst_81 = arith.constant dense<0.000000e+00> : vector<8xf32>
    %84 = vector.multi_reduction <add>, %83, %cst_81 [1] : vector<8x36xf32> to vector<8xf32>
    %85 = vector.shape_cast %84 : vector<8xf32> to vector<8x1xf32>
    %cst_82 = arith.constant 3.600000e+01 : f32
    %86 = vector.broadcast %cst_82 : f32 to vector<8x1xf32>
    %87 = arith.divf %85, %86 : vector<8x1xf32>
    %88 = vector.broadcast %87 : vector<8x1xf32> to vector<8x36xf32>
    %89 = arith.subf %83, %88 : vector<8x36xf32>
    %90 = arith.mulf %89, %89 : vector<8x36xf32>
    %cst_83 = arith.constant dense<0.000000e+00> : vector<8xf32>
    %91 = vector.multi_reduction <add>, %90, %cst_83 [1] : vector<8x36xf32> to vector<8xf32>
    %92 = vector.shape_cast %91 : vector<8xf32> to vector<8x1xf32>
    %cst_84 = arith.constant 3.600000e+01 : f32
    %93 = vector.broadcast %cst_84 : f32 to vector<8x1xf32>
    %94 = arith.divf %92, %93 : vector<8x1xf32>
    %95 = vector.broadcast %87 : vector<8x1xf32> to vector<8x36xf32>
    %96 = arith.subf %83, %95 : vector<8x36xf32>
    %cst_85 = arith.constant 9.99999974E-6 : f32
    %97 = vector.broadcast %cst_85 : f32 to vector<8x1xf32>
    %98 = arith.addf %94, %97 : vector<8x1xf32>
    %99 = math.sqrt %98 : vector<8x1xf32>
    %100 = vector.broadcast %99 : vector<8x1xf32> to vector<8x36xf32>
    %101 = arith.divf %96, %100 : vector<8x36xf32>
    %c0_86 = arith.constant 0 : index
    %c0_87 = arith.constant 0 : index
    %102 = vector.load %arg7[%c0_86, %c0_87] : memref<1x36xf32, #tpu.memory_space<vmem>>, vector<1x36xf32>
    %103 = vector.broadcast %102 : vector<1x36xf32> to vector<8x36xf32>
    %104 = arith.mulf %101, %103 : vector<8x36xf32>
    %c0_88 = arith.constant 0 : index
    %c0_89 = arith.constant 0 : index
    %105 = vector.load %arg8[%c0_88, %c0_89] : memref<1x36xf32, #tpu.memory_space<vmem>>, vector<1x36xf32>
    %106 = vector.broadcast %105 : vector<1x36xf32> to vector<8x36xf32>
    %107 = arith.addf %104, %106 : vector<8x36xf32>
    %cst_90 = arith.constant 0.000000e+00 : f32
    %108 = vector.broadcast %cst_90 : f32 to vector<8x36xf32>
    %109 = arith.cmpf oge, %107, %108 : vector<8x36xf32>
    %cst_91 = arith.constant 0.00999999977 : f32
    %110 = vector.broadcast %cst_91 : f32 to vector<8x36xf32>
    %111 = arith.mulf %110, %107 : vector<8x36xf32>
    %112 = arith.select %109, %107, %111 : vector<8x36xi1>, vector<8x36xf32>
    %c0_92 = arith.constant 0 : index
    %c0_93 = arith.constant 0 : index
    %113 = vector.load %arg9[%c0_92, %c0_93] : memref<36x6xf32, #tpu.memory_space<vmem>>, vector<36x6xf32>
    %cst_94 = arith.constant dense<0.000000e+00> : vector<8x6xf32>
    %114 = tpu.matmul %112, %113, %cst_94 {dimension_numbers = #tpu.dot_dimension_numbers<[1], [0], [0], [1], [0, 0, 1, 1], [], []>, precision = #tpu.contract_precision<fp32>} : vector<8x36xf32>, vector<36x6xf32>, vector<8x6xf32> -> vector<8x6xf32>
    %115 = tpu.concatenate %114, %71, %74, %77 in 1 : vector<8x6xf32>, vector<8x1xf32>, vector<8x1xf32>, vector<8x1xf32> -> vector<8x9xf32>
    %c0_95 = arith.constant 0 : index
    %c0_96 = arith.constant 0 : index
    %116 = vector.load %arg10[%c0_95, %c0_96] : memref<8x9xf32, #tpu.memory_space<vmem>>, vector<8x9xf32>
    tpu.vector_store %arg10[%c0_95, %c0_96], %115 {strides = array<i32>} : memref<8x9xf32, #tpu.memory_space<vmem>>, vector<8x9xf32>,
    return
  }
  func.func @transform_0(%arg0: i32) -> (i32, i32, i32, i32) {
    %c0_i32 = arith.constant 0 : i32
    %c0_i32_0 = arith.constant 0 : i32
    %c0_i32_1 = arith.constant 0 : i32
    %c0_i32_2 = arith.constant 0 : i32
    return %arg0, %c0_i32, %c0_i32_0, %c0_i32_1 : i32, i32, i32, i32
  }
  func.func @transform_1(%arg0: i32) -> (i32, i32) {
    %c0_i32 = arith.constant 0 : i32
    %c0_i32_0 = arith.constant 0 : i32
    return %arg0, %c0_i32 : i32, i32
  }
  func.func @transform_2(%arg0: i32) -> (i32, i32) {
    %c0_i32 = arith.constant 0 : i32
    %c0_i32_0 = arith.constant 0 : i32
    %c0_i32_1 = arith.constant 0 : i32
    return %c0_i32, %c0_i32_0 : i32, i32
  }
  func.func @transform_3(%arg0: i32) -> (i32, i32) {
    %c0_i32 = arith.constant 0 : i32
    %c0_i32_0 = arith.constant 0 : i32
    %c0_i32_1 = arith.constant 0 : i32
    return %c0_i32, %c0_i32_0 : i32, i32
  }
  func.func @transform_4(%arg0: i32) -> (i32, i32) {
    %c0_i32 = arith.constant 0 : i32
    %c0_i32_0 = arith.constant 0 : i32
    %c0_i32_1 = arith.constant 0 : i32
    return %c0_i32, %c0_i32_0 : i32, i32
  }
  func.func @transform_5(%arg0: i32) -> (i32, i32) {
    %c0_i32 = arith.constant 0 : i32
    %c0_i32_0 = arith.constant 0 : i32
    %c0_i32_1 = arith.constant 0 : i32
    return %c0_i32, %c0_i32_0 : i32, i32
  }
  func.func @transform_6(%arg0: i32) -> (i32, i32) {
    %c0_i32 = arith.constant 0 : i32
    %c0_i32_0 = arith.constant 0 : i32
    %c0_i32_1 = arith.constant 0 : i32
    return %c0_i32, %c0_i32_0 : i32, i32
  }
  func.func @transform_7(%arg0: i32) -> (i32, i32) {
    %c0_i32 = arith.constant 0 : i32
    %c0_i32_0 = arith.constant 0 : i32
    %c0_i32_1 = arith.constant 0 : i32
    return %c0_i32, %c0_i32_0 : i32, i32
  }
  func.func @transform_8(%arg0: i32) -> (i32, i32) {
    %c0_i32 = arith.constant 0 : i32
    %c0_i32_0 = arith.constant 0 : i32
    %c0_i32_1 = arith.constant 0 : i32
    return %c0_i32, %c0_i32_0 : i32, i32
  }
  func.func @transform_9(%arg0: i32) -> (i32, i32) {
    %c0_i32 = arith.constant 0 : i32
    %c0_i32_0 = arith.constant 0 : i32
    return %arg0, %c0_i32 : i32, i32
  }
}

</mosaic_0001>

<llo_original>
// kernel: _forward_jit.1
$region0: #{_forward_jit.1}
  #allocation0 [shape = 'u32[]', space=smem, size = 0x4, offset = 0x4, fixed_abs, tag = 'smem constant byte address 0x4 - core index']
  #allocation1 [shape = 'u32[72,128]{1,0:T(1,128)}', space=vmem, size = 0x9000, scoped, tag = 'internal scratch']
  %s0 = inlined_call_operand.vmem [shape: f32[2,3,8,2560], index: 0, kind: input, shape index: {}]
  %s1 = inlined_call_operand.vmem [shape: f32[2,32], index: 1, kind: input, shape index: {}]
  %s2 = inlined_call_operand.vmem [shape: f32[512,32], index: 2, kind: input, shape index: {}]
  %s3 = inlined_call_operand.vmem [shape: f32[512,32], index: 3, kind: input, shape index: {}]
  %s4 = inlined_call_operand.vmem [shape: f32[1,32], index: 4, kind: input, shape index: {}]
  %s5 = inlined_call_operand.vmem [shape: f32[1,36], index: 5, kind: input, shape index: {}]
  %s6 = inlined_call_operand.vmem [shape: f32[1,36], index: 6, kind: input, shape index: {}]
  %s7 = inlined_call_operand.vmem [shape: f32[1,36], index: 7, kind: input, shape index: {}]
  %s8 = inlined_call_operand.vmem [shape: f32[36,6], index: 8, kind: input, shape index: {}]
  %s9 = inlined_call_operand.vmem [shape: f32[2,9], index: 9, kind: output, shape index: {}]
  %s10 = sld [smem:[#allocation0]]
  $region76: #{_forward_jit.1} parent=0
    _
  %s12 = ssub.s32 1, %s10
  %s13 = scalar_select 0, %s12, %s10
  $region1: #{_forward_jit.1} parent=0
    #allocation2 [shape = 'u8[4096]{0}', space=vmem, size = 0x1000, scoped, tag = 'output window, operand 0, single buffered']
    // Predicated region
    $region2: #{_forward_jit.1} parent=1 // pred_check
      _
    $region3: #{_forward_jit.1} parent=1 // pred_check_branch
      %15 = sbr.rel (0) target = $region5
    $region4: #{_forward_jit.1} parent=1 // pred_region
      _
    $region5: #{_forward_jit.1} parent=1 // pred_fallthru
      _
    // Predicated region
    $region6: #{_forward_jit.1} parent=1 // pred_check
      _
    $region7: #{_forward_jit.1} parent=1 // pred_check_branch
      %17 = sbr.rel (0) target = $region9
    $region8: #{_forward_jit.1} parent=1 // pred_region
      _
    $region9: #{_forward_jit.1} parent=1 // pred_fallthru
      _
    // Predicated region
    $region10: #{_forward_jit.1} parent=1 // pred_check
      _
    $region11: #{_forward_jit.1} parent=1 // pred_check_branch
      %19 = sbr.rel (0) target = $region13
    $region12: #{_forward_jit.1} parent=1 // pred_region
      _
    $region13: #{_forward_jit.1} parent=1 // pred_fallthru
      _
    // Predicated region
    $region14: #{_forward_jit.1} parent=1 // pred_check
      _
    $region15: #{_forward_jit.1} parent=1 // pred_check_branch
      %21 = sbr.rel (0) target = $region17
    $region16: #{_forward_jit.1} parent=1 // pred_region
      _
    $region17: #{_forward_jit.1} parent=1 // pred_fallthru
      _
    // Predicated region
    $region18: #{_forward_jit.1} parent=1 // pred_check
      _
    $region19: #{_forward_jit.1} parent=1 // pred_check_branch
      %23 = sbr.rel (0) target = $region21
    $region20: #{_forward_jit.1} parent=1 // pred_region
      _
    $region21: #{_forward_jit.1} parent=1 // pred_fallthru
      _
    // Predicated region
    $region22: #{_forward_jit.1} parent=1 // pred_check
      _
    $region23: #{_forward_jit.1} parent=1 // pred_check_branch
      %25 = sbr.rel (0) target = $region25
    $region24: #{_forward_jit.1} parent=1 // pred_region
      _
    $region25: #{_forward_jit.1} parent=1 // pred_fallthru
      _
    // Predicated region
    $region26: #{_forward_jit.1} parent=1 // pred_check
      _
    $region27: #{_forward_jit.1} parent=1 // pred_check_branch
      %27 = sbr.rel (0) target = $region29
    $region28: #{_forward_jit.1} parent=1 // pred_region
      _
    $region29: #{_forward_jit.1} parent=1 // pred_fallthru
      _
    // Predicated region
    $region30: #{_forward_jit.1} parent=1 // pred_check
      _
    $region31: #{_forward_jit.1} parent=1 // pred_check_branch
      %29 = sbr.rel (0) target = $region33
    $region32: #{_forward_jit.1} parent=1 // pred_region
      _
    $region33: #{_forward_jit.1} parent=1 // pred_fallthru
      _
    // Predicated region
    $region34: #{_forward_jit.1} parent=1 // pred_check
      _
    $region35: #{_forward_jit.1} parent=1 // pred_check_branch
      %31 = sbr.rel (0) target = $region37
    $region36: #{_forward_jit.1} parent=1 // pred_region
      _
    $region37: #{_forward_jit.1} parent=1 // pred_fallthru
      _
    %v32 = vld [vmem:[%s0] sm:$0xff]
    %v33 = vld [vmem:[%s0 + $0x8] sm:$0xff]
    %v34 = vld [vmem:[%s0 + $0x10] sm:$0xff]
    %v35 = vld [vmem:[%s0 + $0x18] sm:$0xff]
    %v36 = vld [vmem:[%s0 + $0x1e0] sm:$0xff]
    %v37 = vld [vmem:[%s0 + $0x1e8] sm:$0xff]
    %v38 = vld [vmem:[%s0 + $0x1f0] sm:$0xff]
    %v39 = vld [vmem:[%s0 + $0x1f8] sm:$0xff]
    %v40 = vld [vmem:[%s0 + $0x3c0] sm:$0xff]
    %v41 = vld [vmem:[%s0 + $0x3c8] sm:$0xff]
    %v42 = vld [vmem:[%s0 + $0x3d0] sm:$0xff]
    %v43 = vld [vmem:[%s0 + $0x3d8] sm:$0xff]
    %v44 = vld [vmem:[%s0 + $0x5a0] sm:$0xff]
    %v45 = vld [vmem:[%s0 + $0x5a8] sm:$0xff]
    %v46 = vld [vmem:[%s0 + $0x5b0] sm:$0xff]
    %v47 = vld [vmem:[%s0 + $0x5b8] sm:$0xff]
    %v48 = vld [vmem:[%s0 + $0x780] sm:$0xff]
    %v49 = vld [vmem:[%s0 + $0x788] sm:$0xff]
    %v50 = vld [vmem:[%s0 + $0x790] sm:$0xff]
    %v51 = vld [vmem:[%s0 + $0x798] sm:$0xff]
    %v52 = vld [vmem:[%s0 + $0x960] sm:$0xff]
    %v53 = vld [vmem:[%s0 + $0x968] sm:$0xff]
    %v54 = vld [vmem:[%s0 + $0x970] sm:$0xff]
    %v55 = vld [vmem:[%s0 + $0x978] sm:$0xff]
    %v56 = vld [vmem:[%s0 + $0xb40] sm:$0xff]
    %v57 = vld [vmem:[%s0 + $0xb48] sm:$0xff]
    %v58 = vld [vmem:[%s0 + $0xb50] sm:$0xff]
    %v59 = vld [vmem:[%s0 + $0xb58] sm:$0xff]
    %v60 = vld [vmem:[%s0 + $0xd20] sm:$0xff]
    %v61 = vld [vmem:[%s0 + $0xd28] sm:$0xff]
    %v62 = vld [vmem:[%s0 + $0xd30] sm:$0xff]
    %v63 = vld [vmem:[%s0 + $0xd38] sm:$0xff]
    %v64 = vld [vmem:[%s0 + $0x20] sm:$0xff]
    %v65 = vld [vmem:[%s0 + $0x28] sm:$0xff]
    %v66 = vld [vmem:[%s0 + $0x30] sm:$0xff]
    %v67 = vld [vmem:[%s0 + $0x38] sm:$0xff]
    %v68 = vld [vmem:[%s0 + $0x200] sm:$0xff]
    %v69 = vld [vmem:[%s0 + $0x208] sm:$0xff]
    %v70 = vld [vmem:[%s0 + $0x210] sm:$0xff]
    %v71 = vld [vmem:[%s0 + $0x218] sm:$0xff]
    %v72 = vld [vmem:[%s0 + $0x3e0] sm:$0xff]
    %v73 = vld [vmem:[%s0 + $0x3e8] sm:$0xff]
    %v74 = vld [vmem:[%s0 + $0x3f0] sm:$0xff]
    %v75 = vld [vmem:[%s0 + $0x3f8] sm:$0xff]
    %v76 = vld [vmem:[%s0 + $0x5c0] sm:$0xff]
    %v77 = vld [vmem:[%s0 + $0x5c8] sm:$0xff]
    %v78 = vld [vmem:[%s0 + $0x5d0] sm:$0xff]
    %v79 = vld [vmem:[%s0 + $0x5d8] sm:$0xff]
    %v80 = vld [vmem:[%s0 + $0x7a0] sm:$0xff]
    %v81 = vld [vmem:[%s0 + $0x7a8] sm:$0xff]
    %v82 = vld [vmem:[%s0 + $0x7b0] sm:$0xff]
    %v83 = vld [vmem:[%s0 + $0x7b8] sm:$0xff]
    %v84 = vld [vmem:[%s0 + $0x980] sm:$0xff]
    %v85 = vld [vmem:[%s0 + $0x988] sm:$0xff]
    %v86 = vld [vmem:[%s0 + $0x990] sm:$0xff]
    %v87 = vld [vmem:[%s0 + $0x998] sm:$0xff]
    %v88 = vld [vmem:[%s0 + $0xb60] sm:$0xff]
    %v89 = vld [vmem:[%s0 + $0xb68] sm:$0xff]
    %v90 = vld [vmem:[%s0 + $0xb70] sm:$0xff]
    %v91 = vld [vmem:[%s0 + $0xb78] sm:$0xff]
    %v92 = vld [vmem:[%s0 + $0xd40] sm:$0xff]
    %v93 = vld [vmem:[%s0 + $0xd48] sm:$0xff]
    %v94 = vld [vmem:[%s0 + $0xd50] sm:$0xff]
    %v95 = vld [vmem:[%s0 + $0xd58] sm:$0xff]
    %v96 = vadd.f32 %v32, %v64
    %v97 = vadd.f32 %v33, %v65
    %v98 = vadd.f32 %v34, %v66
    %v99 = vadd.f32 %v35, %v67
    %v100 = vadd.f32 %v36, %v68
    %v101 = vadd.f32 %v37, %v69
    %v102 = vadd.f32 %v38, %v70
    %v103 = vadd.f32 %v39, %v71
    %v104 = vadd.f32 %v40, %v72
    %v105 = vadd.f32 %v41, %v73
    %v106 = vadd.f32 %v42, %v74
    %v107 = vadd.f32 %v43, %v75
    %v108 = vadd.f32 %v44, %v76
    %v109 = vadd.f32 %v45, %v77
    %v110 = vadd.f32 %v46, %v78
    %v111 = vadd.f32 %v47, %v79
    %v112 = vadd.f32 %v48, %v80
    %v113 = vadd.f32 %v49, %v81
    %v114 = vadd.f32 %v50, %v82
    %v115 = vadd.f32 %v51, %v83
    %v116 = vadd.f32 %v52, %v84
    %v117 = vadd.f32 %v53, %v85
    %v118 = vadd.f32 %v54, %v86
    %v119 = vadd.f32 %v55, %v87
    %v120 = vadd.f32 %v56, %v88
    %v121 = vadd.f32 %v57, %v89
    %v122 = vadd.f32 %v58, %v90
    %v123 = vadd.f32 %v59, %v91
    %v124 = vadd.f32 %v60, %v92
    %v125 = vadd.f32 %v61, %v93
    %v126 = vadd.f32 %v62, %v94
    %v127 = vadd.f32 %v63, %v95
    %v128 = vld [vmem:[%s0 + $0x40] sm:$0xff]
    %v129 = vld [vmem:[%s0 + $0x48] sm:$0xff]
    %v130 = vld [vmem:[%s0 + $0x50] sm:$0xff]
    %v131 = vld [vmem:[%s0 + $0x58] sm:$0xff]
    %v132 = vld [vmem:[%s0 + $0x220] sm:$0xff]
    %v133 = vld [vmem:[%s0 + $0x228] sm:$0xff]
    %v134 = vld [vmem:[%s0 + $0x230] sm:$0xff]
    %v135 = vld [vmem:[%s0 + $0x238] sm:$0xff]
    %v136 = vld [vmem:[%s0 + $0x400] sm:$0xff]
    %v137 = vld [vmem:[%s0 + $0x408] sm:$0xff]
    %v138 = vld [vmem:[%s0 + $0x410] sm:$0xff]
    %v139 = vld [vmem:[%s0 + $0x418] sm:$0xff]
    %v140 = vld [vmem:[%s0 + $0x5e0] sm:$0xff]
    %v141 = vld [vmem:[%s0 + $0x5e8] sm:$0xff]
    %v142 = vld [vmem:[%s0 + $0x5f0] sm:$0xff]
    %v143 = vld [vmem:[%s0 + $0x5f8] sm:$0xff]
    %v144 = vld [vmem:[%s0 + $0x7c0] sm:$0xff]
    %v145 = vld [vmem:[%s0 + $0x7c8] sm:$0xff]
    %v146 = vld [vmem:[%s0 + $0x7d0] sm:$0xff]
    %v147 = vld [vmem:[%s0 + $0x7d8] sm:$0xff]
    %v148 = vld [vmem:[%s0 + $0x9a0] sm:$0xff]
    %v149 = vld [vmem:[%s0 + $0x9a8] sm:$0xff]
    %v150 = vld [vmem:[%s0 + $0x9b0] sm:$0xff]
    %v151 = vld [vmem:[%s0 + $0x9b8] sm:$0xff]
    %v152 = vld [vmem:[%s0 + $0xb80] sm:$0xff]
    %v153 = vld [vmem:[%s0 + $0xb88] sm:$0xff]
    %v154 = vld [vmem:[%s0 + $0xb90] sm:$0xff]
    %v155 = vld [vmem:[%s0 + $0xb98] sm:$0xff]
    %v156 = vld [vmem:[%s0 + $0xd60] sm:$0xff]
    %v157 = vld [vmem:[%s0 + $0xd68] sm:$0xff]
    %v158 = vld [vmem:[%s0 + $0xd70] sm:$0xff]
    %v159 = vld [vmem:[%s0 + $0xd78] sm:$0xff]
    %v160 = vadd.f32 %v96, %v128
    %v161 = vadd.f32 %v97, %v129
    %v162 = vadd.f32 %v98, %v130
    %v163 = vadd.f32 %v99, %v131
    %v164 = vadd.f32 %v100, %v132
    %v165 = vadd.f32 %v101, %v133
    %v166 = vadd.f32 %v102, %v134
    %v167 = vadd.f32 %v103, %v135
    %v168 = vadd.f32 %v104, %v136
    %v169 = vadd.f32 %v105, %v137
    %v170 = vadd.f32 %v106, %v138
    %v171 = vadd.f32 %v107, %v139
    %v172 = vadd.f32 %v108, %v140
    %v173 = vadd.f32 %v109, %v141
    %v174 = vadd.f32 %v110, %v142
    %v175 = vadd.f32 %v111, %v143
    %v176 = vadd.f32 %v112, %v144
    %v177 = vadd.f32 %v113, %v145
    %v178 = vadd.f32 %v114, %v146
    %v179 = vadd.f32 %v115, %v147
    %v180 = vadd.f32 %v116, %v148
    %v181 = vadd.f32 %v117, %v149
    %v182 = vadd.f32 %v118, %v150
    %v183 = vadd.f32 %v119, %v151
    %v184 = vadd.f32 %v120, %v152
    %v185 = vadd.f32 %v121, %v153
    %v186 = vadd.f32 %v122, %v154
    %v187 = vadd.f32 %v123, %v155
    %v188 = vadd.f32 %v124, %v156
    %v189 = vadd.f32 %v125, %v157
    %v190 = vadd.f32 %v126, %v158
    %v191 = vadd.f32 %v127, %v159
    %v192 = vld [vmem:[%s0 + $0x60] sm:$0xff]
    %v193 = vld [vmem:[%s0 + $0x68] sm:$0xff]
    %v194 = vld [vmem:[%s0 + $0x70] sm:$0xff]
    %v195 = vld [vmem:[%s0 + $0x78] sm:$0xff]
    %v196 = vld [vmem:[%s0 + $0x240] sm:$0xff]
    %v197 = vld [vmem:[%s0 + $0x248] sm:$0xff]
    %v198 = vld [vmem:[%s0 + $0x250] sm:$0xff]
    %v199 = vld [vmem:[%s0 + $0x258] sm:$0xff]
    %v200 = vld [vmem:[%s0 + $0x420] sm:$0xff]
    %v201 = vld [vmem:[%s0 + $0x428] sm:$0xff]
    %v202 = vld [vmem:[%s0 + $0x430] sm:$0xff]
    %v203 = vld [vmem:[%s0 + $0x438] sm:$0xff]
    %v204 = vld [vmem:[%s0 + $0x600] sm:$0xff]
    %v205 = vld [vmem:[%s0 + $0x608] sm:$0xff]
    %v206 = vld [vmem:[%s0 + $0x610] sm:$0xff]
    %v207 = vld [vmem:[%s0 + $0x618] sm:$0xff]
    %v208 = vld [vmem:[%s0 + $0x7e0] sm:$0xff]
    %v209 = vld [vmem:[%s0 + $0x7e8] sm:$0xff]
    %v210 = vld [vmem:[%s0 + $0x7f0] sm:$0xff]
    %v211 = vld [vmem:[%s0 + $0x7f8] sm:$0xff]
    %v212 = vld [vmem:[%s0 + $0x9c0] sm:$0xff]
    %v213 = vld [vmem:[%s0 + $0x9c8] sm:$0xff]
    %v214 = vld [vmem:[%s0 + $0x9d0] sm:$0xff]
    %v215 = vld [vmem:[%s0 + $0x9d8] sm:$0xff]
    %v216 = vld [vmem:[%s0 + $0xba0] sm:$0xff]
    %v217 = vld [vmem:[%s0 + $0xba8] sm:$0xff]
    %v218 = vld [vmem:[%s0 + $0xbb0] sm:$0xff]
    %v219 = vld [vmem:[%s0 + $0xbb8] sm:$0xff]
    %v220 = vld [vmem:[%s0 + $0xd80] sm:$0xff]
    %v221 = vld [vmem:[%s0 + $0xd88] sm:$0xff]
    %v222 = vld [vmem:[%s0 + $0xd90] sm:$0xff]
    %v223 = vld [vmem:[%s0 + $0xd98] sm:$0xff]
    %v224 = vadd.f32 %v160, %v192
    %v225 = vadd.f32 %v161, %v193
    %v226 = vadd.f32 %v162, %v194
    %v227 = vadd.f32 %v163, %v195
    %v228 = vadd.f32 %v164, %v196
    %v229 = vadd.f32 %v165, %v197
    %v230 = vadd.f32 %v166, %v198
    %v231 = vadd.f32 %v167, %v199
    %v232 = vadd.f32 %v168, %v200
    %v233 = vadd.f32 %v169, %v201
    %v234 = vadd.f32 %v170, %v202
    %v235 = vadd.f32 %v171, %v203
    %v236 = vadd.f32 %v172, %v204
    %v237 = vadd.f32 %v173, %v205
    %v238 = vadd.f32 %v174, %v206
    %v239 = vadd.f32 %v175, %v207
    %v240 = vadd.f32 %v176, %v208
    %v241 = vadd.f32 %v177, %v209
    %v242 = vadd.f32 %v178, %v210
    %v243 = vadd.f32 %v179, %v211
    %v244 = vadd.f32 %v180, %v212
    %v245 = vadd.f32 %v181, %v213
    %v246 = vadd.f32 %v182, %v214
    %v247 = vadd.f32 %v183, %v215
    %v248 = vadd.f32 %v184, %v216
    %v249 = vadd.f32 %v185, %v217
    %v250 = vadd.f32 %v186, %v218
    %v251 = vadd.f32 %v187, %v219
    %v252 = vadd.f32 %v188, %v220
    %v253 = vadd.f32 %v189, %v221
    %v254 = vadd.f32 %v190, %v222
    %v255 = vadd.f32 %v191, %v223
    %v256 = vrot.slane %v224, 4
    %v257 = vadd.f32 %v224, %v256
    %v258 = vrot.slane %v257, 2
    %v259 = vadd.f32 %v257, %v258
    %v260 = vrot.slane %v259, 1
    %v261 = vadd.f32 %v259, %v260
    %v262 = vrot.slane %v225, 4
    %v263 = vadd.f32 %v225, %v262
    %v264 = vrot.slane %v263, 2
    %v265 = vadd.f32 %v263, %v264
    %v266 = vrot.slane %v265, 1
    %v267 = vadd.f32 %v265, %v266
    %v268 = vrot.slane %v226, 4
    %v269 = vadd.f32 %v226, %v268
    %v270 = vrot.slane %v269, 2
    %v271 = vadd.f32 %v269, %v270
    %v272 = vrot.slane %v271, 1
    %v273 = vadd.f32 %v271, %v272
    %v274 = vrot.slane %v227, 4
    %v275 = vadd.f32 %v227, %v274
    %v276 = vrot.slane %v275, 2
    %v277 = vadd.f32 %v275, %v276
    %v278 = vrot.slane %v277, 1
    %v279 = vadd.f32 %v277, %v278
    %v280 = vrot.slane %v228, 4
    %v281 = vadd.f32 %v228, %v280
    %v282 = vrot.slane %v281, 2
    %v283 = vadd.f32 %v281, %v282
    %v284 = vrot.slane %v283, 1
    %v285 = vadd.f32 %v283, %v284
    %v286 = vrot.slane %v229, 4
    %v287 = vadd.f32 %v229, %v286
    %v288 = vrot.slane %v287, 2
    %v289 = vadd.f32 %v287, %v288
    %v290 = vrot.slane %v289, 1
    %v291 = vadd.f32 %v289, %v290
    %v292 = vrot.slane %v230, 4
    %v293 = vadd.f32 %v230, %v292
    %v294 = vrot.slane %v293, 2
    %v295 = vadd.f32 %v293, %v294
    %v296 = vrot.slane %v295, 1
    %v297 = vadd.f32 %v295, %v296
    %v298 = vrot.slane %v231, 4
    %v299 = vadd.f32 %v231, %v298
    %v300 = vrot.slane %v299, 2
    %v301 = vadd.f32 %v299, %v300
    %v302 = vrot.slane %v301, 1
    %v303 = vadd.f32 %v301, %v302
    %v304 = vrot.slane %v232, 4
    %v305 = vadd.f32 %v232, %v304
    %v306 = vrot.slane %v305, 2
    %v307 = vadd.f32 %v305, %v306
    %v308 = vrot.slane %v307, 1
    %v309 = vadd.f32 %v307, %v308
    %v310 = vrot.slane %v233, 4
    %v311 = vadd.f32 %v233, %v310
    %v312 = vrot.slane %v311, 2
    %v313 = vadd.f32 %v311, %v312
    %v314 = vrot.slane %v313, 1
    %v315 = vadd.f32 %v313, %v314
    %v316 = vrot.slane %v234, 4
    %v317 = vadd.f32 %v234, %v316
    %v318 = vrot.slane %v317, 2
    %v319 = vadd.f32 %v317, %v318
    %v320 = vrot.slane %v319, 1
    %v321 = vadd.f32 %v319, %v320
    %v322 = vrot.slane %v235, 4
    %v323 = vadd.f32 %v235, %v322
    %v324 = vrot.slane %v323, 2
    %v325 = vadd.f32 %v323, %v324
    %v326 = vrot.slane %v325, 1
    %v327 = vadd.f32 %v325, %v326
    %v328 = vrot.slane %v236, 4
    %v329 = vadd.f32 %v236, %v328
    %v330 = vrot.slane %v329, 2
    %v331 = vadd.f32 %v329, %v330
    %v332 = vrot.slane %v331, 1
    %v333 = vadd.f32 %v331, %v332
    %v334 = vrot.slane %v237, 4
    %v335 = vadd.f32 %v237, %v334
    %v336 = vrot.slane %v335, 2
    %v337 = vadd.f32 %v335, %v336
    %v338 = vrot.slane %v337, 1
    %v339 = vadd.f32 %v337, %v338
    %v340 = vrot.slane %v238, 4
    %v341 = vadd.f32 %v238, %v340
    %v342 = vrot.slane %v341, 2
    %v343 = vadd.f32 %v341, %v342
    %v344 = vrot.slane %v343, 1
    %v345 = vadd.f32 %v343, %v344
    %v346 = vrot.slane %v239, 4
    %v347 = vadd.f32 %v239, %v346
    %v348 = vrot.slane %v347, 2
    %v349 = vadd.f32 %v347, %v348
    %v350 = vrot.slane %v349, 1
    %v351 = vadd.f32 %v349, %v350
    %v352 = vrot.slane %v240, 4
    %v353 = vadd.f32 %v240, %v352
    %v354 = vrot.slane %v353, 2
    %v355 = vadd.f32 %v353, %v354
    %v356 = vrot.slane %v355, 1
    %v357 = vadd.f32 %v355, %v356
    %v358 = vrot.slane %v241, 4
    %v359 = vadd.f32 %v241, %v358
    %v360 = vrot.slane %v359, 2
    %v361 = vadd.f32 %v359, %v360
    %v362 = vrot.slane %v361, 1
    %v363 = vadd.f32 %v361, %v362
    %v364 = vrot.slane %v242, 4
    %v365 = vadd.f32 %v242, %v364
    %v366 = vrot.slane %v365, 2
    %v367 = vadd.f32 %v365, %v366
    %v368 = vrot.slane %v367, 1
    %v369 = vadd.f32 %v367, %v368
    %v370 = vrot.slane %v243, 4
    %v371 = vadd.f32 %v243, %v370
    %v372 = vrot.slane %v371, 2
    %v373 = vadd.f32 %v371, %v372
    %v374 = vrot.slane %v373, 1
    %v375 = vadd.f32 %v373, %v374
    %v376 = vrot.slane %v244, 4
    %v377 = vadd.f32 %v244, %v376
    %v378 = vrot.slane %v377, 2
    %v379 = vadd.f32 %v377, %v378
    %v380 = vrot.slane %v379, 1
    %v381 = vadd.f32 %v379, %v380
    %v382 = vrot.slane %v245, 4
    %v383 = vadd.f32 %v245, %v382
    %v384 = vrot.slane %v383, 2
    %v385 = vadd.f32 %v383, %v384
    %v386 = vrot.slane %v385, 1
    %v387 = vadd.f32 %v385, %v386
    %v388 = vrot.slane %v246, 4
    %v389 = vadd.f32 %v246, %v388
    %v390 = vrot.slane %v389, 2
    %v391 = vadd.f32 %v389, %v390
    %v392 = vrot.slane %v391, 1
    %v393 = vadd.f32 %v391, %v392
    %v394 = vrot.slane %v247, 4
    %v395 = vadd.f32 %v247, %v394
    %v396 = vrot.slane %v395, 2
    %v397 = vadd.f32 %v395, %v396
    %v398 = vrot.slane %v397, 1
    %v399 = vadd.f32 %v397, %v398
    %v400 = vrot.slane %v248, 4
    %v401 = vadd.f32 %v248, %v400
    %v402 = vrot.slane %v401, 2
    %v403 = vadd.f32 %v401, %v402
    %v404 = vrot.slane %v403, 1
    %v405 = vadd.f32 %v403, %v404
    %v406 = vrot.slane %v249, 4
    %v407 = vadd.f32 %v249, %v406
    %v408 = vrot.slane %v407, 2
    %v409 = vadd.f32 %v407, %v408
    %v410 = vrot.slane %v409, 1
    %v411 = vadd.f32 %v409, %v410
    %v412 = vrot.slane %v250, 4
    %v413 = vadd.f32 %v250, %v412
    %v414 = vrot.slane %v413, 2
    %v415 = vadd.f32 %v413, %v414
    %v416 = vrot.slane %v415, 1
    %v417 = vadd.f32 %v415, %v416
    %v418 = vrot.slane %v251, 4
    %v419 = vadd.f32 %v251, %v418
    %v420 = vrot.slane %v419, 2
    %v421 = vadd.f32 %v419, %v420
    %v422 = vrot.slane %v421, 1
    %v423 = vadd.f32 %v421, %v422
    %v424 = vrot.slane %v252, 4
    %v425 = vadd.f32 %v252, %v424
    %v426 = vrot.slane %v425, 2
    %v427 = vadd.f32 %v425, %v426
    %v428 = vrot.slane %v427, 1
    %v429 = vadd.f32 %v427, %v428
    %v430 = vrot.slane %v253, 4
    %v431 = vadd.f32 %v253, %v430
    %v432 = vrot.slane %v431, 2
    %v433 = vadd.f32 %v431, %v432
    %v434 = vrot.slane %v433, 1
    %v435 = vadd.f32 %v433, %v434
    %v436 = vrot.slane %v254, 4
    %v437 = vadd.f32 %v254, %v436
    %v438 = vrot.slane %v437, 2
    %v439 = vadd.f32 %v437, %v438
    %v440 = vrot.slane %v439, 1
    %v441 = vadd.f32 %v439, %v440
    %v442 = vrot.slane %v255, 4
    %v443 = vadd.f32 %v255, %v442
    %v444 = vrot.slane %v443, 2
    %v445 = vadd.f32 %v443, %v444
    %v446 = vrot.slane %v445, 1
    %v447 = vadd.f32 %v445, %v446
    %v448 = vld [vmem:[%s0 + $0x80] sm:$0xff]
    %v449 = vld [vmem:[%s0 + $0x88] sm:$0xff]
    %v450 = vld [vmem:[%s0 + $0x90] sm:$0xff]
    %v451 = vld [vmem:[%s0 + $0x98] sm:$0xff]
    %v452 = vld [vmem:[%s0 + $0x260] sm:$0xff]
    %v453 = vld [vmem:[%s0 + $0x268] sm:$0xff]
    %v454 = vld [vmem:[%s0 + $0x270] sm:$0xff]
    %v455 = vld [vmem:[%s0 + $0x278] sm:$0xff]
    %v456 = vld [vmem:[%s0 + $0x440] sm:$0xff]
    %v457 = vld [vmem:[%s0 + $0x448] sm:$0xff]
    %v458 = vld [vmem:[%s0 + $0x450] sm:$0xff]
    %v459 = vld [vmem:[%s0 + $0x458] sm:$0xff]
    %v460 = vld [vmem:[%s0 + $0x620] sm:$0xff]
    %v461 = vld [vmem:[%s0 + $0x628] sm:$0xff]
    %v462 = vld [vmem:[%s0 + $0x630] sm:$0xff]
    %v463 = vld [vmem:[%s0 + $0x638] sm:$0xff]
    %v464 = vld [vmem:[%s0 + $0x800] sm:$0xff]
    %v465 = vld [vmem:[%s0 + $0x808] sm:$0xff]
    %v466 = vld [vmem:[%s0 + $0x810] sm:$0xff]
    %v467 = vld [vmem:[%s0 + $0x818] sm:$0xff]
    %v468 = vld [vmem:[%s0 + $0x9e0] sm:$0xff]
    %v469 = vld [vmem:[%s0 + $0x9e8] sm:$0xff]
    %v470 = vld [vmem:[%s0 + $0x9f0] sm:$0xff]
    %v471 = vld [vmem:[%s0 + $0x9f8] sm:$0xff]
    %v472 = vld [vmem:[%s0 + $0xbc0] sm:$0xff]
    %v473 = vld [vmem:[%s0 + $0xbc8] sm:$0xff]
    %v474 = vld [vmem:[%s0 + $0xbd0] sm:$0xff]
    %v475 = vld [vmem:[%s0 + $0xbd8] sm:$0xff]
    %v476 = vld [vmem:[%s0 + $0xda0] sm:$0xff]
    %v477 = vld [vmem:[%s0 + $0xda8] sm:$0xff]
    %v478 = vld [vmem:[%s0 + $0xdb0] sm:$0xff]
    %v479 = vld [vmem:[%s0 + $0xdb8] sm:$0xff]
    %v480 = vrot.slane %v448, 4
    %v481 = vadd.f32 %v448, %v480
    %v482 = vrot.slane %v481, 2
    %v483 = vadd.f32 %v481, %v482
    %v484 = vrot.slane %v483, 1
    %v485 = vadd.f32 %v483, %v484
    %v486 = vrot.slane %v449, 4
    %v487 = vadd.f32 %v449, %v486
    %v488 = vrot.slane %v487, 2
    %v489 = vadd.f32 %v487, %v488
    %v490 = vrot.slane %v489, 1
    %v491 = vadd.f32 %v489, %v490
    %v492 = vrot.slane %v450, 4
    %v493 = vadd.f32 %v450, %v492
    %v494 = vrot.slane %v493, 2
    %v495 = vadd.f32 %v493, %v494
    %v496 = vrot.slane %v495, 1
    %v497 = vadd.f32 %v495, %v496
    %v498 = vrot.slane %v451, 4
    %v499 = vadd.f32 %v451, %v498
    %v500 = vrot.slane %v499, 2
    %v501 = vadd.f32 %v499, %v500
    %v502 = vrot.slane %v501, 1
    %v503 = vadd.f32 %v501, %v502
    %v504 = vrot.slane %v452, 4
    %v505 = vadd.f32 %v452, %v504
    %v506 = vrot.slane %v505, 2
    %v507 = vadd.f32 %v505, %v506
    %v508 = vrot.slane %v507, 1
    %v509 = vadd.f32 %v507, %v508
    %v510 = vrot.slane %v453, 4
    %v511 = vadd.f32 %v453, %v510
    %v512 = vrot.slane %v511, 2
    %v513 = vadd.f32 %v511, %v512
    %v514 = vrot.slane %v513, 1
    %v515 = vadd.f32 %v513, %v514
    %v516 = vrot.slane %v454, 4
    %v517 = vadd.f32 %v454, %v516
    %v518 = vrot.slane %v517, 2
    %v519 = vadd.f32 %v517, %v518
    %v520 = vrot.slane %v519, 1
    %v521 = vadd.f32 %v519, %v520
    %v522 = vrot.slane %v455, 4
    %v523 = vadd.f32 %v455, %v522
    %v524 = vrot.slane %v523, 2
    %v525 = vadd.f32 %v523, %v524
    %v526 = vrot.slane %v525, 1
    %v527 = vadd.f32 %v525, %v526
    %v528 = vrot.slane %v456, 4
    %v529 = vadd.f32 %v456, %v528
    %v530 = vrot.slane %v529, 2
    %v531 = vadd.f32 %v529, %v530
    %v532 = vrot.slane %v531, 1
    %v533 = vadd.f32 %v531, %v532
    %v534 = vrot.slane %v457, 4
    %v535 = vadd.f32 %v457, %v534
    %v536 = vrot.slane %v535, 2
    %v537 = vadd.f32 %v535, %v536
    %v538 = vrot.slane %v537, 1
    %v539 = vadd.f32 %v537, %v538
    %v540 = vrot.slane %v458, 4
    %v541 = vadd.f32 %v458, %v540
    %v542 = vrot.slane %v541, 2
    %v543 = vadd.f32 %v541, %v542
    %v544 = vrot.slane %v543, 1
    %v545 = vadd.f32 %v543, %v544
    %v546 = vrot.slane %v459, 4
    %v547 = vadd.f32 %v459, %v546
    %v548 = vrot.slane %v547, 2
    %v549 = vadd.f32 %v547, %v548
    %v550 = vrot.slane %v549, 1
    %v551 = vadd.f32 %v549, %v550
    %v552 = vrot.slane %v460, 4
    %v553 = vadd.f32 %v460, %v552
    %v554 = vrot.slane %v553, 2
    %v555 = vadd.f32 %v553, %v554
    %v556 = vrot.slane %v555, 1
    %v557 = vadd.f32 %v555, %v556
    %v558 = vrot.slane %v461, 4
    %v559 = vadd.f32 %v461, %v558
    %v560 = vrot.slane %v559, 2
    %v561 = vadd.f32 %v559, %v560
    %v562 = vrot.slane %v561, 1
    %v563 = vadd.f32 %v561, %v562
    %v564 = vrot.slane %v462, 4
    %v565 = vadd.f32 %v462, %v564
    %v566 = vrot.slane %v565, 2
    %v567 = vadd.f32 %v565, %v566
    %v568 = vrot.slane %v567, 1
    %v569 = vadd.f32 %v567, %v568
    %v570 = vrot.slane %v463, 4
    %v571 = vadd.f32 %v463, %v570
    %v572 = vrot.slane %v571, 2
    %v573 = vadd.f32 %v571, %v572
    %v574 = vrot.slane %v573, 1
    %v575 = vadd.f32 %v573, %v574
    %v576 = vrot.slane %v464, 4
    %v577 = vadd.f32 %v464, %v576
    %v578 = vrot.slane %v577, 2
    %v579 = vadd.f32 %v577, %v578
    %v580 = vrot.slane %v579, 1
    %v581 = vadd.f32 %v579, %v580
    %v582 = vrot.slane %v465, 4
    %v583 = vadd.f32 %v465, %v582
    %v584 = vrot.slane %v583, 2
    %v585 = vadd.f32 %v583, %v584
    %v586 = vrot.slane %v585, 1
    %v587 = vadd.f32 %v585, %v586
    %v588 = vrot.slane %v466, 4
    %v589 = vadd.f32 %v466, %v588
    %v590 = vrot.slane %v589, 2
    %v591 = vadd.f32 %v589, %v590
    %v592 = vrot.slane %v591, 1
    %v593 = vadd.f32 %v591, %v592
    %v594 = vrot.slane %v467, 4
    %v595 = vadd.f32 %v467, %v594
    %v596 = vrot.slane %v595, 2
    %v597 = vadd.f32 %v595, %v596
    %v598 = vrot.slane %v597, 1
    %v599 = vadd.f32 %v597, %v598
    %v600 = vrot.slane %v468, 4
    %v601 = vadd.f32 %v468, %v600
    %v602 = vrot.slane %v601, 2
    %v603 = vadd.f32 %v601, %v602
    %v604 = vrot.slane %v603, 1
    %v605 = vadd.f32 %v603, %v604
    %v606 = vrot.slane %v469, 4
    %v607 = vadd.f32 %v469, %v606
    %v608 = vrot.slane %v607, 2
    %v609 = vadd.f32 %v607, %v608
    %v610 = vrot.slane %v609, 1
    %v611 = vadd.f32 %v609, %v610
    %v612 = vrot.slane %v470, 4
    %v613 = vadd.f32 %v470, %v612
    %v614 = vrot.slane %v613, 2
    %v615 = vadd.f32 %v613, %v614
    %v616 = vrot.slane %v615, 1
    %v617 = vadd.f32 %v615, %v616
    %v618 = vrot.slane %v471, 4
    %v619 = vadd.f32 %v471, %v618
    %v620 = vrot.slane %v619, 2
    %v621 = vadd.f32 %v619, %v620
    %v622 = vrot.slane %v621, 1
    %v623 = vadd.f32 %v621, %v622
    %v624 = vrot.slane %v472, 4
    %v625 = vadd.f32 %v472, %v624
    %v626 = vrot.slane %v625, 2
    %v627 = vadd.f32 %v625, %v626
    %v628 = vrot.slane %v627, 1
    %v629 = vadd.f32 %v627, %v628
    %v630 = vrot.slane %v473, 4
    %v631 = vadd.f32 %v473, %v630
    %v632 = vrot.slane %v631, 2
    %v633 = vadd.f32 %v631, %v632
    %v634 = vrot.slane %v633, 1
    %v635 = vadd.f32 %v633, %v634
    %v636 = vrot.slane %v474, 4
    %v637 = vadd.f32 %v474, %v636
    %v638 = vrot.slane %v637, 2
    %v639 = vadd.f32 %v637, %v638
    %v640 = vrot.slane %v639, 1
    %v641 = vadd.f32 %v639, %v640
    %v642 = vrot.slane %v475, 4
    %v643 = vadd.f32 %v475, %v642
    %v644 = vrot.slane %v643, 2
    %v645 = vadd.f32 %v643, %v644
    %v646 = vrot.slane %v645, 1
    %v647 = vadd.f32 %v645, %v646
    %v648 = vrot.slane %v476, 4
    %v649 = vadd.f32 %v476, %v648
    %v650 = vrot.slane %v649, 2
    %v651 = vadd.f32 %v649, %v650
    %v652 = vrot.slane %v651, 1
    %v653 = vadd.f32 %v651, %v652
    %v654 = vrot.slane %v477, 4
    %v655 = vadd.f32 %v477, %v654
    %v656 = vrot.slane %v655, 2
    %v657 = vadd.f32 %v655, %v656
    %v658 = vrot.slane %v657, 1
    %v659 = vadd.f32 %v657, %v658
    %v660 = vrot.slane %v478, 4
    %v661 = vadd.f32 %v478, %v660
    %v662 = vrot.slane %v661, 2
    %v663 = vadd.f32 %v661, %v662
    %v664 = vrot.slane %v663, 1
    %v665 = vadd.f32 %v663, %v664
    %v666 = vrot.slane %v479, 4
    %v667 = vadd.f32 %v479, %v666
    %v668 = vrot.slane %v667, 2
    %v669 = vadd.f32 %v667, %v668
    %v670 = vrot.slane %v669, 1
    %v671 = vadd.f32 %v669, %v670
    %s672 = scalar_lea.vmem %s0, 160
    %v673 = vld [vmem:[%s672] sm:$0xff]
    %v674 = vld [vmem:[%s672 + $0x8] sm:$0xff]
    %v675 = vld [vmem:[%s672 + $0x10] sm:$0xff]
    %v676 = vld [vmem:[%s672 + $0x18] sm:$0xff]
    %v677 = vld [vmem:[%s672 + $0x1e0] sm:$0xff]
    %v678 = vld [vmem:[%s672 + $0x1e8] sm:$0xff]
    %v679 = vld [vmem:[%s672 + $0x1f0] sm:$0xff]
    %v680 = vld [vmem:[%s672 + $0x1f8] sm:$0xff]
    %v681 = vld [vmem:[%s672 + $0x3c0] sm:$0xff]
    %v682 = vld [vmem:[%s672 + $0x3c8] sm:$0xff]
    %v683 = vld [vmem:[%s672 + $0x3d0] sm:$0xff]
    %v684 = vld [vmem:[%s672 + $0x3d8] sm:$0xff]
    %v685 = vld [vmem:[%s672 + $0x5a0] sm:$0xff]
    %v686 = vld [vmem:[%s672 + $0x5a8] sm:$0xff]
    %v687 = vld [vmem:[%s672 + $0x5b0] sm:$0xff]
    %v688 = vld [vmem:[%s672 + $0x5b8] sm:$0xff]
    %v689 = vld [vmem:[%s672 + $0x780] sm:$0xff]
    %v690 = vld [vmem:[%s672 + $0x788] sm:$0xff]
    %v691 = vld [vmem:[%s672 + $0x790] sm:$0xff]
    %v692 = vld [vmem:[%s672 + $0x798] sm:$0xff]
    %v693 = vld [vmem:[%s672 + $0x960] sm:$0xff]
    %v694 = vld [vmem:[%s672 + $0x968] sm:$0xff]
    %v695 = vld [vmem:[%s672 + $0x970] sm:$0xff]
    %v696 = vld [vmem:[%s672 + $0x978] sm:$0xff]
    %v697 = vld [vmem:[%s672 + $0xb40] sm:$0xff]
    %v698 = vld [vmem:[%s672 + $0xb48] sm:$0xff]
    %v699 = vld [vmem:[%s672 + $0xb50] sm:$0xff]
    %v700 = vld [vmem:[%s672 + $0xb58] sm:$0xff]
    %v701 = vld [vmem:[%s672 + $0xd20] sm:$0xff]
    %v702 = vld [vmem:[%s672 + $0xd28] sm:$0xff]
    %v703 = vld [vmem:[%s672 + $0xd30] sm:$0xff]
    %v704 = vld [vmem:[%s672 + $0xd38] sm:$0xff]
    %v705 = vld [vmem:[%s672 + $0x20] sm:$0xff]
    %v706 = vld [vmem:[%s672 + $0x28] sm:$0xff]
    %v707 = vld [vmem:[%s672 + $0x30] sm:$0xff]
    %v708 = vld [vmem:[%s672 + $0x38] sm:$0xff]
    %v709 = vld [vmem:[%s672 + $0x200] sm:$0xff]
    %v710 = vld [vmem:[%s672 + $0x208] sm:$0xff]
    %v711 = vld [vmem:[%s672 + $0x210] sm:$0xff]
    %v712 = vld [vmem:[%s672 + $0x218] sm:$0xff]
    %v713 = vld [vmem:[%s672 + $0x3e0] sm:$0xff]
    %v714 = vld [vmem:[%s672 + $0x3e8] sm:$0xff]
    %v715 = vld [vmem:[%s672 + $0x3f0] sm:$0xff]
    %v716 = vld [vmem:[%s672 + $0x3f8] sm:$0xff]
    %v717 = vld [vmem:[%s672 + $0x5c0] sm:$0xff]
    %v718 = vld [vmem:[%s672 + $0x5c8] sm:$0xff]
    %v719 = vld [vmem:[%s672 + $0x5d0] sm:$0xff]
    %v720 = vld [vmem:[%s672 + $0x5d8] sm:$0xff]
    %v721 = vld [vmem:[%s672 + $0x7a0] sm:$0xff]
    %v722 = vld [vmem:[%s672 + $0x7a8] sm:$0xff]
    %v723 = vld [vmem:[%s672 + $0x7b0] sm:$0xff]
    %v724 = vld [vmem:[%s672 + $0x7b8] sm:$0xff]
    %v725 = vld [vmem:[%s672 + $0x980] sm:$0xff]
    %v726 = vld [vmem:[%s672 + $0x988] sm:$0xff]
    %v727 = vld [vmem:[%s672 + $0x990] sm:$0xff]
    %v728 = vld [vmem:[%s672 + $0x998] sm:$0xff]
    %v729 = vld [vmem:[%s672 + $0xb60] sm:$0xff]
    %v730 = vld [vmem:[%s672 + $0xb68] sm:$0xff]
    %v731 = vld [vmem:[%s672 + $0xb70] sm:$0xff]
    %v732 = vld [vmem:[%s672 + $0xb78] sm:$0xff]
    %v733 = vld [vmem:[%s672 + $0xd40] sm:$0xff]
    %v734 = vld [vmem:[%s672 + $0xd48] sm:$0xff]
    %v735 = vld [vmem:[%s672 + $0xd50] sm:$0xff]
    %v736 = vld [vmem:[%s672 + $0xd58] sm:$0xff]
    %v737 = vadd.f32 %v673, %v705
    %v738 = vadd.f32 %v674, %v706
    %v739 = vadd.f32 %v675, %v707
    %v740 = vadd.f32 %v676, %v708
    %v741 = vadd.f32 %v677, %v709
    %v742 = vadd.f32 %v678, %v710
    %v743 = vadd.f32 %v679, %v711
    %v744 = vadd.f32 %v680, %v712
    %v745 = vadd.f32 %v681, %v713
    %v746 = vadd.f32 %v682, %v714
    %v747 = vadd.f32 %v683, %v715
    %v748 = vadd.f32 %v684, %v716
    %v749 = vadd.f32 %v685, %v717
    %v750 = vadd.f32 %v686, %v718
    %v751 = vadd.f32 %v687, %v719
    %v752 = vadd.f32 %v688, %v720
    %v753 = vadd.f32 %v689, %v721
    %v754 = vadd.f32 %v690, %v722
    %v755 = vadd.f32 %v691, %v723
    %v756 = vadd.f32 %v692, %v724
    %v757 = vadd.f32 %v693, %v725
    %v758 = vadd.f32 %v694, %v726
    %v759 = vadd.f32 %v695, %v727
    %v760 = vadd.f32 %v696, %v728
    %v761 = vadd.f32 %v697, %v729
    %v762 = vadd.f32 %v698, %v730
    %v763 = vadd.f32 %v699, %v731
    %v764 = vadd.f32 %v700, %v732
    %v765 = vadd.f32 %v701, %v733
    %v766 = vadd.f32 %v702, %v734
    %v767 = vadd.f32 %v703, %v735
    %v768 = vadd.f32 %v704, %v736
    %v769 = vld [vmem:[%s672 + $0x40] sm:$0xff]
    %v770 = vld [vmem:[%s672 + $0x48] sm:$0xff]
    %v771 = vld [vmem:[%s672 + $0x50] sm:$0xff]
    %v772 = vld [vmem:[%s672 + $0x58] sm:$0xff]
    %v773 = vld [vmem:[%s672 + $0x220] sm:$0xff]
    %v774 = vld [vmem:[%s672 + $0x228] sm:$0xff]
    %v775 = vld [vmem:[%s672 + $0x230] sm:$0xff]
    %v776 = vld [vmem:[%s672 + $0x238] sm:$0xff]
    %v777 = vld [vmem:[%s672 + $0x400] sm:$0xff]
    %v778 = vld [vmem:[%s672 + $0x408] sm:$0xff]
    %v779 = vld [vmem:[%s672 + $0x410] sm:$0xff]
    %v780 = vld [vmem:[%s672 + $0x418] sm:$0xff]
    %v781 = vld [vmem:[%s672 + $0x5e0] sm:$0xff]
    %v782 = vld [vmem:[%s672 + $0x5e8] sm:$0xff]
    %v783 = vld [vmem:[%s672 + $0x5f0] sm:$0xff]
    %v784 = vld [vmem:[%s672 + $0x5f8] sm:$0xff]
    %v785 = vld [vmem:[%s672 + $0x7c0] sm:$0xff]
    %v786 = vld [vmem:[%s672 + $0x7c8] sm:$0xff]
    %v787 = vld [vmem:[%s672 + $0x7d0] sm:$0xff]
    %v788 = vld [vmem:[%s672 + $0x7d8] sm:$0xff]
    %v789 = vld [vmem:[%s672 + $0x9a0] sm:$0xff]
    %v790 = vld [vmem:[%s672 + $0x9a8] sm:$0xff]
    %v791 = vld [vmem:[%s672 + $0x9b0] sm:$0xff]
    %v792 = vld [vmem:[%s672 + $0x9b8] sm:$0xff]
    %v793 = vld [vmem:[%s672 + $0xb80] sm:$0xff]
    %v794 = vld [vmem:[%s672 + $0xb88] sm:$0xff]
    %v795 = vld [vmem:[%s672 + $0xb90] sm:$0xff]
    %v796 = vld [vmem:[%s672 + $0xb98] sm:$0xff]
    %v797 = vld [vmem:[%s672 + $0xd60] sm:$0xff]
    %v798 = vld [vmem:[%s672 + $0xd68] sm:$0xff]
    %v799 = vld [vmem:[%s672 + $0xd70] sm:$0xff]
    %v800 = vld [vmem:[%s672 + $0xd78] sm:$0xff]
    %v801 = vadd.f32 %v737, %v769
    %v802 = vadd.f32 %v738, %v770
    %v803 = vadd.f32 %v739, %v771
    %v804 = vadd.f32 %v740, %v772
    %v805 = vadd.f32 %v741, %v773
    %v806 = vadd.f32 %v742, %v774
    %v807 = vadd.f32 %v743, %v775
    %v808 = vadd.f32 %v744, %v776
    %v809 = vadd.f32 %v745, %v777
    %v810 = vadd.f32 %v746, %v778
    %v811 = vadd.f32 %v747, %v779
    %v812 = vadd.f32 %v748, %v780
    %v813 = vadd.f32 %v749, %v781
    %v814 = vadd.f32 %v750, %v782
    %v815 = vadd.f32 %v751, %v783
    %v816 = vadd.f32 %v752, %v784
    %v817 = vadd.f32 %v753, %v785
    %v818 = vadd.f32 %v754, %v786
    %v819 = vadd.f32 %v755, %v787
    %v820 = vadd.f32 %v756, %v788
    %v821 = vadd.f32 %v757, %v789
    %v822 = vadd.f32 %v758, %v790
    %v823 = vadd.f32 %v759, %v791
    %v824 = vadd.f32 %v760, %v792
    %v825 = vadd.f32 %v761, %v793
    %v826 = vadd.f32 %v762, %v794
    %v827 = vadd.f32 %v763, %v795
    %v828 = vadd.f32 %v764, %v796
    %v829 = vadd.f32 %v765, %v797
    %v830 = vadd.f32 %v766, %v798
    %v831 = vadd.f32 %v767, %v799
    %v832 = vadd.f32 %v768, %v800
    %v833 = vld [vmem:[%s672 + $0x60] sm:$0xff]
    %v834 = vld [vmem:[%s672 + $0x68] sm:$0xff]
    %v835 = vld [vmem:[%s672 + $0x70] sm:$0xff]
    %v836 = vld [vmem:[%s672 + $0x78] sm:$0xff]
    %v837 = vld [vmem:[%s672 + $0x240] sm:$0xff]
    %v838 = vld [vmem:[%s672 + $0x248] sm:$0xff]
    %v839 = vld [vmem:[%s672 + $0x250] sm:$0xff]
    %v840 = vld [vmem:[%s672 + $0x258] sm:$0xff]
    %v841 = vld [vmem:[%s672 + $0x420] sm:$0xff]
    %v842 = vld [vmem:[%s672 + $0x428] sm:$0xff]
    %v843 = vld [vmem:[%s672 + $0x430] sm:$0xff]
    %v844 = vld [vmem:[%s672 + $0x438] sm:$0xff]
    %v845 = vld [vmem:[%s672 + $0x600] sm:$0xff]
    %v846 = vld [vmem:[%s672 + $0x608] sm:$0xff]
    %v847 = vld [vmem:[%s672 + $0x610] sm:$0xff]
    %v848 = vld [vmem:[%s672 + $0x618] sm:$0xff]
    %v849 = vld [vmem:[%s672 + $0x7e0] sm:$0xff]
    %v850 = vld [vmem:[%s672 + $0x7e8] sm:$0xff]
    %v851 = vld [vmem:[%s672 + $0x7f0] sm:$0xff]
    %v852 = vld [vmem:[%s672 + $0x7f8] sm:$0xff]
    %v853 = vld [vmem:[%s672 + $0x9c0] sm:$0xff]
    %v854 = vld [vmem:[%s672 + $0x9c8] sm:$0xff]
    %v855 = vld [vmem:[%s672 + $0x9d0] sm:$0xff]
    %v856 = vld [vmem:[%s672 + $0x9d8] sm:$0xff]
    %v857 = vld [vmem:[%s672 + $0xba0] sm:$0xff]
    %v858 = vld [vmem:[%s672 + $0xba8] sm:$0xff]
    %v859 = vld [vmem:[%s672 + $0xbb0] sm:$0xff]
    %v860 = vld [vmem:[%s672 + $0xbb8] sm:$0xff]
    %v861 = vld [vmem:[%s672 + $0xd80] sm:$0xff]
    %v862 = vld [vmem:[%s672 + $0xd88] sm:$0xff]
    %v863 = vld [vmem:[%s672 + $0xd90] sm:$0xff]
    %v864 = vld [vmem:[%s672 + $0xd98] sm:$0xff]
    %v865 = vadd.f32 %v801, %v833
    %v866 = vadd.f32 %v802, %v834
    %v867 = vadd.f32 %v803, %v835
    %v868 = vadd.f32 %v804, %v836
    %v869 = vadd.f32 %v805, %v837
    %v870 = vadd.f32 %v806, %v838
    %v871 = vadd.f32 %v807, %v839
    %v872 = vadd.f32 %v808, %v840
    %v873 = vadd.f32 %v809, %v841
    %v874 = vadd.f32 %v810, %v842
    %v875 = vadd.f32 %v811, %v843
    %v876 = vadd.f32 %v812, %v844
    %v877 = vadd.f32 %v813, %v845
    %v878 = vadd.f32 %v814, %v846
    %v879 = vadd.f32 %v815, %v847
    %v880 = vadd.f32 %v816, %v848
    %v881 = vadd.f32 %v817, %v849
    %v882 = vadd.f32 %v818, %v850
    %v883 = vadd.f32 %v819, %v851
    %v884 = vadd.f32 %v820, %v852
    %v885 = vadd.f32 %v821, %v853
    %v886 = vadd.f32 %v822, %v854
    %v887 = vadd.f32 %v823, %v855
    %v888 = vadd.f32 %v824, %v856
    %v889 = vadd.f32 %v825, %v857
    %v890 = vadd.f32 %v826, %v858
    %v891 = vadd.f32 %v827, %v859
    %v892 = vadd.f32 %v828, %v860
    %v893 = vadd.f32 %v829, %v861
    %v894 = vadd.f32 %v830, %v862
    %v895 = vadd.f32 %v831, %v863
    %v896 = vadd.f32 %v832, %v864
    %v897 = vrot.slane %v865, 4
    %v898 = vadd.f32 %v865, %v897
    %v899 = vrot.slane %v898, 2
    %v900 = vadd.f32 %v898, %v899
    %v901 = vrot.slane %v900, 1
    %v902 = vadd.f32 %v900, %v901
    %v903 = vrot.slane %v866, 4
    %v904 = vadd.f32 %v866, %v903
    %v905 = vrot.slane %v904, 2
    %v906 = vadd.f32 %v904, %v905
    %v907 = vrot.slane %v906, 1
    %v908 = vadd.f32 %v906, %v907
    %v909 = vrot.slane %v867, 4
    %v910 = vadd.f32 %v867, %v909
    %v911 = vrot.slane %v910, 2
    %v912 = vadd.f32 %v910, %v911
    %v913 = vrot.slane %v912, 1
    %v914 = vadd.f32 %v912, %v913
    %v915 = vrot.slane %v868, 4
    %v916 = vadd.f32 %v868, %v915
    %v917 = vrot.slane %v916, 2
    %v918 = vadd.f32 %v916, %v917
    %v919 = vrot.slane %v918, 1
    %v920 = vadd.f32 %v918, %v919
    %v921 = vrot.slane %v869, 4
    %v922 = vadd.f32 %v869, %v921
    %v923 = vrot.slane %v922, 2
    %v924 = vadd.f32 %v922, %v923
    %v925 = vrot.slane %v924, 1
    %v926 = vadd.f32 %v924, %v925
    %v927 = vrot.slane %v870, 4
    %v928 = vadd.f32 %v870, %v927
    %v929 = vrot.slane %v928, 2
    %v930 = vadd.f32 %v928, %v929
    %v931 = vrot.slane %v930, 1
    %v932 = vadd.f32 %v930, %v931
    %v933 = vrot.slane %v871, 4
    %v934 = vadd.f32 %v871, %v933
    %v935 = vrot.slane %v934, 2
    %v936 = vadd.f32 %v934, %v935
    %v937 = vrot.slane %v936, 1
    %v938 = vadd.f32 %v936, %v937
    %v939 = vrot.slane %v872, 4
    %v940 = vadd.f32 %v872, %v939
    %v941 = vrot.slane %v940, 2
    %v942 = vadd.f32 %v940, %v941
    %v943 = vrot.slane %v942, 1
    %v944 = vadd.f32 %v942, %v943
    %v945 = vrot.slane %v873, 4
    %v946 = vadd.f32 %v873, %v945
    %v947 = vrot.slane %v946, 2
    %v948 = vadd.f32 %v946, %v947
    %v949 = vrot.slane %v948, 1
    %v950 = vadd.f32 %v948, %v949
    %v951 = vrot.slane %v874, 4
    %v952 = vadd.f32 %v874, %v951
    %v953 = vrot.slane %v952, 2
    %v954 = vadd.f32 %v952, %v953
    %v955 = vrot.slane %v954, 1
    %v956 = vadd.f32 %v954, %v955
    %v957 = vrot.slane %v875, 4
    %v958 = vadd.f32 %v875, %v957
    %v959 = vrot.slane %v958, 2
    %v960 = vadd.f32 %v958, %v959
    %v961 = vrot.slane %v960, 1
    %v962 = vadd.f32 %v960, %v961
    %v963 = vrot.slane %v876, 4
    %v964 = vadd.f32 %v876, %v963
    %v965 = vrot.slane %v964, 2
    %v966 = vadd.f32 %v964, %v965
    %v967 = vrot.slane %v966, 1
    %v968 = vadd.f32 %v966, %v967
    %v969 = vrot.slane %v877, 4
    %v970 = vadd.f32 %v877, %v969
    %v971 = vrot.slane %v970, 2
    %v972 = vadd.f32 %v970, %v971
    %v973 = vrot.slane %v972, 1
    %v974 = vadd.f32 %v972, %v973
    %v975 = vrot.slane %v878, 4
    %v976 = vadd.f32 %v878, %v975
    %v977 = vrot.slane %v976, 2
    %v978 = vadd.f32 %v976, %v977
    %v979 = vrot.slane %v978, 1
    %v980 = vadd.f32 %v978, %v979
    %v981 = vrot.slane %v879, 4
    %v982 = vadd.f32 %v879, %v981
    %v983 = vrot.slane %v982, 2
    %v984 = vadd.f32 %v982, %v983
    %v985 = vrot.slane %v984, 1
    %v986 = vadd.f32 %v984, %v985
    %v987 = vrot.slane %v880, 4
    %v988 = vadd.f32 %v880, %v987
    %v989 = vrot.slane %v988, 2
    %v990 = vadd.f32 %v988, %v989
    %v991 = vrot.slane %v990, 1
    %v992 = vadd.f32 %v990, %v991
    %v993 = vrot.slane %v881, 4
    %v994 = vadd.f32 %v881, %v993
    %v995 = vrot.slane %v994, 2
    %v996 = vadd.f32 %v994, %v995
    %v997 = vrot.slane %v996, 1
    %v998 = vadd.f32 %v996, %v997
    %v999 = vrot.slane %v882, 4
    %v1000 = vadd.f32 %v882, %v999
    %v1001 = vrot.slane %v1000, 2
    %v1002 = vadd.f32 %v1000, %v1001
    %v1003 = vrot.slane %v1002, 1
    %v1004 = vadd.f32 %v1002, %v1003
    %v1005 = vrot.slane %v883, 4
    %v1006 = vadd.f32 %v883, %v1005
    %v1007 = vrot.slane %v1006, 2
    %v1008 = vadd.f32 %v1006, %v1007
    %v1009 = vrot.slane %v1008, 1
    %v1010 = vadd.f32 %v1008, %v1009
    %v1011 = vrot.slane %v884, 4
    %v1012 = vadd.f32 %v884, %v1011
    %v1013 = vrot.slane %v1012, 2
    %v1014 = vadd.f32 %v1012, %v1013
    %v1015 = vrot.slane %v1014, 1
    %v1016 = vadd.f32 %v1014, %v1015
    %v1017 = vrot.slane %v885, 4
    %v1018 = vadd.f32 %v885, %v1017
    %v1019 = vrot.slane %v1018, 2
    %v1020 = vadd.f32 %v1018, %v1019
    %v1021 = vrot.slane %v1020, 1
    %v1022 = vadd.f32 %v1020, %v1021
    %v1023 = vrot.slane %v886, 4
    %v1024 = vadd.f32 %v886, %v1023
    %v1025 = vrot.slane %v1024, 2
    %v1026 = vadd.f32 %v1024, %v1025
    %v1027 = vrot.slane %v1026, 1
    %v1028 = vadd.f32 %v1026, %v1027
    %v1029 = vrot.slane %v887, 4
    %v1030 = vadd.f32 %v887, %v1029
    %v1031 = vrot.slane %v1030, 2
    %v1032 = vadd.f32 %v1030, %v1031
    %v1033 = vrot.slane %v1032, 1
    %v1034 = vadd.f32 %v1032, %v1033
    %v1035 = vrot.slane %v888, 4
    %v1036 = vadd.f32 %v888, %v1035
    %v1037 = vrot.slane %v1036, 2
    %v1038 = vadd.f32 %v1036, %v1037
    %v1039 = vrot.slane %v1038, 1
    %v1040 = vadd.f32 %v1038, %v1039
    %v1041 = vrot.slane %v889, 4
    %v1042 = vadd.f32 %v889, %v1041
    %v1043 = vrot.slane %v1042, 2
    %v1044 = vadd.f32 %v1042, %v1043
    %v1045 = vrot.slane %v1044, 1
    %v1046 = vadd.f32 %v1044, %v1045
    %v1047 = vrot.slane %v890, 4
    %v1048 = vadd.f32 %v890, %v1047
    %v1049 = vrot.slane %v1048, 2
    %v1050 = vadd.f32 %v1048, %v1049
    %v1051 = vrot.slane %v1050, 1
    %v1052 = vadd.f32 %v1050, %v1051
    %v1053 = vrot.slane %v891, 4
    %v1054 = vadd.f32 %v891, %v1053
    %v1055 = vrot.slane %v1054, 2
    %v1056 = vadd.f32 %v1054, %v1055
    %v1057 = vrot.slane %v1056, 1
    %v1058 = vadd.f32 %v1056, %v1057
    %v1059 = vrot.slane %v892, 4
    %v1060 = vadd.f32 %v892, %v1059
    %v1061 = vrot.slane %v1060, 2
    %v1062 = vadd.f32 %v1060, %v1061
    %v1063 = vrot.slane %v1062, 1
    %v1064 = vadd.f32 %v1062, %v1063
    %v1065 = vrot.slane %v893, 4
    %v1066 = vadd.f32 %v893, %v1065
    %v1067 = vrot.slane %v1066, 2
    %v1068 = vadd.f32 %v1066, %v1067
    %v1069 = vrot.slane %v1068, 1
    %v1070 = vadd.f32 %v1068, %v1069
    %v1071 = vrot.slane %v894, 4
    %v1072 = vadd.f32 %v894, %v1071
    %v1073 = vrot.slane %v1072, 2
    %v1074 = vadd.f32 %v1072, %v1073
    %v1075 = vrot.slane %v1074, 1
    %v1076 = vadd.f32 %v1074, %v1075
    %v1077 = vrot.slane %v895, 4
    %v1078 = vadd.f32 %v895, %v1077
    %v1079 = vrot.slane %v1078, 2
    %v1080 = vadd.f32 %v1078, %v1079
    %v1081 = vrot.slane %v1080, 1
    %v1082 = vadd.f32 %v1080, %v1081
    %v1083 = vrot.slane %v896, 4
    %v1084 = vadd.f32 %v896, %v1083
    %v1085 = vrot.slane %v1084, 2
    %v1086 = vadd.f32 %v1084, %v1085
    %v1087 = vrot.slane %v1086, 1
    %v1088 = vadd.f32 %v1086, %v1087
    %v1089 = vld [vmem:[%s672 + $0x80] sm:$0xff]
    %v1090 = vld [vmem:[%s672 + $0x88] sm:$0xff]
    %v1091 = vld [vmem:[%s672 + $0x90] sm:$0xff]
    %v1092 = vld [vmem:[%s672 + $0x98] sm:$0xff]
    %v1093 = vld [vmem:[%s672 + $0x260] sm:$0xff]
    %v1094 = vld [vmem:[%s672 + $0x268] sm:$0xff]
    %v1095 = vld [vmem:[%s672 + $0x270] sm:$0xff]
    %v1096 = vld [vmem:[%s672 + $0x278] sm:$0xff]
    %v1097 = vld [vmem:[%s672 + $0x440] sm:$0xff]
    %v1098 = vld [vmem:[%s672 + $0x448] sm:$0xff]
    %v1099 = vld [vmem:[%s672 + $0x450] sm:$0xff]
    %v1100 = vld [vmem:[%s672 + $0x458] sm:$0xff]
    %v1101 = vld [vmem:[%s672 + $0x620] sm:$0xff]
    %v1102 = vld [vmem:[%s672 + $0x628] sm:$0xff]
    %v1103 = vld [vmem:[%s672 + $0x630] sm:$0xff]
    %v1104 = vld [vmem:[%s672 + $0x638] sm:$0xff]
    %v1105 = vld [vmem:[%s672 + $0x800] sm:$0xff]
    %v1106 = vld [vmem:[%s672 + $0x808] sm:$0xff]
    %v1107 = vld [vmem:[%s672 + $0x810] sm:$0xff]
    %v1108 = vld [vmem:[%s672 + $0x818] sm:$0xff]
    %v1109 = vld [vmem:[%s672 + $0x9e0] sm:$0xff]
    %v1110 = vld [vmem:[%s672 + $0x9e8] sm:$0xff]
    %v1111 = vld [vmem:[%s672 + $0x9f0] sm:$0xff]
    %v1112 = vld [vmem:[%s672 + $0x9f8] sm:$0xff]
    %v1113 = vld [vmem:[%s672 + $0xbc0] sm:$0xff]
    %v1114 = vld [vmem:[%s672 + $0xbc8] sm:$0xff]
    %v1115 = vld [vmem:[%s672 + $0xbd0] sm:$0xff]
    %v1116 = vld [vmem:[%s672 + $0xbd8] sm:$0xff]
    %v1117 = vld [vmem:[%s672 + $0xda0] sm:$0xff]
    %v1118 = vld [vmem:[%s672 + $0xda8] sm:$0xff]
    %v1119 = vld [vmem:[%s672 + $0xdb0] sm:$0xff]
    %v1120 = vld [vmem:[%s672 + $0xdb8] sm:$0xff]
    %v1121 = vrot.slane %v1089, 4
    %v1122 = vadd.f32 %v1089, %v1121
    %v1123 = vrot.slane %v1122, 2
    %v1124 = vadd.f32 %v1122, %v1123
    %v1125 = vrot.slane %v1124, 1
    %v1126 = vadd.f32 %v1124, %v1125
    %v1127 = vrot.slane %v1090, 4
    %v1128 = vadd.f32 %v1090, %v1127
    %v1129 = vrot.slane %v1128, 2
    %v1130 = vadd.f32 %v1128, %v1129
    %v1131 = vrot.slane %v1130, 1
    %v1132 = vadd.f32 %v1130, %v1131
    %v1133 = vrot.slane %v1091, 4
    %v1134 = vadd.f32 %v1091, %v1133
    %v1135 = vrot.slane %v1134, 2
    %v1136 = vadd.f32 %v1134, %v1135
    %v1137 = vrot.slane %v1136, 1
    %v1138 = vadd.f32 %v1136, %v1137
    %v1139 = vrot.slane %v1092, 4
    %v1140 = vadd.f32 %v1092, %v1139
    %v1141 = vrot.slane %v1140, 2
    %v1142 = vadd.f32 %v1140, %v1141
    %v1143 = vrot.slane %v1142, 1
    %v1144 = vadd.f32 %v1142, %v1143
    %v1145 = vrot.slane %v1093, 4
    %v1146 = vadd.f32 %v1093, %v1145
    %v1147 = vrot.slane %v1146, 2
    %v1148 = vadd.f32 %v1146, %v1147
    %v1149 = vrot.slane %v1148, 1
    %v1150 = vadd.f32 %v1148, %v1149
    %v1151 = vrot.slane %v1094, 4
    %v1152 = vadd.f32 %v1094, %v1151
    %v1153 = vrot.slane %v1152, 2
    %v1154 = vadd.f32 %v1152, %v1153
    %v1155 = vrot.slane %v1154, 1
    %v1156 = vadd.f32 %v1154, %v1155
    %v1157 = vrot.slane %v1095, 4
    %v1158 = vadd.f32 %v1095, %v1157
    %v1159 = vrot.slane %v1158, 2
    %v1160 = vadd.f32 %v1158, %v1159
    %v1161 = vrot.slane %v1160, 1
    %v1162 = vadd.f32 %v1160, %v1161
    %v1163 = vrot.slane %v1096, 4
    %v1164 = vadd.f32 %v1096, %v1163
    %v1165 = vrot.slane %v1164, 2
    %v1166 = vadd.f32 %v1164, %v1165
    %v1167 = vrot.slane %v1166, 1
    %v1168 = vadd.f32 %v1166, %v1167
    %v1169 = vrot.slane %v1097, 4
    %v1170 = vadd.f32 %v1097, %v1169
    %v1171 = vrot.slane %v1170, 2
    %v1172 = vadd.f32 %v1170, %v1171
    %v1173 = vrot.slane %v1172, 1
    %v1174 = vadd.f32 %v1172, %v1173
    %v1175 = vrot.slane %v1098, 4
    %v1176 = vadd.f32 %v1098, %v1175
    %v1177 = vrot.slane %v1176, 2
    %v1178 = vadd.f32 %v1176, %v1177
    %v1179 = vrot.slane %v1178, 1
    %v1180 = vadd.f32 %v1178, %v1179
    %v1181 = vrot.slane %v1099, 4
    %v1182 = vadd.f32 %v1099, %v1181
    %v1183 = vrot.slane %v1182, 2
    %v1184 = vadd.f32 %v1182, %v1183
    %v1185 = vrot.slane %v1184, 1
    %v1186 = vadd.f32 %v1184, %v1185
    %v1187 = vrot.slane %v1100, 4
    %v1188 = vadd.f32 %v1100, %v1187
    %v1189 = vrot.slane %v1188, 2
    %v1190 = vadd.f32 %v1188, %v1189
    %v1191 = vrot.slane %v1190, 1
    %v1192 = vadd.f32 %v1190, %v1191
    %v1193 = vrot.slane %v1101, 4
    %v1194 = vadd.f32 %v1101, %v1193
    %v1195 = vrot.slane %v1194, 2
    %v1196 = vadd.f32 %v1194, %v1195
    %v1197 = vrot.slane %v1196, 1
    %v1198 = vadd.f32 %v1196, %v1197
    %v1199 = vrot.slane %v1102, 4
    %v1200 = vadd.f32 %v1102, %v1199
    %v1201 = vrot.slane %v1200, 2
    %v1202 = vadd.f32 %v1200, %v1201
    %v1203 = vrot.slane %v1202, 1
    %v1204 = vadd.f32 %v1202, %v1203
    %v1205 = vrot.slane %v1103, 4
    %v1206 = vadd.f32 %v1103, %v1205
    %v1207 = vrot.slane %v1206, 2
    %v1208 = vadd.f32 %v1206, %v1207
    %v1209 = vrot.slane %v1208, 1
    %v1210 = vadd.f32 %v1208, %v1209
    %v1211 = vrot.slane %v1104, 4
    %v1212 = vadd.f32 %v1104, %v1211
    %v1213 = vrot.slane %v1212, 2
    %v1214 = vadd.f32 %v1212, %v1213
    %v1215 = vrot.slane %v1214, 1
    %v1216 = vadd.f32 %v1214, %v1215
    %v1217 = vrot.slane %v1105, 4
    %v1218 = vadd.f32 %v1105, %v1217
    %v1219 = vrot.slane %v1218, 2
    %v1220 = vadd.f32 %v1218, %v1219
    %v1221 = vrot.slane %v1220, 1
    %v1222 = vadd.f32 %v1220, %v1221
    %v1223 = vrot.slane %v1106, 4
    %v1224 = vadd.f32 %v1106, %v1223
    %v1225 = vrot.slane %v1224, 2
    %v1226 = vadd.f32 %v1224, %v1225
    %v1227 = vrot.slane %v1226, 1
    %v1228 = vadd.f32 %v1226, %v1227
    %v1229 = vrot.slane %v1107, 4
    %v1230 = vadd.f32 %v1107, %v1229
    %v1231 = vrot.slane %v1230, 2
    %v1232 = vadd.f32 %v1230, %v1231
    %v1233 = vrot.slane %v1232, 1
    %v1234 = vadd.f32 %v1232, %v1233
    %v1235 = vrot.slane %v1108, 4
    %v1236 = vadd.f32 %v1108, %v1235
    %v1237 = vrot.slane %v1236, 2
    %v1238 = vadd.f32 %v1236, %v1237
    %v1239 = vrot.slane %v1238, 1
    %v1240 = vadd.f32 %v1238, %v1239
    %v1241 = vrot.slane %v1109, 4
    %v1242 = vadd.f32 %v1109, %v1241
    %v1243 = vrot.slane %v1242, 2
    %v1244 = vadd.f32 %v1242, %v1243
    %v1245 = vrot.slane %v1244, 1
    %v1246 = vadd.f32 %v1244, %v1245
    %v1247 = vrot.slane %v1110, 4
    %v1248 = vadd.f32 %v1110, %v1247
    %v1249 = vrot.slane %v1248, 2
    %v1250 = vadd.f32 %v1248, %v1249
    %v1251 = vrot.slane %v1250, 1
    %v1252 = vadd.f32 %v1250, %v1251
    %v1253 = vrot.slane %v1111, 4
    %v1254 = vadd.f32 %v1111, %v1253
    %v1255 = vrot.slane %v1254, 2
    %v1256 = vadd.f32 %v1254, %v1255
    %v1257 = vrot.slane %v1256, 1
    %v1258 = vadd.f32 %v1256, %v1257
    %v1259 = vrot.slane %v1112, 4
    %v1260 = vadd.f32 %v1112, %v1259
    %v1261 = vrot.slane %v1260, 2
    %v1262 = vadd.f32 %v1260, %v1261
    %v1263 = vrot.slane %v1262, 1
    %v1264 = vadd.f32 %v1262, %v1263
    %v1265 = vrot.slane %v1113, 4
    %v1266 = vadd.f32 %v1113, %v1265
    %v1267 = vrot.slane %v1266, 2
    %v1268 = vadd.f32 %v1266, %v1267
    %v1269 = vrot.slane %v1268, 1
    %v1270 = vadd.f32 %v1268, %v1269
    %v1271 = vrot.slane %v1114, 4
    %v1272 = vadd.f32 %v1114, %v1271
    %v1273 = vrot.slane %v1272, 2
    %v1274 = vadd.f32 %v1272, %v1273
    %v1275 = vrot.slane %v1274, 1
    %v1276 = vadd.f32 %v1274, %v1275
    %v1277 = vrot.slane %v1115, 4
    %v1278 = vadd.f32 %v1115, %v1277
    %v1279 = vrot.slane %v1278, 2
    %v1280 = vadd.f32 %v1278, %v1279
    %v1281 = vrot.slane %v1280, 1
    %v1282 = vadd.f32 %v1280, %v1281
    %v1283 = vrot.slane %v1116, 4
    %v1284 = vadd.f32 %v1116, %v1283
    %v1285 = vrot.slane %v1284, 2
    %v1286 = vadd.f32 %v1284, %v1285
    %v1287 = vrot.slane %v1286, 1
    %v1288 = vadd.f32 %v1286, %v1287
    %v1289 = vrot.slane %v1117, 4
    %v1290 = vadd.f32 %v1117, %v1289
    %v1291 = vrot.slane %v1290, 2
    %v1292 = vadd.f32 %v1290, %v1291
    %v1293 = vrot.slane %v1292, 1
    %v1294 = vadd.f32 %v1292, %v1293
    %v1295 = vrot.slane %v1118, 4
    %v1296 = vadd.f32 %v1118, %v1295
    %v1297 = vrot.slane %v1296, 2
    %v1298 = vadd.f32 %v1296, %v1297
    %v1299 = vrot.slane %v1298, 1
    %v1300 = vadd.f32 %v1298, %v1299
    %v1301 = vrot.slane %v1119, 4
    %v1302 = vadd.f32 %v1119, %v1301
    %v1303 = vrot.slane %v1302, 2
    %v1304 = vadd.f32 %v1302, %v1303
    %v1305 = vrot.slane %v1304, 1
    %v1306 = vadd.f32 %v1304, %v1305
    %v1307 = vrot.slane %v1120, 4
    %v1308 = vadd.f32 %v1120, %v1307
    %v1309 = vrot.slane %v1308, 2
    %v1310 = vadd.f32 %v1308, %v1309
    %v1311 = vrot.slane %v1310, 1
    %v1312 = vadd.f32 %v1310, %v1311
    %s1313 = scalar_lea.vmem %s0, 320
    %v1314 = vld [vmem:[%s1313] sm:$0xff]
    %v1315 = vld [vmem:[%s1313 + $0x8] sm:$0xff]
    %v1316 = vld [vmem:[%s1313 + $0x10] sm:$0xff]
    %v1317 = vld [vmem:[%s1313 + $0x18] sm:$0xff]
    %v1318 = vld [vmem:[%s1313 + $0x1e0] sm:$0xff]
    %v1319 = vld [vmem:[%s1313 + $0x1e8] sm:$0xff]
    %v1320 = vld [vmem:[%s1313 + $0x1f0] sm:$0xff]
    %v1321 = vld [vmem:[%s1313 + $0x1f8] sm:$0xff]
    %v1322 = vld [vmem:[%s1313 + $0x3c0] sm:$0xff]
    %v1323 = vld [vmem:[%s1313 + $0x3c8] sm:$0xff]
    %v1324 = vld [vmem:[%s1313 + $0x3d0] sm:$0xff]
    %v1325 = vld [vmem:[%s1313 + $0x3d8] sm:$0xff]
    %v1326 = vld [vmem:[%s1313 + $0x5a0] sm:$0xff]
    %v1327 = vld [vmem:[%s1313 + $0x5a8] sm:$0xff]
    %v1328 = vld [vmem:[%s1313 + $0x5b0] sm:$0xff]
    %v1329 = vld [vmem:[%s1313 + $0x5b8] sm:$0xff]
    %v1330 = vld [vmem:[%s1313 + $0x780] sm:$0xff]
    %v1331 = vld [vmem:[%s1313 + $0x788] sm:$0xff]
    %v1332 = vld [vmem:[%s1313 + $0x790] sm:$0xff]
    %v1333 = vld [vmem:[%s1313 + $0x798] sm:$0xff]
    %v1334 = vld [vmem:[%s1313 + $0x960] sm:$0xff]
    %v1335 = vld [vmem:[%s1313 + $0x968] sm:$0xff]
    %v1336 = vld [vmem:[%s1313 + $0x970] sm:$0xff]
    %v1337 = vld [vmem:[%s1313 + $0x978] sm:$0xff]
    %v1338 = vld [vmem:[%s1313 + $0xb40] sm:$0xff]
    %v1339 = vld [vmem:[%s1313 + $0xb48] sm:$0xff]
    %v1340 = vld [vmem:[%s1313 + $0xb50] sm:$0xff]
    %v1341 = vld [vmem:[%s1313 + $0xb58] sm:$0xff]
    %v1342 = vld [vmem:[%s1313 + $0xd20] sm:$0xff]
    %v1343 = vld [vmem:[%s1313 + $0xd28] sm:$0xff]
    %v1344 = vld [vmem:[%s1313 + $0xd30] sm:$0xff]
    %v1345 = vld [vmem:[%s1313 + $0xd38] sm:$0xff]
    %v1346 = vld [vmem:[%s1313 + $0x20] sm:$0xff]
    %v1347 = vld [vmem:[%s1313 + $0x28] sm:$0xff]
    %v1348 = vld [vmem:[%s1313 + $0x30] sm:$0xff]
    %v1349 = vld [vmem:[%s1313 + $0x38] sm:$0xff]
    %v1350 = vld [vmem:[%s1313 + $0x200] sm:$0xff]
    %v1351 = vld [vmem:[%s1313 + $0x208] sm:$0xff]
    %v1352 = vld [vmem:[%s1313 + $0x210] sm:$0xff]
    %v1353 = vld [vmem:[%s1313 + $0x218] sm:$0xff]
    %v1354 = vld [vmem:[%s1313 + $0x3e0] sm:$0xff]
    %v1355 = vld [vmem:[%s1313 + $0x3e8] sm:$0xff]
    %v1356 = vld [vmem:[%s1313 + $0x3f0] sm:$0xff]
    %v1357 = vld [vmem:[%s1313 + $0x3f8] sm:$0xff]
    %v1358 = vld [vmem:[%s1313 + $0x5c0] sm:$0xff]
    %v1359 = vld [vmem:[%s1313 + $0x5c8] sm:$0xff]
    %v1360 = vld [vmem:[%s1313 + $0x5d0] sm:$0xff]
    %v1361 = vld [vmem:[%s1313 + $0x5d8] sm:$0xff]
    %v1362 = vld [vmem:[%s1313 + $0x7a0] sm:$0xff]
    %v1363 = vld [vmem:[%s1313 + $0x7a8] sm:$0xff]
    %v1364 = vld [vmem:[%s1313 + $0x7b0] sm:$0xff]
    %v1365 = vld [vmem:[%s1313 + $0x7b8] sm:$0xff]
    %v1366 = vld [vmem:[%s1313 + $0x980] sm:$0xff]
    %v1367 = vld [vmem:[%s1313 + $0x988] sm:$0xff]
    %v1368 = vld [vmem:[%s1313 + $0x990] sm:$0xff]
    %v1369 = vld [vmem:[%s1313 + $0x998] sm:$0xff]
    %v1370 = vld [vmem:[%s1313 + $0xb60] sm:$0xff]
    %v1371 = vld [vmem:[%s1313 + $0xb68] sm:$0xff]
    %v1372 = vld [vmem:[%s1313 + $0xb70] sm:$0xff]
    %v1373 = vld [vmem:[%s1313 + $0xb78] sm:$0xff]
    %v1374 = vld [vmem:[%s1313 + $0xd40] sm:$0xff]
    %v1375 = vld [vmem:[%s1313 + $0xd48] sm:$0xff]
    %v1376 = vld [vmem:[%s1313 + $0xd50] sm:$0xff]
    %v1377 = vld [vmem:[%s1313 + $0xd58] sm:$0xff]
    %v1378 = vadd.f32 %v1314, %v1346
    %v1379 = vadd.f32 %v1315, %v1347
    %v1380 = vadd.f32 %v1316, %v1348
    %v1381 = vadd.f32 %v1317, %v1349
    %v1382 = vadd.f32 %v1318, %v1350
    %v1383 = vadd.f32 %v1319, %v1351
    %v1384 = vadd.f32 %v1320, %v1352
    %v1385 = vadd.f32 %v1321, %v1353
    %v1386 = vadd.f32 %v1322, %v1354
    %v1387 = vadd.f32 %v1323, %v1355
    %v1388 = vadd.f32 %v1324, %v1356
    %v1389 = vadd.f32 %v1325, %v1357
    %v1390 = vadd.f32 %v1326, %v1358
    %v1391 = vadd.f32 %v1327, %v1359
    %v1392 = vadd.f32 %v1328, %v1360
    %v1393 = vadd.f32 %v1329, %v1361
    %v1394 = vadd.f32 %v1330, %v1362
    %v1395 = vadd.f32 %v1331, %v1363
    %v1396 = vadd.f32 %v1332, %v1364
    %v1397 = vadd.f32 %v1333, %v1365
    %v1398 = vadd.f32 %v1334, %v1366
    %v1399 = vadd.f32 %v1335, %v1367
    %v1400 = vadd.f32 %v1336, %v1368
    %v1401 = vadd.f32 %v1337, %v1369
    %v1402 = vadd.f32 %v1338, %v1370
    %v1403 = vadd.f32 %v1339, %v1371
    %v1404 = vadd.f32 %v1340, %v1372
    %v1405 = vadd.f32 %v1341, %v1373
    %v1406 = vadd.f32 %v1342, %v1374
    %v1407 = vadd.f32 %v1343, %v1375
    %v1408 = vadd.f32 %v1344, %v1376
    %v1409 = vadd.f32 %v1345, %v1377
    %v1410 = vld [vmem:[%s1313 + $0x40] sm:$0xff]
    %v1411 = vld [vmem:[%s1313 + $0x48] sm:$0xff]
    %v1412 = vld [vmem:[%s1313 + $0x50] sm:$0xff]
    %v1413 = vld [vmem:[%s1313 + $0x58] sm:$0xff]
    %v1414 = vld [vmem:[%s1313 + $0x220] sm:$0xff]
    %v1415 = vld [vmem:[%s1313 + $0x228] sm:$0xff]
    %v1416 = vld [vmem:[%s1313 + $0x230] sm:$0xff]
    %v1417 = vld [vmem:[%s1313 + $0x238] sm:$0xff]
    %v1418 = vld [vmem:[%s1313 + $0x400] sm:$0xff]
    %v1419 = vld [vmem:[%s1313 + $0x408] sm:$0xff]
    %v1420 = vld [vmem:[%s1313 + $0x410] sm:$0xff]
    %v1421 = vld [vmem:[%s1313 + $0x418] sm:$0xff]
    %v1422 = vld [vmem:[%s1313 + $0x5e0] sm:$0xff]
    %v1423 = vld [vmem:[%s1313 + $0x5e8] sm:$0xff]
    %v1424 = vld [vmem:[%s1313 + $0x5f0] sm:$0xff]
    %v1425 = vld [vmem:[%s1313 + $0x5f8] sm:$0xff]
    %v1426 = vld [vmem:[%s1313 + $0x7c0] sm:$0xff]
    %v1427 = vld [vmem:[%s1313 + $0x7c8] sm:$0xff]
    %v1428 = vld [vmem:[%s1313 + $0x7d0] sm:$0xff]
    %v1429 = vld [vmem:[%s1313 + $0x7d8] sm:$0xff]
    %v1430 = vld [vmem:[%s1313 + $0x9a0] sm:$0xff]
    %v1431 = vld [vmem:[%s1313 + $0x9a8] sm:$0xff]
    %v1432 = vld [vmem:[%s1313 + $0x9b0] sm:$0xff]
    %v1433 = vld [vmem:[%s1313 + $0x9b8] sm:$0xff]
    %v1434 = vld [vmem:[%s1313 + $0xb80] sm:$0xff]
    %v1435 = vld [vmem:[%s1313 + $0xb88] sm:$0xff]
    %v1436 = vld [vmem:[%s1313 + $0xb90] sm:$0xff]
    %v1437 = vld [vmem:[%s1313 + $0xb98] sm:$0xff]
    %v1438 = vld [vmem:[%s1313 + $0xd60] sm:$0xff]
    %v1439 = vld [vmem:[%s1313 + $0xd68] sm:$0xff]
    %v1440 = vld [vmem:[%s1313 + $0xd70] sm:$0xff]
    %v1441 = vld [vmem:[%s1313 + $0xd78] sm:$0xff]
    %v1442 = vadd.f32 %v1378, %v1410
    %v1443 = vadd.f32 %v1379, %v1411
    %v1444 = vadd.f32 %v1380, %v1412
    %v1445 = vadd.f32 %v1381, %v1413
    %v1446 = vadd.f32 %v1382, %v1414
    %v1447 = vadd.f32 %v1383, %v1415
    %v1448 = vadd.f32 %v1384, %v1416
    %v1449 = vadd.f32 %v1385, %v1417
    %v1450 = vadd.f32 %v1386, %v1418
    %v1451 = vadd.f32 %v1387, %v1419
    %v1452 = vadd.f32 %v1388, %v1420
    %v1453 = vadd.f32 %v1389, %v1421
    %v1454 = vadd.f32 %v1390, %v1422
    %v1455 = vadd.f32 %v1391, %v1423
    %v1456 = vadd.f32 %v1392, %v1424
    %v1457 = vadd.f32 %v1393, %v1425
    %v1458 = vadd.f32 %v1394, %v1426
    %v1459 = vadd.f32 %v1395, %v1427
    %v1460 = vadd.f32 %v1396, %v1428
    %v1461 = vadd.f32 %v1397, %v1429
    %v1462 = vadd.f32 %v1398, %v1430
    %v1463 = vadd.f32 %v1399, %v1431
    %v1464 = vadd.f32 %v1400, %v1432
    %v1465 = vadd.f32 %v1401, %v1433
    %v1466 = vadd.f32 %v1402, %v1434
    %v1467 = vadd.f32 %v1403, %v1435
    %v1468 = vadd.f32 %v1404, %v1436
    %v1469 = vadd.f32 %v1405, %v1437
    %v1470 = vadd.f32 %v1406, %v1438
    %v1471 = vadd.f32 %v1407, %v1439
    %v1472 = vadd.f32 %v1408, %v1440
    %v1473 = vadd.f32 %v1409, %v1441
    %v1474 = vld [vmem:[%s1313 + $0x60] sm:$0xff]
    %v1475 = vld [vmem:[%s1313 + $0x68] sm:$0xff]
    %v1476 = vld [vmem:[%s1313 + $0x70] sm:$0xff]
    %v1477 = vld [vmem:[%s1313 + $0x78] sm:$0xff]
    %v1478 = vld [vmem:[%s1313 + $0x240] sm:$0xff]
    %v1479 = vld [vmem:[%s1313 + $0x248] sm:$0xff]
    %v1480 = vld [vmem:[%s1313 + $0x250] sm:$0xff]
    %v1481 = vld [vmem:[%s1313 + $0x258] sm:$0xff]
    %v1482 = vld [vmem:[%s1313 + $0x420] sm:$0xff]
    %v1483 = vld [vmem:[%s1313 + $0x428] sm:$0xff]
    %v1484 = vld [vmem:[%s1313 + $0x430] sm:$0xff]
    %v1485 = vld [vmem:[%s1313 + $0x438] sm:$0xff]
    %v1486 = vld [vmem:[%s1313 + $0x600] sm:$0xff]
    %v1487 = vld [vmem:[%s1313 + $0x608] sm:$0xff]
    %v1488 = vld [vmem:[%s1313 + $0x610] sm:$0xff]
    %v1489 = vld [vmem:[%s1313 + $0x618] sm:$0xff]
    %v1490 = vld [vmem:[%s1313 + $0x7e0] sm:$0xff]
    %v1491 = vld [vmem:[%s1313 + $0x7e8] sm:$0xff]
    %v1492 = vld [vmem:[%s1313 + $0x7f0] sm:$0xff]
    %v1493 = vld [vmem:[%s1313 + $0x7f8] sm:$0xff]
    %v1494 = vld [vmem:[%s1313 + $0x9c0] sm:$0xff]
    %v1495 = vld [vmem:[%s1313 + $0x9c8] sm:$0xff]
    %v1496 = vld [vmem:[%s1313 + $0x9d0] sm:$0xff]
    %v1497 = vld [vmem:[%s1313 + $0x9d8] sm:$0xff]
    %v1498 = vld [vmem:[%s1313 + $0xba0] sm:$0xff]
    %v1499 = vld [vmem:[%s1313 + $0xba8] sm:$0xff]
    %v1500 = vld [vmem:[%s1313 + $0xbb0] sm:$0xff]
    %v1501 = vld [vmem:[%s1313 + $0xbb8] sm:$0xff]
    %v1502 = vld [vmem:[%s1313 + $0xd80] sm:$0xff]
    %v1503 = vld [vmem:[%s1313 + $0xd88] sm:$0xff]
    %v1504 = vld [vmem:[%s1313 + $0xd90] sm:$0xff]
    %v1505 = vld [vmem:[%s1313 + $0xd98] sm:$0xff]
    %v1506 = vadd.f32 %v1442, %v1474
    %v1507 = vadd.f32 %v1443, %v1475
    %v1508 = vadd.f32 %v1444, %v1476
    %v1509 = vadd.f32 %v1445, %v1477
    %v1510 = vadd.f32 %v1446, %v1478
    %v1511 = vadd.f32 %v1447, %v1479
    %v1512 = vadd.f32 %v1448, %v1480
    %v1513 = vadd.f32 %v1449, %v1481
    %v1514 = vadd.f32 %v1450, %v1482
    %v1515 = vadd.f32 %v1451, %v1483
    %v1516 = vadd.f32 %v1452, %v1484
    %v1517 = vadd.f32 %v1453, %v1485
    %v1518 = vadd.f32 %v1454, %v1486
    %v1519 = vadd.f32 %v1455, %v1487
    %v1520 = vadd.f32 %v1456, %v1488
    %v1521 = vadd.f32 %v1457, %v1489
    %v1522 = vadd.f32 %v1458, %v1490
    %v1523 = vadd.f32 %v1459, %v1491
    %v1524 = vadd.f32 %v1460, %v1492
    %v1525 = vadd.f32 %v1461, %v1493
    %v1526 = vadd.f32 %v1462, %v1494
    %v1527 = vadd.f32 %v1463, %v1495
    %v1528 = vadd.f32 %v1464, %v1496
    %v1529 = vadd.f32 %v1465, %v1497
    %v1530 = vadd.f32 %v1466, %v1498
    %v1531 = vadd.f32 %v1467, %v1499
    %v1532 = vadd.f32 %v1468, %v1500
    %v1533 = vadd.f32 %v1469, %v1501
    %v1534 = vadd.f32 %v1470, %v1502
    %v1535 = vadd.f32 %v1471, %v1503
    %v1536 = vadd.f32 %v1472, %v1504
    %v1537 = vadd.f32 %v1473, %v1505
    %v1538 = vrot.slane %v1506, 4
    %v1539 = vadd.f32 %v1506, %v1538
    %v1540 = vrot.slane %v1539, 2
    %v1541 = vadd.f32 %v1539, %v1540
    %v1542 = vrot.slane %v1541, 1
    %v1543 = vadd.f32 %v1541, %v1542
    %v1544 = vrot.slane %v1507, 4
    %v1545 = vadd.f32 %v1507, %v1544
    %v1546 = vrot.slane %v1545, 2
    %v1547 = vadd.f32 %v1545, %v1546
    %v1548 = vrot.slane %v1547, 1
    %v1549 = vadd.f32 %v1547, %v1548
    %v1550 = vrot.slane %v1508, 4
    %v1551 = vadd.f32 %v1508, %v1550
    %v1552 = vrot.slane %v1551, 2
    %v1553 = vadd.f32 %v1551, %v1552
    %v1554 = vrot.slane %v1553, 1
    %v1555 = vadd.f32 %v1553, %v1554
    %v1556 = vrot.slane %v1509, 4
    %v1557 = vadd.f32 %v1509, %v1556
    %v1558 = vrot.slane %v1557, 2
    %v1559 = vadd.f32 %v1557, %v1558
    %v1560 = vrot.slane %v1559, 1
    %v1561 = vadd.f32 %v1559, %v1560
    %v1562 = vrot.slane %v1510, 4
    %v1563 = vadd.f32 %v1510, %v1562
    %v1564 = vrot.slane %v1563, 2
    %v1565 = vadd.f32 %v1563, %v1564
    %v1566 = vrot.slane %v1565, 1
    %v1567 = vadd.f32 %v1565, %v1566
    %v1568 = vrot.slane %v1511, 4
    %v1569 = vadd.f32 %v1511, %v1568
    %v1570 = vrot.slane %v1569, 2
    %v1571 = vadd.f32 %v1569, %v1570
    %v1572 = vrot.slane %v1571, 1
    %v1573 = vadd.f32 %v1571, %v1572
    %v1574 = vrot.slane %v1512, 4
    %v1575 = vadd.f32 %v1512, %v1574
    %v1576 = vrot.slane %v1575, 2
    %v1577 = vadd.f32 %v1575, %v1576
    %v1578 = vrot.slane %v1577, 1
    %v1579 = vadd.f32 %v1577, %v1578
    %v1580 = vrot.slane %v1513, 4
    %v1581 = vadd.f32 %v1513, %v1580
    %v1582 = vrot.slane %v1581, 2
    %v1583 = vadd.f32 %v1581, %v1582
    %v1584 = vrot.slane %v1583, 1
    %v1585 = vadd.f32 %v1583, %v1584
    %v1586 = vrot.slane %v1514, 4
    %v1587 = vadd.f32 %v1514, %v1586
    %v1588 = vrot.slane %v1587, 2
    %v1589 = vadd.f32 %v1587, %v1588
    %v1590 = vrot.slane %v1589, 1
    %v1591 = vadd.f32 %v1589, %v1590
    %v1592 = vrot.slane %v1515, 4
    %v1593 = vadd.f32 %v1515, %v1592
    %v1594 = vrot.slane %v1593, 2
    %v1595 = vadd.f32 %v1593, %v1594
    %v1596 = vrot.slane %v1595, 1
    %v1597 = vadd.f32 %v1595, %v1596
    %v1598 = vrot.slane %v1516, 4
    %v1599 = vadd.f32 %v1516, %v1598
    %v1600 = vrot.slane %v1599, 2
    %v1601 = vadd.f32 %v1599, %v1600
    %v1602 = vrot.slane %v1601, 1
    %v1603 = vadd.f32 %v1601, %v1602
    %v1604 = vrot.slane %v1517, 4
    %v1605 = vadd.f32 %v1517, %v1604
    %v1606 = vrot.slane %v1605, 2
    %v1607 = vadd.f32 %v1605, %v1606
    %v1608 = vrot.slane %v1607, 1
    %v1609 = vadd.f32 %v1607, %v1608
    %v1610 = vrot.slane %v1518, 4
    %v1611 = vadd.f32 %v1518, %v1610
    %v1612 = vrot.slane %v1611, 2
    %v1613 = vadd.f32 %v1611, %v1612
    %v1614 = vrot.slane %v1613, 1
    %v1615 = vadd.f32 %v1613, %v1614
    %v1616 = vrot.slane %v1519, 4
    %v1617 = vadd.f32 %v1519, %v1616
    %v1618 = vrot.slane %v1617, 2
    %v1619 = vadd.f32 %v1617, %v1618
    %v1620 = vrot.slane %v1619, 1
    %v1621 = vadd.f32 %v1619, %v1620
    %v1622 = vrot.slane %v1520, 4
    %v1623 = vadd.f32 %v1520, %v1622
    %v1624 = vrot.slane %v1623, 2
    %v1625 = vadd.f32 %v1623, %v1624
    %v1626 = vrot.slane %v1625, 1
    %v1627 = vadd.f32 %v1625, %v1626
    %v1628 = vrot.slane %v1521, 4
    %v1629 = vadd.f32 %v1521, %v1628
    %v1630 = vrot.slane %v1629, 2
    %v1631 = vadd.f32 %v1629, %v1630
    %v1632 = vrot.slane %v1631, 1
    %v1633 = vadd.f32 %v1631, %v1632
    %v1634 = vrot.slane %v1522, 4
    %v1635 = vadd.f32 %v1522, %v1634
    %v1636 = vrot.slane %v1635, 2
    %v1637 = vadd.f32 %v1635, %v1636
    %v1638 = vrot.slane %v1637, 1
    %v1639 = vadd.f32 %v1637, %v1638
    %v1640 = vrot.slane %v1523, 4
    %v1641 = vadd.f32 %v1523, %v1640
    %v1642 = vrot.slane %v1641, 2
    %v1643 = vadd.f32 %v1641, %v1642
    %v1644 = vrot.slane %v1643, 1
    %v1645 = vadd.f32 %v1643, %v1644
    %v1646 = vrot.slane %v1524, 4
    %v1647 = vadd.f32 %v1524, %v1646
    %v1648 = vrot.slane %v1647, 2
    %v1649 = vadd.f32 %v1647, %v1648
    %v1650 = vrot.slane %v1649, 1
    %v1651 = vadd.f32 %v1649, %v1650
    %v1652 = vrot.slane %v1525, 4
    %v1653 = vadd.f32 %v1525, %v1652
    %v1654 = vrot.slane %v1653, 2
    %v1655 = vadd.f32 %v1653, %v1654
    %v1656 = vrot.slane %v1655, 1
    %v1657 = vadd.f32 %v1655, %v1656
    %v1658 = vrot.slane %v1526, 4
    %v1659 = vadd.f32 %v1526, %v1658
    %v1660 = vrot.slane %v1659, 2
    %v1661 = vadd.f32 %v1659, %v1660
    %v1662 = vrot.slane %v1661, 1
    %v1663 = vadd.f32 %v1661, %v1662
    %v1664 = vrot.slane %v1527, 4
    %v1665 = vadd.f32 %v1527, %v1664
    %v1666 = vrot.slane %v1665, 2
    %v1667 = vadd.f32 %v1665, %v1666
    %v1668 = vrot.slane %v1667, 1
    %v1669 = vadd.f32 %v1667, %v1668
    %v1670 = vrot.slane %v1528, 4
    %v1671 = vadd.f32 %v1528, %v1670
    %v1672 = vrot.slane %v1671, 2
    %v1673 = vadd.f32 %v1671, %v1672
    %v1674 = vrot.slane %v1673, 1
    %v1675 = vadd.f32 %v1673, %v1674
    %v1676 = vrot.slane %v1529, 4
    %v1677 = vadd.f32 %v1529, %v1676
    %v1678 = vrot.slane %v1677, 2
    %v1679 = vadd.f32 %v1677, %v1678
    %v1680 = vrot.slane %v1679, 1
    %v1681 = vadd.f32 %v1679, %v1680
    %v1682 = vrot.slane %v1530, 4
    %v1683 = vadd.f32 %v1530, %v1682
    %v1684 = vrot.slane %v1683, 2
    %v1685 = vadd.f32 %v1683, %v1684
    %v1686 = vrot.slane %v1685, 1
    %v1687 = vadd.f32 %v1685, %v1686
    %v1688 = vrot.slane %v1531, 4
    %v1689 = vadd.f32 %v1531, %v1688
    %v1690 = vrot.slane %v1689, 2
    %v1691 = vadd.f32 %v1689, %v1690
    %v1692 = vrot.slane %v1691, 1
    %v1693 = vadd.f32 %v1691, %v1692
    %v1694 = vrot.slane %v1532, 4
    %v1695 = vadd.f32 %v1532, %v1694
    %v1696 = vrot.slane %v1695, 2
    %v1697 = vadd.f32 %v1695, %v1696
    %v1698 = vrot.slane %v1697, 1
    %v1699 = vadd.f32 %v1697, %v1698
    %v1700 = vrot.slane %v1533, 4
    %v1701 = vadd.f32 %v1533, %v1700
    %v1702 = vrot.slane %v1701, 2
    %v1703 = vadd.f32 %v1701, %v1702
    %v1704 = vrot.slane %v1703, 1
    %v1705 = vadd.f32 %v1703, %v1704
    %v1706 = vrot.slane %v1534, 4
    %v1707 = vadd.f32 %v1534, %v1706
    %v1708 = vrot.slane %v1707, 2
    %v1709 = vadd.f32 %v1707, %v1708
    %v1710 = vrot.slane %v1709, 1
    %v1711 = vadd.f32 %v1709, %v1710
    %v1712 = vrot.slane %v1535, 4
    %v1713 = vadd.f32 %v1535, %v1712
    %v1714 = vrot.slane %v1713, 2
    %v1715 = vadd.f32 %v1713, %v1714
    %v1716 = vrot.slane %v1715, 1
    %v1717 = vadd.f32 %v1715, %v1716
    %v1718 = vrot.slane %v1536, 4
    %v1719 = vadd.f32 %v1536, %v1718
    %v1720 = vrot.slane %v1719, 2
    %v1721 = vadd.f32 %v1719, %v1720
    %v1722 = vrot.slane %v1721, 1
    %v1723 = vadd.f32 %v1721, %v1722
    %v1724 = vrot.slane %v1537, 4
    %v1725 = vadd.f32 %v1537, %v1724
    %v1726 = vrot.slane %v1725, 2
    %v1727 = vadd.f32 %v1725, %v1726
    %v1728 = vrot.slane %v1727, 1
    %v1729 = vadd.f32 %v1727, %v1728
    %v1730 = vld [vmem:[%s1313 + $0x80] sm:$0xff]
    %v1731 = vld [vmem:[%s1313 + $0x88] sm:$0xff]
    %v1732 = vld [vmem:[%s1313 + $0x90] sm:$0xff]
    %v1733 = vld [vmem:[%s1313 + $0x98] sm:$0xff]
    %v1734 = vld [vmem:[%s1313 + $0x260] sm:$0xff]
    %v1735 = vld [vmem:[%s1313 + $0x268] sm:$0xff]
    %v1736 = vld [vmem:[%s1313 + $0x270] sm:$0xff]
    %v1737 = vld [vmem:[%s1313 + $0x278] sm:$0xff]
    %v1738 = vld [vmem:[%s1313 + $0x440] sm:$0xff]
    %v1739 = vld [vmem:[%s1313 + $0x448] sm:$0xff]
    %v1740 = vld [vmem:[%s1313 + $0x450] sm:$0xff]
    %v1741 = vld [vmem:[%s1313 + $0x458] sm:$0xff]
    %v1742 = vld [vmem:[%s1313 + $0x620] sm:$0xff]
    %v1743 = vld [vmem:[%s1313 + $0x628] sm:$0xff]
    %v1744 = vld [vmem:[%s1313 + $0x630] sm:$0xff]
    %v1745 = vld [vmem:[%s1313 + $0x638] sm:$0xff]
    %v1746 = vld [vmem:[%s1313 + $0x800] sm:$0xff]
    %v1747 = vld [vmem:[%s1313 + $0x808] sm:$0xff]
    %v1748 = vld [vmem:[%s1313 + $0x810] sm:$0xff]
    %v1749 = vld [vmem:[%s1313 + $0x818] sm:$0xff]
    %v1750 = vld [vmem:[%s1313 + $0x9e0] sm:$0xff]
    %v1751 = vld [vmem:[%s1313 + $0x9e8] sm:$0xff]
    %v1752 = vld [vmem:[%s1313 + $0x9f0] sm:$0xff]
    %v1753 = vld [vmem:[%s1313 + $0x9f8] sm:$0xff]
    %v1754 = vld [vmem:[%s1313 + $0xbc0] sm:$0xff]
    %v1755 = vld [vmem:[%s1313 + $0xbc8] sm:$0xff]
    %v1756 = vld [vmem:[%s1313 + $0xbd0] sm:$0xff]
    %v1757 = vld [vmem:[%s1313 + $0xbd8] sm:$0xff]
    %v1758 = vld [vmem:[%s1313 + $0xda0] sm:$0xff]
    %v1759 = vld [vmem:[%s1313 + $0xda8] sm:$0xff]
    %v1760 = vld [vmem:[%s1313 + $0xdb0] sm:$0xff]
    %v1761 = vld [vmem:[%s1313 + $0xdb8] sm:$0xff]
    %v1762 = vrot.slane %v1730, 4
    %v1763 = vadd.f32 %v1730, %v1762
    %v1764 = vrot.slane %v1763, 2
    %v1765 = vadd.f32 %v1763, %v1764
    %v1766 = vrot.slane %v1765, 1
    %v1767 = vadd.f32 %v1765, %v1766
    %v1768 = vrot.slane %v1731, 4
    %v1769 = vadd.f32 %v1731, %v1768
    %v1770 = vrot.slane %v1769, 2
    %v1771 = vadd.f32 %v1769, %v1770
    %v1772 = vrot.slane %v1771, 1
    %v1773 = vadd.f32 %v1771, %v1772
    %v1774 = vrot.slane %v1732, 4
    %v1775 = vadd.f32 %v1732, %v1774
    %v1776 = vrot.slane %v1775, 2
    %v1777 = vadd.f32 %v1775, %v1776
    %v1778 = vrot.slane %v1777, 1
    %v1779 = vadd.f32 %v1777, %v1778
    %v1780 = vrot.slane %v1733, 4
    %v1781 = vadd.f32 %v1733, %v1780
    %v1782 = vrot.slane %v1781, 2
    %v1783 = vadd.f32 %v1781, %v1782
    %v1784 = vrot.slane %v1783, 1
    %v1785 = vadd.f32 %v1783, %v1784
    %v1786 = vrot.slane %v1734, 4
    %v1787 = vadd.f32 %v1734, %v1786
    %v1788 = vrot.slane %v1787, 2
    %v1789 = vadd.f32 %v1787, %v1788
    %v1790 = vrot.slane %v1789, 1
    %v1791 = vadd.f32 %v1789, %v1790
    %v1792 = vrot.slane %v1735, 4
    %v1793 = vadd.f32 %v1735, %v1792
    %v1794 = vrot.slane %v1793, 2
    %v1795 = vadd.f32 %v1793, %v1794
    %v1796 = vrot.slane %v1795, 1
    %v1797 = vadd.f32 %v1795, %v1796
    %v1798 = vrot.slane %v1736, 4
    %v1799 = vadd.f32 %v1736, %v1798
    %v1800 = vrot.slane %v1799, 2
    %v1801 = vadd.f32 %v1799, %v1800
    %v1802 = vrot.slane %v1801, 1
    %v1803 = vadd.f32 %v1801, %v1802
    %v1804 = vrot.slane %v1737, 4
    %v1805 = vadd.f32 %v1737, %v1804
    %v1806 = vrot.slane %v1805, 2
    %v1807 = vadd.f32 %v1805, %v1806
    %v1808 = vrot.slane %v1807, 1
    %v1809 = vadd.f32 %v1807, %v1808
    %v1810 = vrot.slane %v1738, 4
    %v1811 = vadd.f32 %v1738, %v1810
    %v1812 = vrot.slane %v1811, 2
    %v1813 = vadd.f32 %v1811, %v1812
    %v1814 = vrot.slane %v1813, 1
    %v1815 = vadd.f32 %v1813, %v1814
    %v1816 = vrot.slane %v1739, 4
    %v1817 = vadd.f32 %v1739, %v1816
    %v1818 = vrot.slane %v1817, 2
    %v1819 = vadd.f32 %v1817, %v1818
    %v1820 = vrot.slane %v1819, 1
    %v1821 = vadd.f32 %v1819, %v1820
    %v1822 = vrot.slane %v1740, 4
    %v1823 = vadd.f32 %v1740, %v1822
    %v1824 = vrot.slane %v1823, 2
    %v1825 = vadd.f32 %v1823, %v1824
    %v1826 = vrot.slane %v1825, 1
    %v1827 = vadd.f32 %v1825, %v1826
    %v1828 = vrot.slane %v1741, 4
    %v1829 = vadd.f32 %v1741, %v1828
    %v1830 = vrot.slane %v1829, 2
    %v1831 = vadd.f32 %v1829, %v1830
    %v1832 = vrot.slane %v1831, 1
    %v1833 = vadd.f32 %v1831, %v1832
    %v1834 = vrot.slane %v1742, 4
    %v1835 = vadd.f32 %v1742, %v1834
    %v1836 = vrot.slane %v1835, 2
    %v1837 = vadd.f32 %v1835, %v1836
    %v1838 = vrot.slane %v1837, 1
    %v1839 = vadd.f32 %v1837, %v1838
    %v1840 = vrot.slane %v1743, 4
    %v1841 = vadd.f32 %v1743, %v1840
    %v1842 = vrot.slane %v1841, 2
    %v1843 = vadd.f32 %v1841, %v1842
    %v1844 = vrot.slane %v1843, 1
    %v1845 = vadd.f32 %v1843, %v1844
    %v1846 = vrot.slane %v1744, 4
    %v1847 = vadd.f32 %v1744, %v1846
    %v1848 = vrot.slane %v1847, 2
    %v1849 = vadd.f32 %v1847, %v1848
    %v1850 = vrot.slane %v1849, 1
    %v1851 = vadd.f32 %v1849, %v1850
    %v1852 = vrot.slane %v1745, 4
    %v1853 = vadd.f32 %v1745, %v1852
    %v1854 = vrot.slane %v1853, 2
    %v1855 = vadd.f32 %v1853, %v1854
    %v1856 = vrot.slane %v1855, 1
    %v1857 = vadd.f32 %v1855, %v1856
    %v1858 = vrot.slane %v1746, 4
    %v1859 = vadd.f32 %v1746, %v1858
    %v1860 = vrot.slane %v1859, 2
    %v1861 = vadd.f32 %v1859, %v1860
    %v1862 = vrot.slane %v1861, 1
    %v1863 = vadd.f32 %v1861, %v1862
    %v1864 = vrot.slane %v1747, 4
    %v1865 = vadd.f32 %v1747, %v1864
    %v1866 = vrot.slane %v1865, 2
    %v1867 = vadd.f32 %v1865, %v1866
    %v1868 = vrot.slane %v1867, 1
    %v1869 = vadd.f32 %v1867, %v1868
    %v1870 = vrot.slane %v1748, 4
    %v1871 = vadd.f32 %v1748, %v1870
    %v1872 = vrot.slane %v1871, 2
    %v1873 = vadd.f32 %v1871, %v1872
    %v1874 = vrot.slane %v1873, 1
    %v1875 = vadd.f32 %v1873, %v1874
    %v1876 = vrot.slane %v1749, 4
    %v1877 = vadd.f32 %v1749, %v1876
    %v1878 = vrot.slane %v1877, 2
    %v1879 = vadd.f32 %v1877, %v1878
    %v1880 = vrot.slane %v1879, 1
    %v1881 = vadd.f32 %v1879, %v1880
    %v1882 = vrot.slane %v1750, 4
    %v1883 = vadd.f32 %v1750, %v1882
    %v1884 = vrot.slane %v1883, 2
    %v1885 = vadd.f32 %v1883, %v1884
    %v1886 = vrot.slane %v1885, 1
    %v1887 = vadd.f32 %v1885, %v1886
    %v1888 = vrot.slane %v1751, 4
    %v1889 = vadd.f32 %v1751, %v1888
    %v1890 = vrot.slane %v1889, 2
    %v1891 = vadd.f32 %v1889, %v1890
    %v1892 = vrot.slane %v1891, 1
    %v1893 = vadd.f32 %v1891, %v1892
    %v1894 = vrot.slane %v1752, 4
    %v1895 = vadd.f32 %v1752, %v1894
    %v1896 = vrot.slane %v1895, 2
    %v1897 = vadd.f32 %v1895, %v1896
    %v1898 = vrot.slane %v1897, 1
    %v1899 = vadd.f32 %v1897, %v1898
    %v1900 = vrot.slane %v1753, 4
    %v1901 = vadd.f32 %v1753, %v1900
    %v1902 = vrot.slane %v1901, 2
    %v1903 = vadd.f32 %v1901, %v1902
    %v1904 = vrot.slane %v1903, 1
    %v1905 = vadd.f32 %v1903, %v1904
    %v1906 = vrot.slane %v1754, 4
    %v1907 = vadd.f32 %v1754, %v1906
    %v1908 = vrot.slane %v1907, 2
    %v1909 = vadd.f32 %v1907, %v1908
    %v1910 = vrot.slane %v1909, 1
    %v1911 = vadd.f32 %v1909, %v1910
    %v1912 = vrot.slane %v1755, 4
    %v1913 = vadd.f32 %v1755, %v1912
    %v1914 = vrot.slane %v1913, 2
    %v1915 = vadd.f32 %v1913, %v1914
    %v1916 = vrot.slane %v1915, 1
    %v1917 = vadd.f32 %v1915, %v1916
    %v1918 = vrot.slane %v1756, 4
    %v1919 = vadd.f32 %v1756, %v1918
    %v1920 = vrot.slane %v1919, 2
    %v1921 = vadd.f32 %v1919, %v1920
    %v1922 = vrot.slane %v1921, 1
    %v1923 = vadd.f32 %v1921, %v1922
    %v1924 = vrot.slane %v1757, 4
    %v1925 = vadd.f32 %v1757, %v1924
    %v1926 = vrot.slane %v1925, 2
    %v1927 = vadd.f32 %v1925, %v1926
    %v1928 = vrot.slane %v1927, 1
    %v1929 = vadd.f32 %v1927, %v1928
    %v1930 = vrot.slane %v1758, 4
    %v1931 = vadd.f32 %v1758, %v1930
    %v1932 = vrot.slane %v1931, 2
    %v1933 = vadd.f32 %v1931, %v1932
    %v1934 = vrot.slane %v1933, 1
    %v1935 = vadd.f32 %v1933, %v1934
    %v1936 = vrot.slane %v1759, 4
    %v1937 = vadd.f32 %v1759, %v1936
    %v1938 = vrot.slane %v1937, 2
    %v1939 = vadd.f32 %v1937, %v1938
    %v1940 = vrot.slane %v1939, 1
    %v1941 = vadd.f32 %v1939, %v1940
    %v1942 = vrot.slane %v1760, 4
    %v1943 = vadd.f32 %v1760, %v1942
    %v1944 = vrot.slane %v1943, 2
    %v1945 = vadd.f32 %v1943, %v1944
    %v1946 = vrot.slane %v1945, 1
    %v1947 = vadd.f32 %v1945, %v1946
    %v1948 = vrot.slane %v1761, 4
    %v1949 = vadd.f32 %v1761, %v1948
    %v1950 = vrot.slane %v1949, 2
    %v1951 = vadd.f32 %v1949, %v1950
    %v1952 = vrot.slane %v1951, 1
    %v1953 = vadd.f32 %v1951, %v1952
    %vm1986 = vcmask 1041409
    %v1987 = vsel %vm1986, %v285, %v261
    %vm1988 = vcmask 1042434
    %v1989 = vsel %vm1988, %v309, %v1987
    %vm1990 = vcmask 1043459
    %v1991 = vsel %vm1990, %v333, %v1989
    %vm1992 = vcmask 1044484
    %v1993 = vsel %vm1992, %v357, %v1991
    %vm1994 = vcmask 1045509
    %v1995 = vsel %vm1994, %v381, %v1993
    %vm1996 = vcmask 1046534
    %v1997 = vsel %vm1996, %v405, %v1995
    %vm1998 = vcmask 1047559
    %v1999 = vsel %vm1998, %v429, %v1997
    %v2000 = vsel %vm1986, %v291, %v267
    %v2001 = vsel %vm1988, %v315, %v2000
    %v2002 = vsel %vm1990, %v339, %v2001
    %v2003 = vsel %vm1992, %v363, %v2002
    %v2004 = vsel %vm1994, %v387, %v2003
    %v2005 = vsel %vm1996, %v411, %v2004
    %v2006 = vsel %vm1998, %v435, %v2005
    %v2007 = vsel %vm1986, %v297, %v273
    %v2008 = vsel %vm1988, %v321, %v2007
    %v2009 = vsel %vm1990, %v345, %v2008
    %v2010 = vsel %vm1992, %v369, %v2009
    %v2011 = vsel %vm1994, %v393, %v2010
    %v2012 = vsel %vm1996, %v417, %v2011
    %v2013 = vsel %vm1998, %v441, %v2012
    %v2014 = vsel %vm1986, %v303, %v279
    %v2015 = vsel %vm1988, %v327, %v2014
    %v2016 = vsel %vm1990, %v351, %v2015
    %v2017 = vsel %vm1992, %v375, %v2016
    %v2018 = vsel %vm1994, %v399, %v2017
    %v2019 = vsel %vm1996, %v423, %v2018
    %v2020 = vsel %vm1998, %v447, %v2019
    %v2057 = vsel %vm1986, %v926, %v902
    %v2058 = vsel %vm1988, %v950, %v2057
    %v2059 = vsel %vm1990, %v974, %v2058
    %v2060 = vsel %vm1992, %v998, %v2059
    %v2061 = vsel %vm1994, %v1022, %v2060
    %v2062 = vsel %vm1996, %v1046, %v2061
    %v2063 = vsel %vm1998, %v1070, %v2062
    %v2064 = vsel %vm1986, %v932, %v908
    %v2065 = vsel %vm1988, %v956, %v2064
    %v2066 = vsel %vm1990, %v980, %v2065
    %v2067 = vsel %vm1992, %v1004, %v2066
    %v2068 = vsel %vm1994, %v1028, %v2067
    %v2069 = vsel %vm1996, %v1052, %v2068
    %v2070 = vsel %vm1998, %v1076, %v2069
    %v2071 = vsel %vm1986, %v938, %v914
    %v2072 = vsel %vm1988, %v962, %v2071
    %v2073 = vsel %vm1990, %v986, %v2072
    %v2074 = vsel %vm1992, %v1010, %v2073
    %v2075 = vsel %vm1994, %v1034, %v2074
    %v2076 = vsel %vm1996, %v1058, %v2075
    %v2077 = vsel %vm1998, %v1082, %v2076
    %v2078 = vsel %vm1986, %v944, %v920
    %v2079 = vsel %vm1988, %v968, %v2078
    %v2080 = vsel %vm1990, %v992, %v2079
    %v2081 = vsel %vm1992, %v1016, %v2080
    %v2082 = vsel %vm1994, %v1040, %v2081
    %v2083 = vsel %vm1996, %v1064, %v2082
    %v2084 = vsel %vm1998, %v1088, %v2083
    %v2121 = vsel %vm1986, %v1567, %v1543
    %v2122 = vsel %vm1988, %v1591, %v2121
    %v2123 = vsel %vm1990, %v1615, %v2122
    %v2124 = vsel %vm1992, %v1639, %v2123
    %v2125 = vsel %vm1994, %v1663, %v2124
    %v2126 = vsel %vm1996, %v1687, %v2125
    %v2127 = vsel %vm1998, %v1711, %v2126
    %v2128 = vsel %vm1986, %v1573, %v1549
    %v2129 = vsel %vm1988, %v1597, %v2128
    %v2130 = vsel %vm1990, %v1621, %v2129
    %v2131 = vsel %vm1992, %v1645, %v2130
    %v2132 = vsel %vm1994, %v1669, %v2131
    %v2133 = vsel %vm1996, %v1693, %v2132
    %v2134 = vsel %vm1998, %v1717, %v2133
    %v2135 = vsel %vm1986, %v1579, %v1555
    %v2136 = vsel %vm1988, %v1603, %v2135
    %v2137 = vsel %vm1990, %v1627, %v2136
    %v2138 = vsel %vm1992, %v1651, %v2137
    %v2139 = vsel %vm1994, %v1675, %v2138
    %v2140 = vsel %vm1996, %v1699, %v2139
    %v2141 = vsel %vm1998, %v1723, %v2140
    %v2142 = vsel %vm1986, %v1585, %v1561
    %v2143 = vsel %vm1988, %v1609, %v2142
    %v2144 = vsel %vm1990, %v1633, %v2143
    %v2145 = vsel %vm1992, %v1657, %v2144
    %v2146 = vsel %vm1994, %v1681, %v2145
    %v2147 = vsel %vm1996, %v1705, %v2146
    %v2148 = vsel %vm1998, %v1729, %v2147
    %v2185 = vsel %vm1986, %v509, %v485
    %v2186 = vsel %vm1988, %v533, %v2185
    %v2187 = vsel %vm1990, %v557, %v2186
    %v2188 = vsel %vm1992, %v581, %v2187
    %v2189 = vsel %vm1994, %v605, %v2188
    %v2190 = vsel %vm1996, %v629, %v2189
    %v2191 = vsel %vm1998, %v653, %v2190
    %v2192 = vsel %vm1986, %v515, %v491
    %v2193 = vsel %vm1988, %v539, %v2192
    %v2194 = vsel %vm1990, %v563, %v2193
    %v2195 = vsel %vm1992, %v587, %v2194
    %v2196 = vsel %vm1994, %v611, %v2195
    %v2197 = vsel %vm1996, %v635, %v2196
    %v2198 = vsel %vm1998, %v659, %v2197
    %v2199 = vsel %vm1986, %v521, %v497
    %v2200 = vsel %vm1988, %v545, %v2199
    %v2201 = vsel %vm1990, %v569, %v2200
    %v2202 = vsel %vm1992, %v593, %v2201
    %v2203 = vsel %vm1994, %v617, %v2202
    %v2204 = vsel %vm1996, %v641, %v2203
    %v2205 = vsel %vm1998, %v665, %v2204
    %v2206 = vsel %vm1986, %v527, %v503
    %v2207 = vsel %vm1988, %v551, %v2206
    %v2208 = vsel %vm1990, %v575, %v2207
    %v2209 = vsel %vm1992, %v599, %v2208
    %v2210 = vsel %vm1994, %v623, %v2209
    %v2211 = vsel %vm1996, %v647, %v2210
    %v2212 = vsel %vm1998, %v671, %v2211
    %v2249 = vsel %vm1986, %v1150, %v1126
    %v2250 = vsel %vm1988, %v1174, %v2249
    %v2251 = vsel %vm1990, %v1198, %v2250
    %v2252 = vsel %vm1992, %v1222, %v2251
    %v2253 = vsel %vm1994, %v1246, %v2252
    %v2254 = vsel %vm1996, %v1270, %v2253
    %v2255 = vsel %vm1998, %v1294, %v2254
    %v2256 = vsel %vm1986, %v1156, %v1132
    %v2257 = vsel %vm1988, %v1180, %v2256
    %v2258 = vsel %vm1990, %v1204, %v2257
    %v2259 = vsel %vm1992, %v1228, %v2258
    %v2260 = vsel %vm1994, %v1252, %v2259
    %v2261 = vsel %vm1996, %v1276, %v2260
    %v2262 = vsel %vm1998, %v1300, %v2261
    %v2263 = vsel %vm1986, %v1162, %v1138
    %v2264 = vsel %vm1988, %v1186, %v2263
    %v2265 = vsel %vm1990, %v1210, %v2264
    %v2266 = vsel %vm1992, %v1234, %v2265
    %v2267 = vsel %vm1994, %v1258, %v2266
    %v2268 = vsel %vm1996, %v1282, %v2267
    %v2269 = vsel %vm1998, %v1306, %v2268
    %v2270 = vsel %vm1986, %v1168, %v1144
    %v2271 = vsel %vm1988, %v1192, %v2270
    %v2272 = vsel %vm1990, %v1216, %v2271
    %v2273 = vsel %vm1992, %v1240, %v2272
    %v2274 = vsel %vm1994, %v1264, %v2273
    %v2275 = vsel %vm1996, %v1288, %v2274
    %v2276 = vsel %vm1998, %v1312, %v2275
    %v2313 = vsel %vm1986, %v1791, %v1767
    %v2314 = vsel %vm1988, %v1815, %v2313
    %v2315 = vsel %vm1990, %v1839, %v2314
    %v2316 = vsel %vm1992, %v1863, %v2315
    %v2317 = vsel %vm1994, %v1887, %v2316
    %v2318 = vsel %vm1996, %v1911, %v2317
    %v2319 = vsel %vm1998, %v1935, %v2318
    %v2320 = vsel %vm1986, %v1797, %v1773
    %v2321 = vsel %vm1988, %v1821, %v2320
    %v2322 = vsel %vm1990, %v1845, %v2321
    %v2323 = vsel %vm1992, %v1869, %v2322
    %v2324 = vsel %vm1994, %v1893, %v2323
    %v2325 = vsel %vm1996, %v1917, %v2324
    %v2326 = vsel %vm1998, %v1941, %v2325
    %v2327 = vsel %vm1986, %v1803, %v1779
    %v2328 = vsel %vm1988, %v1827, %v2327
    %v2329 = vsel %vm1990, %v1851, %v2328
    %v2330 = vsel %vm1992, %v1875, %v2329
    %v2331 = vsel %vm1994, %v1899, %v2330
    %v2332 = vsel %vm1996, %v1923, %v2331
    %v2333 = vsel %vm1998, %v1947, %v2332
    %v2334 = vsel %vm1986, %v1809, %v1785
    %v2335 = vsel %vm1988, %v1833, %v2334
    %v2336 = vsel %vm1990, %v1857, %v2335
    %v2337 = vsel %vm1992, %v1881, %v2336
    %v2338 = vsel %vm1994, %v1905, %v2337
    %v2339 = vsel %vm1996, %v1929, %v2338
    %v2340 = vsel %vm1998, %v1953, %v2339
    %v2345 = vld [vmem:[%s2] sm:$0xff]
    %v2346 = vld [vmem:[%s2 + $0x8] sm:$0xff]
    %v2347 = vld [vmem:[%s2 + $0x10] sm:$0xff]
    %v2348 = vld [vmem:[%s2 + $0x18] sm:$0xff]
    %v2349 = vld [vmem:[%s2 + $0x20] sm:$0xff]
    %v2350 = vld [vmem:[%s2 + $0x28] sm:$0xff]
    %v2351 = vld [vmem:[%s2 + $0x30] sm:$0xff]
    %v2352 = vld [vmem:[%s2 + $0x38] sm:$0xff]
    %v2353 = vld [vmem:[%s2 + $0x40] sm:$0xff]
    %v2354 = vld [vmem:[%s2 + $0x48] sm:$0xff]
    %v2355 = vld [vmem:[%s2 + $0x50] sm:$0xff]
    %v2356 = vld [vmem:[%s2 + $0x58] sm:$0xff]
    %v2357 = vld [vmem:[%s2 + $0x60] sm:$0xff]
    %v2358 = vld [vmem:[%s2 + $0x68] sm:$0xff]
    %v2359 = vld [vmem:[%s2 + $0x70] sm:$0xff]
    %v2360 = vld [vmem:[%s2 + $0x78] sm:$0xff]
    %v2361 = vld [vmem:[%s2 + $0x80] sm:$0xff]
    %v2362 = vld [vmem:[%s2 + $0x88] sm:$0xff]
    %v2363 = vld [vmem:[%s2 + $0x90] sm:$0xff]
    %v2364 = vld [vmem:[%s2 + $0x98] sm:$0xff]
    %v2365 = vld [vmem:[%s2 + $0xa0] sm:$0xff]
    %v2366 = vld [vmem:[%s2 + $0xa8] sm:$0xff]
    %v2367 = vld [vmem:[%s2 + $0xb0] sm:$0xff]
    %v2368 = vld [vmem:[%s2 + $0xb8] sm:$0xff]
    %v2369 = vld [vmem:[%s2 + $0xc0] sm:$0xff]
    %v2370 = vld [vmem:[%s2 + $0xc8] sm:$0xff]
    %v2371 = vld [vmem:[%s2 + $0xd0] sm:$0xff]
    %v2372 = vld [vmem:[%s2 + $0xd8] sm:$0xff]
    %v2373 = vld [vmem:[%s2 + $0xe0] sm:$0xff]
    %v2374 = vld [vmem:[%s2 + $0xe8] sm:$0xff]
    %v2375 = vld [vmem:[%s2 + $0xf0] sm:$0xff]
    %v2376 = vld [vmem:[%s2 + $0xf8] sm:$0xff]
    %v2377 = vld [vmem:[%s2 + $0x100] sm:$0xff]
    %v2378 = vld [vmem:[%s2 + $0x108] sm:$0xff]
    %v2379 = vld [vmem:[%s2 + $0x110] sm:$0xff]
    %v2380 = vld [vmem:[%s2 + $0x118] sm:$0xff]
    %v2381 = vld [vmem:[%s2 + $0x120] sm:$0xff]
    %v2382 = vld [vmem:[%s2 + $0x128] sm:$0xff]
    %v2383 = vld [vmem:[%s2 + $0x130] sm:$0xff]
    %v2384 = vld [vmem:[%s2 + $0x138] sm:$0xff]
    %v2385 = vld [vmem:[%s2 + $0x140] sm:$0xff]
    %v2386 = vld [vmem:[%s2 + $0x148] sm:$0xff]
    %v2387 = vld [vmem:[%s2 + $0x150] sm:$0xff]
    %v2388 = vld [vmem:[%s2 + $0x158] sm:$0xff]
    %v2389 = vld [vmem:[%s2 + $0x160] sm:$0xff]
    %v2390 = vld [vmem:[%s2 + $0x168] sm:$0xff]
    %v2391 = vld [vmem:[%s2 + $0x170] sm:$0xff]
    %v2392 = vld [vmem:[%s2 + $0x178] sm:$0xff]
    %v2393 = vld [vmem:[%s2 + $0x180] sm:$0xff]
    %v2394 = vld [vmem:[%s2 + $0x188] sm:$0xff]
    %v2395 = vld [vmem:[%s2 + $0x190] sm:$0xff]
    %v2396 = vld [vmem:[%s2 + $0x198] sm:$0xff]
    %v2397 = vld [vmem:[%s2 + $0x1a0] sm:$0xff]
    %v2398 = vld [vmem:[%s2 + $0x1a8] sm:$0xff]
    %v2399 = vld [vmem:[%s2 + $0x1b0] sm:$0xff]
    %v2400 = vld [vmem:[%s2 + $0x1b8] sm:$0xff]
    %v2401 = vld [vmem:[%s2 + $0x1c0] sm:$0xff]
    %v2402 = vld [vmem:[%s2 + $0x1c8] sm:$0xff]
    %v2403 = vld [vmem:[%s2 + $0x1d0] sm:$0xff]
    %v2404 = vld [vmem:[%s2 + $0x1d8] sm:$0xff]
    %v2405 = vld [vmem:[%s2 + $0x1e0] sm:$0xff]
    %v2406 = vld [vmem:[%s2 + $0x1e8] sm:$0xff]
    %v2407 = vld [vmem:[%s2 + $0x1f0] sm:$0xff]
    %v2408 = vld [vmem:[%s2 + $0x1f8] sm:$0xff]
    %v2409 = vld [vmem:[%s3] sm:$0xff]
    %v2410 = vld [vmem:[%s3 + $0x8] sm:$0xff]
    %v2411 = vld [vmem:[%s3 + $0x10] sm:$0xff]
    %v2412 = vld [vmem:[%s3 + $0x18] sm:$0xff]
    %v2413 = vld [vmem:[%s3 + $0x20] sm:$0xff]
    %v2414 = vld [vmem:[%s3 + $0x28] sm:$0xff]
    %v2415 = vld [vmem:[%s3 + $0x30] sm:$0xff]
    %v2416 = vld [vmem:[%s3 + $0x38] sm:$0xff]
    %v2417 = vld [vmem:[%s3 + $0x40] sm:$0xff]
    %v2418 = vld [vmem:[%s3 + $0x48] sm:$0xff]
    %v2419 = vld [vmem:[%s3 + $0x50] sm:$0xff]
    %v2420 = vld [vmem:[%s3 + $0x58] sm:$0xff]
    %v2421 = vld [vmem:[%s3 + $0x60] sm:$0xff]
    %v2422 = vld [vmem:[%s3 + $0x68] sm:$0xff]
    %v2423 = vld [vmem:[%s3 + $0x70] sm:$0xff]
    %v2424 = vld [vmem:[%s3 + $0x78] sm:$0xff]
    %v2425 = vld [vmem:[%s3 + $0x80] sm:$0xff]
    %v2426 = vld [vmem:[%s3 + $0x88] sm:$0xff]
    %v2427 = vld [vmem:[%s3 + $0x90] sm:$0xff]
    %v2428 = vld [vmem:[%s3 + $0x98] sm:$0xff]
    %v2429 = vld [vmem:[%s3 + $0xa0] sm:$0xff]
    %v2430 = vld [vmem:[%s3 + $0xa8] sm:$0xff]
    %v2431 = vld [vmem:[%s3 + $0xb0] sm:$0xff]
    %v2432 = vld [vmem:[%s3 + $0xb8] sm:$0xff]
    %v2433 = vld [vmem:[%s3 + $0xc0] sm:$0xff]
    %v2434 = vld [vmem:[%s3 + $0xc8] sm:$0xff]
    %v2435 = vld [vmem:[%s3 + $0xd0] sm:$0xff]
    %v2436 = vld [vmem:[%s3 + $0xd8] sm:$0xff]
    %v2437 = vld [vmem:[%s3 + $0xe0] sm:$0xff]
    %v2438 = vld [vmem:[%s3 + $0xe8] sm:$0xff]
    %v2439 = vld [vmem:[%s3 + $0xf0] sm:$0xff]
    %v2440 = vld [vmem:[%s3 + $0xf8] sm:$0xff]
    %v2441 = vld [vmem:[%s3 + $0x100] sm:$0xff]
    %v2442 = vld [vmem:[%s3 + $0x108] sm:$0xff]
    %v2443 = vld [vmem:[%s3 + $0x110] sm:$0xff]
    %v2444 = vld [vmem:[%s3 + $0x118] sm:$0xff]
    %v2445 = vld [vmem:[%s3 + $0x120] sm:$0xff]
    %v2446 = vld [vmem:[%s3 + $0x128] sm:$0xff]
    %v2447 = vld [vmem:[%s3 + $0x130] sm:$0xff]
    %v2448 = vld [vmem:[%s3 + $0x138] sm:$0xff]
    %v2449 = vld [vmem:[%s3 + $0x140] sm:$0xff]
    %v2450 = vld [vmem:[%s3 + $0x148] sm:$0xff]
    %v2451 = vld [vmem:[%s3 + $0x150] sm:$0xff]
    %v2452 = vld [vmem:[%s3 + $0x158] sm:$0xff]
    %v2453 = vld [vmem:[%s3 + $0x160] sm:$0xff]
    %v2454 = vld [vmem:[%s3 + $0x168] sm:$0xff]
    %v2455 = vld [vmem:[%s3 + $0x170] sm:$0xff]
    %v2456 = vld [vmem:[%s3 + $0x178] sm:$0xff]
    %v2457 = vld [vmem:[%s3 + $0x180] sm:$0xff]
    %v2458 = vld [vmem:[%s3 + $0x188] sm:$0xff]
    %v2459 = vld [vmem:[%s3 + $0x190] sm:$0xff]
    %v2460 = vld [vmem:[%s3 + $0x198] sm:$0xff]
    %v2461 = vld [vmem:[%s3 + $0x1a0] sm:$0xff]
    %v2462 = vld [vmem:[%s3 + $0x1a8] sm:$0xff]
    %v2463 = vld [vmem:[%s3 + $0x1b0] sm:$0xff]
    %v2464 = vld [vmem:[%s3 + $0x1b8] sm:$0xff]
    %v2465 = vld [vmem:[%s3 + $0x1c0] sm:$0xff]
    %v2466 = vld [vmem:[%s3 + $0x1c8] sm:$0xff]
    %v2467 = vld [vmem:[%s3 + $0x1d0] sm:$0xff]
    %v2468 = vld [vmem:[%s3 + $0x1d8] sm:$0xff]
    %v2469 = vld [vmem:[%s3 + $0x1e0] sm:$0xff]
    %v2470 = vld [vmem:[%s3 + $0x1e8] sm:$0xff]
    %v2471 = vld [vmem:[%s3 + $0x1f0] sm:$0xff]
    %v2472 = vld [vmem:[%s3 + $0x1f8] sm:$0xff]
    %v2473 = vand.u32 %v2424, 4294901760
    %2474 = vmatpush.msra.mxu0 %v2473
    %v2475 = vand.u32 %v2423, 4294901760
    %2476 = vmatpush.msra.mxu0 %v2475
    %v2477 = vand.u32 %v2422, 4294901760
    %2478 = vmatpush.msra.mxu0 %v2477
    %v2479 = vand.u32 %v2421, 4294901760
    %2480 = vmatpush.msra.mxu0 %v2479
    %v2481 = vand.u32 %v2420, 4294901760
    %2482 = vmatpush.msra.mxu0 %v2481
    %v2483 = vand.u32 %v2419, 4294901760
    %2484 = vmatpush.msra.mxu0 %v2483
    %v2485 = vand.u32 %v2418, 4294901760
    %2486 = vmatpush.msra.mxu0 %v2485
    %v2487 = vand.u32 %v2417, 4294901760
    %2488 = vmatpush.msra.mxu0 %v2487
    %v2489 = vand.u32 %v2416, 4294901760
    %2490 = vmatpush.msra.mxu0 %v2489
    %v2491 = vand.u32 %v2415, 4294901760
    %2492 = vmatpush.msra.mxu0 %v2491
    %v2493 = vand.u32 %v2414, 4294901760
    %2494 = vmatpush.msra.mxu0 %v2493
    %v2495 = vand.u32 %v2413, 4294901760
    %2496 = vmatpush.msra.mxu0 %v2495
    %v2497 = vand.u32 %v2412, 4294901760
    %2498 = vmatpush.msra.mxu0 %v2497
    %v2499 = vand.u32 %v2411, 4294901760
    %2500 = vmatpush.msra.mxu0 %v2499
    %v2501 = vand.u32 %v2410, 4294901760
    %2502 = vmatpush.msra.mxu0 %v2501
    %v2503 = vand.u32 %v2409, 4294901760
    %2504 = vmatpush.msra.mxu0 %v2503
    %v2505 = vand.u32 %v2191, 4294901760
    %v2506 = vsub.f32 %v2191, %v2505
    %v2507 = vand.u32 %v2506, 4294901760
    %v2508 = vsub.f32 %v2506, %v2507
    %v2509 = vand.u32 %v2508, 4294901760
    %2510 = vmatmul.f32.gmra.mxu0 %v2509
    %v2511 = vpop.f32.mrf.mxu0
    %v2512 = vadd.f32 0.0, %v2511
    %v2513 = vand.u32 %v2255, 4294901760
    %v2514 = vsub.f32 %v2255, %v2513
    %v2515 = vand.u32 %v2514, 4294901760
    %v2516 = vsub.f32 %v2514, %v2515
    %v2517 = vand.u32 %v2516, 4294901760
    %2518 = vmatmul.f32.gmra.mxu0 %v2517
    %v2519 = vpop.f32.mrf.mxu0
    %v2520 = vadd.f32 0.0, %v2519
    %v2521 = vand.u32 %v2319, 4294901760
    %v2522 = vsub.f32 %v2319, %v2521
    %v2523 = vand.u32 %v2522, 4294901760
    %v2524 = vsub.f32 %v2522, %v2523
    %v2525 = vand.u32 %v2524, 4294901760
    %2526 = vmatmul.f32.gmra.mxu0 %v2525
    %v2527 = vpop.f32.mrf.mxu0
    %v2528 = vadd.f32 0.0, %v2527
    %2529 = vdwg.mxu0
    %v2530 = vand.u32 %v2424, 4294901760
    %v2531 = vsub.f32 %v2424, %v2530
    %v2532 = vand.u32 %v2531, 4294901760
    %v2533 = vsub.f32 %v2531, %v2532
    %v2534 = vand.u32 %v2533, 4294901760
    %2535 = vmatpush.msra.mxu0 %v2534
    %v2536 = vand.u32 %v2423, 4294901760
    %v2537 = vsub.f32 %v2423, %v2536
    %v2538 = vand.u32 %v2537, 4294901760
    %v2539 = vsub.f32 %v2537, %v2538
    %v2540 = vand.u32 %v2539, 4294901760
    %2541 = vmatpush.msra.mxu0 %v2540
    %v2542 = vand.u32 %v2422, 4294901760
    %v2543 = vsub.f32 %v2422, %v2542
    %v2544 = vand.u32 %v2543, 4294901760
    %v2545 = vsub.f32 %v2543, %v2544
    %v2546 = vand.u32 %v2545, 4294901760
    %2547 = vmatpush.msra.mxu0 %v2546
    %v2548 = vand.u32 %v2421, 4294901760
    %v2549 = vsub.f32 %v2421, %v2548
    %v2550 = vand.u32 %v2549, 4294901760
    %v2551 = vsub.f32 %v2549, %v2550
    %v2552 = vand.u32 %v2551, 4294901760
    %2553 = vmatpush.msra.mxu0 %v2552
    %v2554 = vand.u32 %v2420, 4294901760
    %v2555 = vsub.f32 %v2420, %v2554
    %v2556 = vand.u32 %v2555, 4294901760
    %v2557 = vsub.f32 %v2555, %v2556
    %v2558 = vand.u32 %v2557, 4294901760
    %2559 = vmatpush.msra.mxu0 %v2558
    %v2560 = vand.u32 %v2419, 4294901760
    %v2561 = vsub.f32 %v2419, %v2560
    %v2562 = vand.u32 %v2561, 4294901760
    %v2563 = vsub.f32 %v2561, %v2562
    %v2564 = vand.u32 %v2563, 4294901760
    %2565 = vmatpush.msra.mxu0 %v2564
    %v2566 = vand.u32 %v2418, 4294901760
    %v2567 = vsub.f32 %v2418, %v2566
    %v2568 = vand.u32 %v2567, 4294901760
    %v2569 = vsub.f32 %v2567, %v2568
    %v2570 = vand.u32 %v2569, 4294901760
    %2571 = vmatpush.msra.mxu0 %v2570
    %v2572 = vand.u32 %v2417, 4294901760
    %v2573 = vsub.f32 %v2417, %v2572
    %v2574 = vand.u32 %v2573, 4294901760
    %v2575 = vsub.f32 %v2573, %v2574
    %v2576 = vand.u32 %v2575, 4294901760
    %2577 = vmatpush.msra.mxu0 %v2576
    %v2578 = vand.u32 %v2416, 4294901760
    %v2579 = vsub.f32 %v2416, %v2578
    %v2580 = vand.u32 %v2579, 4294901760
    %v2581 = vsub.f32 %v2579, %v2580
    %v2582 = vand.u32 %v2581, 4294901760
    %2583 = vmatpush.msra.mxu0 %v2582
    %v2584 = vand.u32 %v2415, 4294901760
    %v2585 = vsub.f32 %v2415, %v2584
    %v2586 = vand.u32 %v2585, 4294901760
    %v2587 = vsub.f32 %v2585, %v2586
    %v2588 = vand.u32 %v2587, 4294901760
    %2589 = vmatpush.msra.mxu0 %v2588
    %v2590 = vand.u32 %v2414, 4294901760
    %v2591 = vsub.f32 %v2414, %v2590
    %v2592 = vand.u32 %v2591, 4294901760
    %v2593 = vsub.f32 %v2591, %v2592
    %v2594 = vand.u32 %v2593, 4294901760
    %2595 = vmatpush.msra.mxu0 %v2594
    %v2596 = vand.u32 %v2413, 4294901760
    %v2597 = vsub.f32 %v2413, %v2596
    %v2598 = vand.u32 %v2597, 4294901760
    %v2599 = vsub.f32 %v2597, %v2598
    %v2600 = vand.u32 %v2599, 4294901760
    %2601 = vmatpush.msra.mxu0 %v2600
    %v2602 = vand.u32 %v2412, 4294901760
    %v2603 = vsub.f32 %v2412, %v2602
    %v2604 = vand.u32 %v2603, 4294901760
    %v2605 = vsub.f32 %v2603, %v2604
    %v2606 = vand.u32 %v2605, 4294901760
    %2607 = vmatpush.msra.mxu0 %v2606
    %v2608 = vand.u32 %v2411, 4294901760
    %v2609 = vsub.f32 %v2411, %v2608
    %v2610 = vand.u32 %v2609, 4294901760
    %v2611 = vsub.f32 %v2609, %v2610
    %v2612 = vand.u32 %v2611, 4294901760
    %2613 = vmatpush.msra.mxu0 %v2612
    %v2614 = vand.u32 %v2410, 4294901760
    %v2615 = vsub.f32 %v2410, %v2614
    %v2616 = vand.u32 %v2615, 4294901760
    %v2617 = vsub.f32 %v2615, %v2616
    %v2618 = vand.u32 %v2617, 4294901760
    %2619 = vmatpush.msra.mxu0 %v2618
    %v2620 = vand.u32 %v2409, 4294901760
    %v2621 = vsub.f32 %v2409, %v2620
    %v2622 = vand.u32 %v2621, 4294901760
    %v2623 = vsub.f32 %v2621, %v2622
    %v2624 = vand.u32 %v2623, 4294901760
    %2625 = vmatpush.msra.mxu0 %v2624
    %v2626 = vand.u32 %v2191, 4294901760
    %2627 = vmatmul.f32.gmra.mxu0 %v2626
    %v2628 = vpop.f32.mrf.mxu0
    %v2629 = vadd.f32 %v2512, %v2628
    %v2630 = vand.u32 %v2255, 4294901760
    %2631 = vmatmul.f32.gmra.mxu0 %v2630
    %v2632 = vpop.f32.mrf.mxu0
    %v2633 = vadd.f32 %v2520, %v2632
    %v2634 = vand.u32 %v2319, 4294901760
    %2635 = vmatmul.f32.gmra.mxu0 %v2634
    %v2636 = vpop.f32.mrf.mxu0
    %v2637 = vadd.f32 %v2528, %v2636
    %2638 = vdwg.mxu0
    %v2639 = vand.u32 %v2424, 4294901760
    %v2640 = vsub.f32 %v2424, %v2639
    %2641 = vmatpush.msra.mxu0 %v2640
    %v2642 = vand.u32 %v2423, 4294901760
    %v2643 = vsub.f32 %v2423, %v2642
    %2644 = vmatpush.msra.mxu0 %v2643
    %v2645 = vand.u32 %v2422, 4294901760
    %v2646 = vsub.f32 %v2422, %v2645
    %2647 = vmatpush.msra.mxu0 %v2646
    %v2648 = vand.u32 %v2421, 4294901760
    %v2649 = vsub.f32 %v2421, %v2648
    %2650 = vmatpush.msra.mxu0 %v2649
    %v2651 = vand.u32 %v2420, 4294901760
    %v2652 = vsub.f32 %v2420, %v2651
    %2653 = vmatpush.msra.mxu0 %v2652
    %v2654 = vand.u32 %v2419, 4294901760
    %v2655 = vsub.f32 %v2419, %v2654
    %2656 = vmatpush.msra.mxu0 %v2655
    %v2657 = vand.u32 %v2418, 4294901760
    %v2658 = vsub.f32 %v2418, %v2657
    %2659 = vmatpush.msra.mxu0 %v2658
    %v2660 = vand.u32 %v2417, 4294901760
    %v2661 = vsub.f32 %v2417, %v2660
    %2662 = vmatpush.msra.mxu0 %v2661
    %v2663 = vand.u32 %v2416, 4294901760
    %v2664 = vsub.f32 %v2416, %v2663
    %2665 = vmatpush.msra.mxu0 %v2664
    %v2666 = vand.u32 %v2415, 4294901760
    %v2667 = vsub.f32 %v2415, %v2666
    %2668 = vmatpush.msra.mxu0 %v2667
    %v2669 = vand.u32 %v2414, 4294901760
    %v2670 = vsub.f32 %v2414, %v2669
    %2671 = vmatpush.msra.mxu0 %v2670
    %v2672 = vand.u32 %v2413, 4294901760
    %v2673 = vsub.f32 %v2413, %v2672
    %2674 = vmatpush.msra.mxu0 %v2673
    %v2675 = vand.u32 %v2412, 4294901760
    %v2676 = vsub.f32 %v2412, %v2675
    %2677 = vmatpush.msra.mxu0 %v2676
    %v2678 = vand.u32 %v2411, 4294901760
    %v2679 = vsub.f32 %v2411, %v2678
    %2680 = vmatpush.msra.mxu0 %v2679
    %v2681 = vand.u32 %v2410, 4294901760
    %v2682 = vsub.f32 %v2410, %v2681
    %2683 = vmatpush.msra.mxu0 %v2682
    %v2684 = vand.u32 %v2409, 4294901760
    %v2685 = vsub.f32 %v2409, %v2684
    %2686 = vmatpush.msra.mxu0 %v2685
    %v2687 = vand.u32 %v2191, 4294901760
    %v2688 = vsub.f32 %v2191, %v2687
    %2689 = vmatmul.f32.gmra.mxu0 %v2688
    %v2690 = vpop.f32.mrf.mxu0
    %v2691 = vadd.f32 %v2629, %v2690
    %v2692 = vand.u32 %v2255, 4294901760
    %v2693 = vsub.f32 %v2255, %v2692
    %2694 = vmatmul.f32.gmra.mxu0 %v2693
    %v2695 = vpop.f32.mrf.mxu0
    %v2696 = vadd.f32 %v2633, %v2695
    %v2697 = vand.u32 %v2319, 4294901760
    %v2698 = vsub.f32 %v2319, %v2697
    %2699 = vmatmul.f32.gmra.mxu0 %v2698
    %v2700 = vpop.f32.mrf.mxu0
    %v2701 = vadd.f32 %v2637, %v2700
    %2702 = vdwg.mxu0
    %v2703 = vand.u32 %v2424, 4294901760
    %2704 = vmatpush.msra.mxu0 %v2703
    %v2705 = vand.u32 %v2423, 4294901760
    %2706 = vmatpush.msra.mxu0 %v2705
    %v2707 = vand.u32 %v2422, 4294901760
    %2708 = vmatpush.msra.mxu0 %v2707
    %v2709 = vand.u32 %v2421, 4294901760
    %2710 = vmatpush.msra.mxu0 %v2709
    %v2711 = vand.u32 %v2420, 4294901760
    %2712 = vmatpush.msra.mxu0 %v2711
    %v2713 = vand.u32 %v2419, 4294901760
    %2714 = vmatpush.msra.mxu0 %v2713
    %v2715 = vand.u32 %v2418, 4294901760
    %2716 = vmatpush.msra.mxu0 %v2715
    %v2717 = vand.u32 %v2417, 4294901760
    %2718 = vmatpush.msra.mxu0 %v2717
    %v2719 = vand.u32 %v2416, 4294901760
    %2720 = vmatpush.msra.mxu0 %v2719
    %v2721 = vand.u32 %v2415, 4294901760
    %2722 = vmatpush.msra.mxu0 %v2721
    %v2723 = vand.u32 %v2414, 4294901760
    %2724 = vmatpush.msra.mxu0 %v2723
    %v2725 = vand.u32 %v2413, 4294901760
    %2726 = vmatpush.msra.mxu0 %v2725
    %v2727 = vand.u32 %v2412, 4294901760
    %2728 = vmatpush.msra.mxu0 %v2727
    %v2729 = vand.u32 %v2411, 4294901760
    %2730 = vmatpush.msra.mxu0 %v2729
    %v2731 = vand.u32 %v2410, 4294901760
    %2732 = vmatpush.msra.mxu0 %v2731
    %v2733 = vand.u32 %v2409, 4294901760
    %2734 = vmatpush.msra.mxu0 %v2733
    %v2735 = vand.u32 %v2191, 4294901760
    %v2736 = vsub.f32 %v2191, %v2735
    %v2737 = vand.u32 %v2736, 4294901760
    %2738 = vmatmul.f32.gmra.mxu0 %v2737
    %v2739 = vpop.f32.mrf.mxu0
    %v2740 = vadd.f32 %v2691, %v2739
    %v2741 = vand.u32 %v2255, 4294901760
    %v2742 = vsub.f32 %v2255, %v2741
    %v2743 = vand.u32 %v2742, 4294901760
    %2744 = vmatmul.f32.gmra.mxu0 %v2743
    %v2745 = vpop.f32.mrf.mxu0
    %v2746 = vadd.f32 %v2696, %v2745
    %v2747 = vand.u32 %v2319, 4294901760
    %v2748 = vsub.f32 %v2319, %v2747
    %v2749 = vand.u32 %v2748, 4294901760
    %2750 = vmatmul.f32.gmra.mxu0 %v2749
    %v2751 = vpop.f32.mrf.mxu0
    %v2752 = vadd.f32 %v2701, %v2751
    %2753 = vdwg.mxu0
    %v2754 = vand.u32 %v2424, 4294901760
    %v2755 = vsub.f32 %v2424, %v2754
    %v2756 = vand.u32 %v2755, 4294901760
    %2757 = vmatpush.msra.mxu0 %v2756
    %v2758 = vand.u32 %v2423, 4294901760
    %v2759 = vsub.f32 %v2423, %v2758
    %v2760 = vand.u32 %v2759, 4294901760
    %2761 = vmatpush.msra.mxu0 %v2760
    %v2762 = vand.u32 %v2422, 4294901760
    %v2763 = vsub.f32 %v2422, %v2762
    %v2764 = vand.u32 %v2763, 4294901760
    %2765 = vmatpush.msra.mxu0 %v2764
    %v2766 = vand.u32 %v2421, 4294901760
    %v2767 = vsub.f32 %v2421, %v2766
    %v2768 = vand.u32 %v2767, 4294901760
    %2769 = vmatpush.msra.mxu0 %v2768
    %v2770 = vand.u32 %v2420, 4294901760
    %v2771 = vsub.f32 %v2420, %v2770
    %v2772 = vand.u32 %v2771, 4294901760
    %2773 = vmatpush.msra.mxu0 %v2772
    %v2774 = vand.u32 %v2419, 4294901760
    %v2775 = vsub.f32 %v2419, %v2774
    %v2776 = vand.u32 %v2775, 4294901760
    %2777 = vmatpush.msra.mxu0 %v2776
    %v2778 = vand.u32 %v2418, 4294901760
    %v2779 = vsub.f32 %v2418, %v2778
    %v2780 = vand.u32 %v2779, 4294901760
    %2781 = vmatpush.msra.mxu0 %v2780
    %v2782 = vand.u32 %v2417, 4294901760
    %v2783 = vsub.f32 %v2417, %v2782
    %v2784 = vand.u32 %v2783, 4294901760
    %2785 = vmatpush.msra.mxu0 %v2784
    %v2786 = vand.u32 %v2416, 4294901760
    %v2787 = vsub.f32 %v2416, %v2786
    %v2788 = vand.u32 %v2787, 4294901760
    %2789 = vmatpush.msra.mxu0 %v2788
    %v2790 = vand.u32 %v2415, 4294901760
    %v2791 = vsub.f32 %v2415, %v2790
    %v2792 = vand.u32 %v2791, 4294901760
    %2793 = vmatpush.msra.mxu0 %v2792
    %v2794 = vand.u32 %v2414, 4294901760
    %v2795 = vsub.f32 %v2414, %v2794
    %v2796 = vand.u32 %v2795, 4294901760
    %2797 = vmatpush.msra.mxu0 %v2796
    %v2798 = vand.u32 %v2413, 4294901760
    %v2799 = vsub.f32 %v2413, %v2798
    %v2800 = vand.u32 %v2799, 4294901760
    %2801 = vmatpush.msra.mxu0 %v2800
    %v2802 = vand.u32 %v2412, 4294901760
    %v2803 = vsub.f32 %v2412, %v2802
    %v2804 = vand.u32 %v2803, 4294901760
    %2805 = vmatpush.msra.mxu0 %v2804
    %v2806 = vand.u32 %v2411, 4294901760
    %v2807 = vsub.f32 %v2411, %v2806
    %v2808 = vand.u32 %v2807, 4294901760
    %2809 = vmatpush.msra.mxu0 %v2808
    %v2810 = vand.u32 %v2410, 4294901760
    %v2811 = vsub.f32 %v2410, %v2810
    %v2812 = vand.u32 %v2811, 4294901760
    %2813 = vmatpush.msra.mxu0 %v2812
    %v2814 = vand.u32 %v2409, 4294901760
    %v2815 = vsub.f32 %v2409, %v2814
    %v2816 = vand.u32 %v2815, 4294901760
    %2817 = vmatpush.msra.mxu0 %v2816
    %v2818 = vand.u32 %v2191, 4294901760
    %2819 = vmatmul.f32.gmra.mxu0 %v2818
    %v2820 = vpop.f32.mrf.mxu0
    %v2821 = vadd.f32 %v2740, %v2820
    %v2822 = vand.u32 %v2255, 4294901760
    %2823 = vmatmul.f32.gmra.mxu0 %v2822
    %v2824 = vpop.f32.mrf.mxu0
    %v2825 = vadd.f32 %v2746, %v2824
    %v2826 = vand.u32 %v2319, 4294901760
    %2827 = vmatmul.f32.gmra.mxu0 %v2826
    %v2828 = vpop.f32.mrf.mxu0
    %v2829 = vadd.f32 %v2752, %v2828
    %2830 = vdwg.mxu0
    %v2831 = vand.u32 %v2424, 4294901760
    %2832 = vmatpush.msra.mxu0 %v2831
    %v2833 = vand.u32 %v2423, 4294901760
    %2834 = vmatpush.msra.mxu0 %v2833
    %v2835 = vand.u32 %v2422, 4294901760
    %2836 = vmatpush.msra.mxu0 %v2835
    %v2837 = vand.u32 %v2421, 4294901760
    %2838 = vmatpush.msra.mxu0 %v2837
    %v2839 = vand.u32 %v2420, 4294901760
    %2840 = vmatpush.msra.mxu0 %v2839
    %v2841 = vand.u32 %v2419, 4294901760
    %2842 = vmatpush.msra.mxu0 %v2841
    %v2843 = vand.u32 %v2418, 4294901760
    %2844 = vmatpush.msra.mxu0 %v2843
    %v2845 = vand.u32 %v2417, 4294901760
    %2846 = vmatpush.msra.mxu0 %v2845
    %v2847 = vand.u32 %v2416, 4294901760
    %2848 = vmatpush.msra.mxu0 %v2847
    %v2849 = vand.u32 %v2415, 4294901760
    %2850 = vmatpush.msra.mxu0 %v2849
    %v2851 = vand.u32 %v2414, 4294901760
    %2852 = vmatpush.msra.mxu0 %v2851
    %v2853 = vand.u32 %v2413, 4294901760
    %2854 = vmatpush.msra.mxu0 %v2853
    %v2855 = vand.u32 %v2412, 4294901760
    %2856 = vmatpush.msra.mxu0 %v2855
    %v2857 = vand.u32 %v2411, 4294901760
    %2858 = vmatpush.msra.mxu0 %v2857
    %v2859 = vand.u32 %v2410, 4294901760
    %2860 = vmatpush.msra.mxu0 %v2859
    %v2861 = vand.u32 %v2409, 4294901760
    %2862 = vmatpush.msra.mxu0 %v2861
    %v2863 = vand.u32 %v2191, 4294901760
    %2864 = vmatmul.f32.gmra.mxu0 %v2863
    %v2865 = vpop.f32.mrf.mxu0
    %v2866 = vadd.f32 %v2821, %v2865
    %v2867 = vand.u32 %v2255, 4294901760
    %2868 = vmatmul.f32.gmra.mxu0 %v2867
    %v2869 = vpop.f32.mrf.mxu0
    %v2870 = vadd.f32 %v2825, %v2869
    %v2871 = vand.u32 %v2319, 4294901760
    %2872 = vmatmul.f32.gmra.mxu0 %v2871
    %v2873 = vpop.f32.mrf.mxu0
    %v2874 = vadd.f32 %v2829, %v2873
    %2875 = vdwg.mxu0
    %v2876 = vand.u32 %v2440, 4294901760
    %2877 = vmatpush.msra.mxu0 %v2876
    %v2878 = vand.u32 %v2439, 4294901760
    %2879 = vmatpush.msra.mxu0 %v2878
    %v2880 = vand.u32 %v2438, 4294901760
    %2881 = vmatpush.msra.mxu0 %v2880
    %v2882 = vand.u32 %v2437, 4294901760
    %2883 = vmatpush.msra.mxu0 %v2882
    %v2884 = vand.u32 %v2436, 4294901760
    %2885 = vmatpush.msra.mxu0 %v2884
    %v2886 = vand.u32 %v2435, 4294901760
    %2887 = vmatpush.msra.mxu0 %v2886
    %v2888 = vand.u32 %v2434, 4294901760
    %2889 = vmatpush.msra.mxu0 %v2888
    %v2890 = vand.u32 %v2433, 4294901760
    %2891 = vmatpush.msra.mxu0 %v2890
    %v2892 = vand.u32 %v2432, 4294901760
    %2893 = vmatpush.msra.mxu0 %v2892
    %v2894 = vand.u32 %v2431, 4294901760
    %2895 = vmatpush.msra.mxu0 %v2894
    %v2896 = vand.u32 %v2430, 4294901760
    %2897 = vmatpush.msra.mxu0 %v2896
    %v2898 = vand.u32 %v2429, 4294901760
    %2899 = vmatpush.msra.mxu0 %v2898
    %v2900 = vand.u32 %v2428, 4294901760
    %2901 = vmatpush.msra.mxu0 %v2900
    %v2902 = vand.u32 %v2427, 4294901760
    %2903 = vmatpush.msra.mxu0 %v2902
    %v2904 = vand.u32 %v2426, 4294901760
    %2905 = vmatpush.msra.mxu0 %v2904
    %v2906 = vand.u32 %v2425, 4294901760
    %2907 = vmatpush.msra.mxu0 %v2906
    %v2908 = vand.u32 %v2198, 4294901760
    %v2909 = vsub.f32 %v2198, %v2908
    %v2910 = vand.u32 %v2909, 4294901760
    %v2911 = vsub.f32 %v2909, %v2910
    %v2912 = vand.u32 %v2911, 4294901760
    %2913 = vmatmul.f32.gmra.mxu0 %v2912
    %v2914 = vpop.f32.mrf.mxu0
    %v2915 = vadd.f32 %v2866, %v2914
    %v2916 = vand.u32 %v2262, 4294901760
    %v2917 = vsub.f32 %v2262, %v2916
    %v2918 = vand.u32 %v2917, 4294901760
    %v2919 = vsub.f32 %v2917, %v2918
    %v2920 = vand.u32 %v2919, 4294901760
    %2921 = vmatmul.f32.gmra.mxu0 %v2920
    %v2922 = vpop.f32.mrf.mxu0
    %v2923 = vadd.f32 %v2870, %v2922
    %v2924 = vand.u32 %v2326, 4294901760
    %v2925 = vsub.f32 %v2326, %v2924
    %v2926 = vand.u32 %v2925, 4294901760
    %v2927 = vsub.f32 %v2925, %v2926
    %v2928 = vand.u32 %v2927, 4294901760
    %2929 = vmatmul.f32.gmra.mxu0 %v2928
    %v2930 = vpop.f32.mrf.mxu0
    %v2931 = vadd.f32 %v2874, %v2930
    %2932 = vdwg.mxu0
    %v2933 = vand.u32 %v2440, 4294901760
    %v2934 = vsub.f32 %v2440, %v2933
    %v2935 = vand.u32 %v2934, 4294901760
    %v2936 = vsub.f32 %v2934, %v2935
    %v2937 = vand.u32 %v2936, 4294901760
    %2938 = vmatpush.msra.mxu0 %v2937
    %v2939 = vand.u32 %v2439, 4294901760
    %v2940 = vsub.f32 %v2439, %v2939
    %v2941 = vand.u32 %v2940, 4294901760
    %v2942 = vsub.f32 %v2940, %v2941
    %v2943 = vand.u32 %v2942, 4294901760
    %2944 = vmatpush.msra.mxu0 %v2943
    %v2945 = vand.u32 %v2438, 4294901760
    %v2946 = vsub.f32 %v2438, %v2945
    %v2947 = vand.u32 %v2946, 4294901760
    %v2948 = vsub.f32 %v2946, %v2947
    %v2949 = vand.u32 %v2948, 4294901760
    %2950 = vmatpush.msra.mxu0 %v2949
    %v2951 = vand.u32 %v2437, 4294901760
    %v2952 = vsub.f32 %v2437, %v2951
    %v2953 = vand.u32 %v2952, 4294901760
    %v2954 = vsub.f32 %v2952, %v2953
    %v2955 = vand.u32 %v2954, 4294901760
    %2956 = vmatpush.msra.mxu0 %v2955
    %v2957 = vand.u32 %v2436, 4294901760
    %v2958 = vsub.f32 %v2436, %v2957
    %v2959 = vand.u32 %v2958, 4294901760
    %v2960 = vsub.f32 %v2958, %v2959
    %v2961 = vand.u32 %v2960, 4294901760
    %2962 = vmatpush.msra.mxu0 %v2961
    %v2963 = vand.u32 %v2435, 4294901760
    %v2964 = vsub.f32 %v2435, %v2963
    %v2965 = vand.u32 %v2964, 4294901760
    %v2966 = vsub.f32 %v2964, %v2965
    %v2967 = vand.u32 %v2966, 4294901760
    %2968 = vmatpush.msra.mxu0 %v2967
    %v2969 = vand.u32 %v2434, 4294901760
    %v2970 = vsub.f32 %v2434, %v2969
    %v2971 = vand.u32 %v2970, 4294901760
    %v2972 = vsub.f32 %v2970, %v2971
    %v2973 = vand.u32 %v2972, 4294901760
    %2974 = vmatpush.msra.mxu0 %v2973
    %v2975 = vand.u32 %v2433, 4294901760
    %v2976 = vsub.f32 %v2433, %v2975
    %v2977 = vand.u32 %v2976, 4294901760
    %v2978 = vsub.f32 %v2976, %v2977
    %v2979 = vand.u32 %v2978, 4294901760
    %2980 = vmatpush.msra.mxu0 %v2979
    %v2981 = vand.u32 %v2432, 4294901760
    %v2982 = vsub.f32 %v2432, %v2981
    %v2983 = vand.u32 %v2982, 4294901760
    %v2984 = vsub.f32 %v2982, %v2983
    %v2985 = vand.u32 %v2984, 4294901760
    %2986 = vmatpush.msra.mxu0 %v2985
    %v2987 = vand.u32 %v2431, 4294901760
    %v2988 = vsub.f32 %v2431, %v2987
    %v2989 = vand.u32 %v2988, 4294901760
    %v2990 = vsub.f32 %v2988, %v2989
    %v2991 = vand.u32 %v2990, 4294901760
    %2992 = vmatpush.msra.mxu0 %v2991
    %v2993 = vand.u32 %v2430, 4294901760
    %v2994 = vsub.f32 %v2430, %v2993
    %v2995 = vand.u32 %v2994, 4294901760
    %v2996 = vsub.f32 %v2994, %v2995
    %v2997 = vand.u32 %v2996, 4294901760
    %2998 = vmatpush.msra.mxu0 %v2997
    %v2999 = vand.u32 %v2429, 4294901760
    %v3000 = vsub.f32 %v2429, %v2999
    %v3001 = vand.u32 %v3000, 4294901760
    %v3002 = vsub.f32 %v3000, %v3001
    %v3003 = vand.u32 %v3002, 4294901760
    %3004 = vmatpush.msra.mxu0 %v3003
    %v3005 = vand.u32 %v2428, 4294901760
    %v3006 = vsub.f32 %v2428, %v3005
    %v3007 = vand.u32 %v3006, 4294901760
    %v3008 = vsub.f32 %v3006, %v3007
    %v3009 = vand.u32 %v3008, 4294901760
    %3010 = vmatpush.msra.mxu0 %v3009
    %v3011 = vand.u32 %v2427, 4294901760
    %v3012 = vsub.f32 %v2427, %v3011
    %v3013 = vand.u32 %v3012, 4294901760
    %v3014 = vsub.f32 %v3012, %v3013
    %v3015 = vand.u32 %v3014, 4294901760
    %3016 = vmatpush.msra.mxu0 %v3015
    %v3017 = vand.u32 %v2426, 4294901760
    %v3018 = vsub.f32 %v2426, %v3017
    %v3019 = vand.u32 %v3018, 4294901760
    %v3020 = vsub.f32 %v3018, %v3019
    %v3021 = vand.u32 %v3020, 4294901760
    %3022 = vmatpush.msra.mxu0 %v3021
    %v3023 = vand.u32 %v2425, 4294901760
    %v3024 = vsub.f32 %v2425, %v3023
    %v3025 = vand.u32 %v3024, 4294901760
    %v3026 = vsub.f32 %v3024, %v3025
    %v3027 = vand.u32 %v3026, 4294901760
    %3028 = vmatpush.msra.mxu0 %v3027
    %v3029 = vand.u32 %v2198, 4294901760
    %3030 = vmatmul.f32.gmra.mxu0 %v3029
    %v3031 = vpop.f32.mrf.mxu0
    %v3032 = vadd.f32 %v2915, %v3031
    %v3033 = vand.u32 %v2262, 4294901760
    %3034 = vmatmul.f32.gmra.mxu0 %v3033
    %v3035 = vpop.f32.mrf.mxu0
    %v3036 = vadd.f32 %v2923, %v3035
    %v3037 = vand.u32 %v2326, 4294901760
    %3038 = vmatmul.f32.gmra.mxu0 %v3037
    %v3039 = vpop.f32.mrf.mxu0
    %v3040 = vadd.f32 %v2931, %v3039
    %3041 = vdwg.mxu0
    %v3042 = vand.u32 %v2440, 4294901760
    %v3043 = vsub.f32 %v2440, %v3042
    %3044 = vmatpush.msra.mxu0 %v3043
    %v3045 = vand.u32 %v2439, 4294901760
    %v3046 = vsub.f32 %v2439, %v3045
    %3047 = vmatpush.msra.mxu0 %v3046
    %v3048 = vand.u32 %v2438, 4294901760
    %v3049 = vsub.f32 %v2438, %v3048
    %3050 = vmatpush.msra.mxu0 %v3049
    %v3051 = vand.u32 %v2437, 4294901760
    %v3052 = vsub.f32 %v2437, %v3051
    %3053 = vmatpush.msra.mxu0 %v3052
    %v3054 = vand.u32 %v2436, 4294901760
    %v3055 = vsub.f32 %v2436, %v3054
    %3056 = vmatpush.msra.mxu0 %v3055
    %v3057 = vand.u32 %v2435, 4294901760
    %v3058 = vsub.f32 %v2435, %v3057
    %3059 = vmatpush.msra.mxu0 %v3058
    %v3060 = vand.u32 %v2434, 4294901760
    %v3061 = vsub.f32 %v2434, %v3060
    %3062 = vmatpush.msra.mxu0 %v3061
    %v3063 = vand.u32 %v2433, 4294901760
    %v3064 = vsub.f32 %v2433, %v3063
    %3065 = vmatpush.msra.mxu0 %v3064
    %v3066 = vand.u32 %v2432, 4294901760
    %v3067 = vsub.f32 %v2432, %v3066
    %3068 = vmatpush.msra.mxu0 %v3067
    %v3069 = vand.u32 %v2431, 4294901760
    %v3070 = vsub.f32 %v2431, %v3069
    %3071 = vmatpush.msra.mxu0 %v3070
    %v3072 = vand.u32 %v2430, 4294901760
    %v3073 = vsub.f32 %v2430, %v3072
    %3074 = vmatpush.msra.mxu0 %v3073
    %v3075 = vand.u32 %v2429, 4294901760
    %v3076 = vsub.f32 %v2429, %v3075
    %3077 = vmatpush.msra.mxu0 %v3076
    %v3078 = vand.u32 %v2428, 4294901760
    %v3079 = vsub.f32 %v2428, %v3078
    %3080 = vmatpush.msra.mxu0 %v3079
    %v3081 = vand.u32 %v2427, 4294901760
    %v3082 = vsub.f32 %v2427, %v3081
    %3083 = vmatpush.msra.mxu0 %v3082
    %v3084 = vand.u32 %v2426, 4294901760
    %v3085 = vsub.f32 %v2426, %v3084
    %3086 = vmatpush.msra.mxu0 %v3085
    %v3087 = vand.u32 %v2425, 4294901760
    %v3088 = vsub.f32 %v2425, %v3087
    %3089 = vmatpush.msra.mxu0 %v3088
    %v3090 = vand.u32 %v2198, 4294901760
    %v3091 = vsub.f32 %v2198, %v3090
    %3092 = vmatmul.f32.gmra.mxu0 %v3091
    %v3093 = vpop.f32.mrf.mxu0
    %v3094 = vadd.f32 %v3032, %v3093
    %v3095 = vand.u32 %v2262, 4294901760
    %v3096 = vsub.f32 %v2262, %v3095
    %3097 = vmatmul.f32.gmra.mxu0 %v3096
    %v3098 = vpop.f32.mrf.mxu0
    %v3099 = vadd.f32 %v3036, %v3098
    %v3100 = vand.u32 %v2326, 4294901760
    %v3101 = vsub.f32 %v2326, %v3100
    %3102 = vmatmul.f32.gmra.mxu0 %v3101
    %v3103 = vpop.f32.mrf.mxu0
    %v3104 = vadd.f32 %v3040, %v3103
    %3105 = vdwg.mxu0
    %v3106 = vand.u32 %v2440, 4294901760
    %3107 = vmatpush.msra.mxu0 %v3106
    %v3108 = vand.u32 %v2439, 4294901760
    %3109 = vmatpush.msra.mxu0 %v3108
    %v3110 = vand.u32 %v2438, 4294901760
    %3111 = vmatpush.msra.mxu0 %v3110
    %v3112 = vand.u32 %v2437, 4294901760
    %3113 = vmatpush.msra.mxu0 %v3112
    %v3114 = vand.u32 %v2436, 4294901760
    %3115 = vmatpush.msra.mxu0 %v3114
    %v3116 = vand.u32 %v2435, 4294901760
    %3117 = vmatpush.msra.mxu0 %v3116
    %v3118 = vand.u32 %v2434, 4294901760
    %3119 = vmatpush.msra.mxu0 %v3118
    %v3120 = vand.u32 %v2433, 4294901760
    %3121 = vmatpush.msra.mxu0 %v3120
    %v3122 = vand.u32 %v2432, 4294901760
    %3123 = vmatpush.msra.mxu0 %v3122
    %v3124 = vand.u32 %v2431, 4294901760
    %3125 = vmatpush.msra.mxu0 %v3124
    %v3126 = vand.u32 %v2430, 4294901760
    %3127 = vmatpush.msra.mxu0 %v3126
    %v3128 = vand.u32 %v2429, 4294901760
    %3129 = vmatpush.msra.mxu0 %v3128
    %v3130 = vand.u32 %v2428, 4294901760
    %3131 = vmatpush.msra.mxu0 %v3130
    %v3132 = vand.u32 %v2427, 4294901760
    %3133 = vmatpush.msra.mxu0 %v3132
    %v3134 = vand.u32 %v2426, 4294901760
    %3135 = vmatpush.msra.mxu0 %v3134
    %v3136 = vand.u32 %v2425, 4294901760
    %3137 = vmatpush.msra.mxu0 %v3136
    %v3138 = vand.u32 %v2198, 4294901760
    %v3139 = vsub.f32 %v2198, %v3138
    %v3140 = vand.u32 %v3139, 4294901760
    %3141 = vmatmul.f32.gmra.mxu0 %v3140
    %v3142 = vpop.f32.mrf.mxu0
    %v3143 = vadd.f32 %v3094, %v3142
    %v3144 = vand.u32 %v2262, 4294901760
    %v3145 = vsub.f32 %v2262, %v3144
    %v3146 = vand.u32 %v3145, 4294901760
    %3147 = vmatmul.f32.gmra.mxu0 %v3146
    %v3148 = vpop.f32.mrf.mxu0
    %v3149 = vadd.f32 %v3099, %v3148
    %v3150 = vand.u32 %v2326, 4294901760
    %v3151 = vsub.f32 %v2326, %v3150
    %v3152 = vand.u32 %v3151, 4294901760
    %3153 = vmatmul.f32.gmra.mxu0 %v3152
    %v3154 = vpop.f32.mrf.mxu0
    %v3155 = vadd.f32 %v3104, %v3154
    %3156 = vdwg.mxu0
    %v3157 = vand.u32 %v2440, 4294901760
    %v3158 = vsub.f32 %v2440, %v3157
    %v3159 = vand.u32 %v3158, 4294901760
    %3160 = vmatpush.msra.mxu0 %v3159
    %v3161 = vand.u32 %v2439, 4294901760
    %v3162 = vsub.f32 %v2439, %v3161
    %v3163 = vand.u32 %v3162, 4294901760
    %3164 = vmatpush.msra.mxu0 %v3163
    %v3165 = vand.u32 %v2438, 4294901760
    %v3166 = vsub.f32 %v2438, %v3165
    %v3167 = vand.u32 %v3166, 4294901760
    %3168 = vmatpush.msra.mxu0 %v3167
    %v3169 = vand.u32 %v2437, 4294901760
    %v3170 = vsub.f32 %v2437, %v3169
    %v3171 = vand.u32 %v3170, 4294901760
    %3172 = vmatpush.msra.mxu0 %v3171
    %v3173 = vand.u32 %v2436, 4294901760
    %v3174 = vsub.f32 %v2436, %v3173
    %v3175 = vand.u32 %v3174, 4294901760
    %3176 = vmatpush.msra.mxu0 %v3175
    %v3177 = vand.u32 %v2435, 4294901760
    %v3178 = vsub.f32 %v2435, %v3177
    %v3179 = vand.u32 %v3178, 4294901760
    %3180 = vmatpush.msra.mxu0 %v3179
    %v3181 = vand.u32 %v2434, 4294901760
    %v3182 = vsub.f32 %v2434, %v3181
    %v3183 = vand.u32 %v3182, 4294901760
    %3184 = vmatpush.msra.mxu0 %v3183
    %v3185 = vand.u32 %v2433, 4294901760
    %v3186 = vsub.f32 %v2433, %v3185
    %v3187 = vand.u32 %v3186, 4294901760
    %3188 = vmatpush.msra.mxu0 %v3187
    %v3189 = vand.u32 %v2432, 4294901760
    %v3190 = vsub.f32 %v2432, %v3189
    %v3191 = vand.u32 %v3190, 4294901760
    %3192 = vmatpush.msra.mxu0 %v3191
    %v3193 = vand.u32 %v2431, 4294901760
    %v3194 = vsub.f32 %v2431, %v3193
    %v3195 = vand.u32 %v3194, 4294901760
    %3196 = vmatpush.msra.mxu0 %v3195
    %v3197 = vand.u32 %v2430, 4294901760
    %v3198 = vsub.f32 %v2430, %v3197
    %v3199 = vand.u32 %v3198, 4294901760
    %3200 = vmatpush.msra.mxu0 %v3199
    %v3201 = vand.u32 %v2429, 4294901760
    %v3202 = vsub.f32 %v2429, %v3201
    %v3203 = vand.u32 %v3202, 4294901760
    %3204 = vmatpush.msra.mxu0 %v3203
    %v3205 = vand.u32 %v2428, 4294901760
    %v3206 = vsub.f32 %v2428, %v3205
    %v3207 = vand.u32 %v3206, 4294901760
    %3208 = vmatpush.msra.mxu0 %v3207
    %v3209 = vand.u32 %v2427, 4294901760
    %v3210 = vsub.f32 %v2427, %v3209
    %v3211 = vand.u32 %v3210, 4294901760
    %3212 = vmatpush.msra.mxu0 %v3211
    %v3213 = vand.u32 %v2426, 4294901760
    %v3214 = vsub.f32 %v2426, %v3213
    %v3215 = vand.u32 %v3214, 4294901760
    %3216 = vmatpush.msra.mxu0 %v3215
    %v3217 = vand.u32 %v2425, 4294901760
    %v3218 = vsub.f32 %v2425, %v3217
    %v3219 = vand.u32 %v3218, 4294901760
    %3220 = vmatpush.msra.mxu0 %v3219
    %v3221 = vand.u32 %v2198, 4294901760
    %3222 = vmatmul.f32.gmra.mxu0 %v3221
    %v3223 = vpop.f32.mrf.mxu0
    %v3224 = vadd.f32 %v3143, %v3223
    %v3225 = vand.u32 %v2262, 4294901760
    %3226 = vmatmul.f32.gmra.mxu0 %v3225
    %v3227 = vpop.f32.mrf.mxu0
    %v3228 = vadd.f32 %v3149, %v3227
    %v3229 = vand.u32 %v2326, 4294901760
    %3230 = vmatmul.f32.gmra.mxu0 %v3229
    %v3231 = vpop.f32.mrf.mxu0
    %v3232 = vadd.f32 %v3155, %v3231
    %3233 = vdwg.mxu0
    %v3234 = vand.u32 %v2440, 4294901760
    %3235 = vmatpush.msra.mxu0 %v3234
    %v3236 = vand.u32 %v2439, 4294901760
    %3237 = vmatpush.msra.mxu0 %v3236
    %v3238 = vand.u32 %v2438, 4294901760
    %3239 = vmatpush.msra.mxu0 %v3238
    %v3240 = vand.u32 %v2437, 4294901760
    %3241 = vmatpush.msra.mxu0 %v3240
    %v3242 = vand.u32 %v2436, 4294901760
    %3243 = vmatpush.msra.mxu0 %v3242
    %v3244 = vand.u32 %v2435, 4294901760
    %3245 = vmatpush.msra.mxu0 %v3244
    %v3246 = vand.u32 %v2434, 4294901760
    %3247 = vmatpush.msra.mxu0 %v3246
    %v3248 = vand.u32 %v2433, 4294901760
    %3249 = vmatpush.msra.mxu0 %v3248
    %v3250 = vand.u32 %v2432, 4294901760
    %3251 = vmatpush.msra.mxu0 %v3250
    %v3252 = vand.u32 %v2431, 4294901760
    %3253 = vmatpush.msra.mxu0 %v3252
    %v3254 = vand.u32 %v2430, 4294901760
    %3255 = vmatpush.msra.mxu0 %v3254
    %v3256 = vand.u32 %v2429, 4294901760
    %3257 = vmatpush.msra.mxu0 %v3256
    %v3258 = vand.u32 %v2428, 4294901760
    %3259 = vmatpush.msra.mxu0 %v3258
    %v3260 = vand.u32 %v2427, 4294901760
    %3261 = vmatpush.msra.mxu0 %v3260
    %v3262 = vand.u32 %v2426, 4294901760
    %3263 = vmatpush.msra.mxu0 %v3262
    %v3264 = vand.u32 %v2425, 4294901760
    %3265 = vmatpush.msra.mxu0 %v3264
    %v3266 = vand.u32 %v2198, 4294901760
    %3267 = vmatmul.f32.gmra.mxu0 %v3266
    %v3268 = vpop.f32.mrf.mxu0
    %v3269 = vadd.f32 %v3224, %v3268
    %v3270 = vand.u32 %v2262, 4294901760
    %3271 = vmatmul.f32.gmra.mxu0 %v3270
    %v3272 = vpop.f32.mrf.mxu0
    %v3273 = vadd.f32 %v3228, %v3272
    %v3274 = vand.u32 %v2326, 4294901760
    %3275 = vmatmul.f32.gmra.mxu0 %v3274
    %v3276 = vpop.f32.mrf.mxu0
    %v3277 = vadd.f32 %v3232, %v3276
    %3278 = vdwg.mxu0
    %v3279 = vand.u32 %v2456, 4294901760
    %3280 = vmatpush.msra.mxu0 %v3279
    %v3281 = vand.u32 %v2455, 4294901760
    %3282 = vmatpush.msra.mxu0 %v3281
    %v3283 = vand.u32 %v2454, 4294901760
    %3284 = vmatpush.msra.mxu0 %v3283
    %v3285 = vand.u32 %v2453, 4294901760
    %3286 = vmatpush.msra.mxu0 %v3285
    %v3287 = vand.u32 %v2452, 4294901760
    %3288 = vmatpush.msra.mxu0 %v3287
    %v3289 = vand.u32 %v2451, 4294901760
    %3290 = vmatpush.msra.mxu0 %v3289
    %v3291 = vand.u32 %v2450, 4294901760
    %3292 = vmatpush.msra.mxu0 %v3291
    %v3293 = vand.u32 %v2449, 4294901760
    %3294 = vmatpush.msra.mxu0 %v3293
    %v3295 = vand.u32 %v2448, 4294901760
    %3296 = vmatpush.msra.mxu0 %v3295
    %v3297 = vand.u32 %v2447, 4294901760
    %3298 = vmatpush.msra.mxu0 %v3297
    %v3299 = vand.u32 %v2446, 4294901760
    %3300 = vmatpush.msra.mxu0 %v3299
    %v3301 = vand.u32 %v2445, 4294901760
    %3302 = vmatpush.msra.mxu0 %v3301
    %v3303 = vand.u32 %v2444, 4294901760
    %3304 = vmatpush.msra.mxu0 %v3303
    %v3305 = vand.u32 %v2443, 4294901760
    %3306 = vmatpush.msra.mxu0 %v3305
    %v3307 = vand.u32 %v2442, 4294901760
    %3308 = vmatpush.msra.mxu0 %v3307
    %v3309 = vand.u32 %v2441, 4294901760
    %3310 = vmatpush.msra.mxu0 %v3309
    %v3311 = vand.u32 %v2205, 4294901760
    %v3312 = vsub.f32 %v2205, %v3311
    %v3313 = vand.u32 %v3312, 4294901760
    %v3314 = vsub.f32 %v3312, %v3313
    %v3315 = vand.u32 %v3314, 4294901760
    %3316 = vmatmul.f32.gmra.mxu0 %v3315
    %v3317 = vpop.f32.mrf.mxu0
    %v3318 = vadd.f32 %v3269, %v3317
    %v3319 = vand.u32 %v2269, 4294901760
    %v3320 = vsub.f32 %v2269, %v3319
    %v3321 = vand.u32 %v3320, 4294901760
    %v3322 = vsub.f32 %v3320, %v3321
    %v3323 = vand.u32 %v3322, 4294901760
    %3324 = vmatmul.f32.gmra.mxu0 %v3323
    %v3325 = vpop.f32.mrf.mxu0
    %v3326 = vadd.f32 %v3273, %v3325
    %v3327 = vand.u32 %v2333, 4294901760
    %v3328 = vsub.f32 %v2333, %v3327
    %v3329 = vand.u32 %v3328, 4294901760
    %v3330 = vsub.f32 %v3328, %v3329
    %v3331 = vand.u32 %v3330, 4294901760
    %3332 = vmatmul.f32.gmra.mxu0 %v3331
    %v3333 = vpop.f32.mrf.mxu0
    %v3334 = vadd.f32 %v3277, %v3333
    %3335 = vdwg.mxu0
    %v3336 = vand.u32 %v2456, 4294901760
    %v3337 = vsub.f32 %v2456, %v3336
    %v3338 = vand.u32 %v3337, 4294901760
    %v3339 = vsub.f32 %v3337, %v3338
    %v3340 = vand.u32 %v3339, 4294901760
    %3341 = vmatpush.msra.mxu0 %v3340
    %v3342 = vand.u32 %v2455, 4294901760
    %v3343 = vsub.f32 %v2455, %v3342
    %v3344 = vand.u32 %v3343, 4294901760
    %v3345 = vsub.f32 %v3343, %v3344
    %v3346 = vand.u32 %v3345, 4294901760
    %3347 = vmatpush.msra.mxu0 %v3346
    %v3348 = vand.u32 %v2454, 4294901760
    %v3349 = vsub.f32 %v2454, %v3348
    %v3350 = vand.u32 %v3349, 4294901760
    %v3351 = vsub.f32 %v3349, %v3350
    %v3352 = vand.u32 %v3351, 4294901760
    %3353 = vmatpush.msra.mxu0 %v3352
    %v3354 = vand.u32 %v2453, 4294901760
    %v3355 = vsub.f32 %v2453, %v3354
    %v3356 = vand.u32 %v3355, 4294901760
    %v3357 = vsub.f32 %v3355, %v3356
    %v3358 = vand.u32 %v3357, 4294901760
    %3359 = vmatpush.msra.mxu0 %v3358
    %v3360 = vand.u32 %v2452, 4294901760
    %v3361 = vsub.f32 %v2452, %v3360
    %v3362 = vand.u32 %v3361, 4294901760
    %v3363 = vsub.f32 %v3361, %v3362
    %v3364 = vand.u32 %v3363, 4294901760
    %3365 = vmatpush.msra.mxu0 %v3364
    %v3366 = vand.u32 %v2451, 4294901760
    %v3367 = vsub.f32 %v2451, %v3366
    %v3368 = vand.u32 %v3367, 4294901760
    %v3369 = vsub.f32 %v3367, %v3368
    %v3370 = vand.u32 %v3369, 4294901760
    %3371 = vmatpush.msra.mxu0 %v3370
    %v3372 = vand.u32 %v2450, 4294901760
    %v3373 = vsub.f32 %v2450, %v3372
    %v3374 = vand.u32 %v3373, 4294901760
    %v3375 = vsub.f32 %v3373, %v3374
    %v3376 = vand.u32 %v3375, 4294901760
    %3377 = vmatpush.msra.mxu0 %v3376
    %v3378 = vand.u32 %v2449, 4294901760
    %v3379 = vsub.f32 %v2449, %v3378
    %v3380 = vand.u32 %v3379, 4294901760
    %v3381 = vsub.f32 %v3379, %v3380
    %v3382 = vand.u32 %v3381, 4294901760
    %3383 = vmatpush.msra.mxu0 %v3382
    %v3384 = vand.u32 %v2448, 4294901760
    %v3385 = vsub.f32 %v2448, %v3384
    %v3386 = vand.u32 %v3385, 4294901760
    %v3387 = vsub.f32 %v3385, %v3386
    %v3388 = vand.u32 %v3387, 4294901760
    %3389 = vmatpush.msra.mxu0 %v3388
    %v3390 = vand.u32 %v2447, 4294901760
    %v3391 = vsub.f32 %v2447, %v3390
    %v3392 = vand.u32 %v3391, 4294901760
    %v3393 = vsub.f32 %v3391, %v3392
    %v3394 = vand.u32 %v3393, 4294901760
    %3395 = vmatpush.msra.mxu0 %v3394
    %v3396 = vand.u32 %v2446, 4294901760
    %v3397 = vsub.f32 %v2446, %v3396
    %v3398 = vand.u32 %v3397, 4294901760
    %v3399 = vsub.f32 %v3397, %v3398
    %v3400 = vand.u32 %v3399, 4294901760
    %3401 = vmatpush.msra.mxu0 %v3400
    %v3402 = vand.u32 %v2445, 4294901760
    %v3403 = vsub.f32 %v2445, %v3402
    %v3404 = vand.u32 %v3403, 4294901760
    %v3405 = vsub.f32 %v3403, %v3404
    %v3406 = vand.u32 %v3405, 4294901760
    %3407 = vmatpush.msra.mxu0 %v3406
    %v3408 = vand.u32 %v2444, 4294901760
    %v3409 = vsub.f32 %v2444, %v3408
    %v3410 = vand.u32 %v3409, 4294901760
    %v3411 = vsub.f32 %v3409, %v3410
    %v3412 = vand.u32 %v3411, 4294901760
    %3413 = vmatpush.msra.mxu0 %v3412
    %v3414 = vand.u32 %v2443, 4294901760
    %v3415 = vsub.f32 %v2443, %v3414
    %v3416 = vand.u32 %v3415, 4294901760
    %v3417 = vsub.f32 %v3415, %v3416
    %v3418 = vand.u32 %v3417, 4294901760
    %3419 = vmatpush.msra.mxu0 %v3418
    %v3420 = vand.u32 %v2442, 4294901760
    %v3421 = vsub.f32 %v2442, %v3420
    %v3422 = vand.u32 %v3421, 4294901760
    %v3423 = vsub.f32 %v3421, %v3422
    %v3424 = vand.u32 %v3423, 4294901760
    %3425 = vmatpush.msra.mxu0 %v3424
    %v3426 = vand.u32 %v2441, 4294901760
    %v3427 = vsub.f32 %v2441, %v3426
    %v3428 = vand.u32 %v3427, 4294901760
    %v3429 = vsub.f32 %v3427, %v3428
    %v3430 = vand.u32 %v3429, 4294901760
    %3431 = vmatpush.msra.mxu0 %v3430
    %v3432 = vand.u32 %v2205, 4294901760
    %3433 = vmatmul.f32.gmra.mxu0 %v3432
    %v3434 = vpop.f32.mrf.mxu0
    %v3435 = vadd.f32 %v3318, %v3434
    %v3436 = vand.u32 %v2269, 4294901760
    %3437 = vmatmul.f32.gmra.mxu0 %v3436
    %v3438 = vpop.f32.mrf.mxu0
    %v3439 = vadd.f32 %v3326, %v3438
    %v3440 = vand.u32 %v2333, 4294901760
    %3441 = vmatmul.f32.gmra.mxu0 %v3440
    %v3442 = vpop.f32.mrf.mxu0
    %v3443 = vadd.f32 %v3334, %v3442
    %3444 = vdwg.mxu0
    %v3445 = vand.u32 %v2456, 4294901760
    %v3446 = vsub.f32 %v2456, %v3445
    %3447 = vmatpush.msra.mxu0 %v3446
    %v3448 = vand.u32 %v2455, 4294901760
    %v3449 = vsub.f32 %v2455, %v3448
    %3450 = vmatpush.msra.mxu0 %v3449
    %v3451 = vand.u32 %v2454, 4294901760
    %v3452 = vsub.f32 %v2454, %v3451
    %3453 = vmatpush.msra.mxu0 %v3452
    %v3454 = vand.u32 %v2453, 4294901760
    %v3455 = vsub.f32 %v2453, %v3454
    %3456 = vmatpush.msra.mxu0 %v3455
    %v3457 = vand.u32 %v2452, 4294901760
    %v3458 = vsub.f32 %v2452, %v3457
    %3459 = vmatpush.msra.mxu0 %v3458
    %v3460 = vand.u32 %v2451, 4294901760
    %v3461 = vsub.f32 %v2451, %v3460
    %3462 = vmatpush.msra.mxu0 %v3461
    %v3463 = vand.u32 %v2450, 4294901760
    %v3464 = vsub.f32 %v2450, %v3463
    %3465 = vmatpush.msra.mxu0 %v3464
    %v3466 = vand.u32 %v2449, 4294901760
    %v3467 = vsub.f32 %v2449, %v3466
    %3468 = vmatpush.msra.mxu0 %v3467
    %v3469 = vand.u32 %v2448, 4294901760
    %v3470 = vsub.f32 %v2448, %v3469
    %3471 = vmatpush.msra.mxu0 %v3470
    %v3472 = vand.u32 %v2447, 4294901760
    %v3473 = vsub.f32 %v2447, %v3472
    %3474 = vmatpush.msra.mxu0 %v3473
    %v3475 = vand.u32 %v2446, 4294901760
    %v3476 = vsub.f32 %v2446, %v3475
    %3477 = vmatpush.msra.mxu0 %v3476
    %v3478 = vand.u32 %v2445, 4294901760
    %v3479 = vsub.f32 %v2445, %v3478
    %3480 = vmatpush.msra.mxu0 %v3479
    %v3481 = vand.u32 %v2444, 4294901760
    %v3482 = vsub.f32 %v2444, %v3481
    %3483 = vmatpush.msra.mxu0 %v3482
    %v3484 = vand.u32 %v2443, 4294901760
    %v3485 = vsub.f32 %v2443, %v3484
    %3486 = vmatpush.msra.mxu0 %v3485
    %v3487 = vand.u32 %v2442, 4294901760
    %v3488 = vsub.f32 %v2442, %v3487
    %3489 = vmatpush.msra.mxu0 %v3488
    %v3490 = vand.u32 %v2441, 4294901760
    %v3491 = vsub.f32 %v2441, %v3490
    %3492 = vmatpush.msra.mxu0 %v3491
    %v3493 = vand.u32 %v2205, 4294901760
    %v3494 = vsub.f32 %v2205, %v3493
    %3495 = vmatmul.f32.gmra.mxu0 %v3494
    %v3496 = vpop.f32.mrf.mxu0
    %v3497 = vadd.f32 %v3435, %v3496
    %v3498 = vand.u32 %v2269, 4294901760
    %v3499 = vsub.f32 %v2269, %v3498
    %3500 = vmatmul.f32.gmra.mxu0 %v3499
    %v3501 = vpop.f32.mrf.mxu0
    %v3502 = vadd.f32 %v3439, %v3501
    %v3503 = vand.u32 %v2333, 4294901760
    %v3504 = vsub.f32 %v2333, %v3503
    %3505 = vmatmul.f32.gmra.mxu0 %v3504
    %v3506 = vpop.f32.mrf.mxu0
    %v3507 = vadd.f32 %v3443, %v3506
    %3508 = vdwg.mxu0
    %v3509 = vand.u32 %v2456, 4294901760
    %3510 = vmatpush.msra.mxu0 %v3509
    %v3511 = vand.u32 %v2455, 4294901760
    %3512 = vmatpush.msra.mxu0 %v3511
    %v3513 = vand.u32 %v2454, 4294901760
    %3514 = vmatpush.msra.mxu0 %v3513
    %v3515 = vand.u32 %v2453, 4294901760
    %3516 = vmatpush.msra.mxu0 %v3515
    %v3517 = vand.u32 %v2452, 4294901760
    %3518 = vmatpush.msra.mxu0 %v3517
    %v3519 = vand.u32 %v2451, 4294901760
    %3520 = vmatpush.msra.mxu0 %v3519
    %v3521 = vand.u32 %v2450, 4294901760
    %3522 = vmatpush.msra.mxu0 %v3521
    %v3523 = vand.u32 %v2449, 4294901760
    %3524 = vmatpush.msra.mxu0 %v3523
    %v3525 = vand.u32 %v2448, 4294901760
    %3526 = vmatpush.msra.mxu0 %v3525
    %v3527 = vand.u32 %v2447, 4294901760
    %3528 = vmatpush.msra.mxu0 %v3527
    %v3529 = vand.u32 %v2446, 4294901760
    %3530 = vmatpush.msra.mxu0 %v3529
    %v3531 = vand.u32 %v2445, 4294901760
    %3532 = vmatpush.msra.mxu0 %v3531
    %v3533 = vand.u32 %v2444, 4294901760
    %3534 = vmatpush.msra.mxu0 %v3533
    %v3535 = vand.u32 %v2443, 4294901760
    %3536 = vmatpush.msra.mxu0 %v3535
    %v3537 = vand.u32 %v2442, 4294901760
    %3538 = vmatpush.msra.mxu0 %v3537
    %v3539 = vand.u32 %v2441, 4294901760
    %3540 = vmatpush.msra.mxu0 %v3539
    %v3541 = vand.u32 %v2205, 4294901760
    %v3542 = vsub.f32 %v2205, %v3541
    %v3543 = vand.u32 %v3542, 4294901760
    %3544 = vmatmul.f32.gmra.mxu0 %v3543
    %v3545 = vpop.f32.mrf.mxu0
    %v3546 = vadd.f32 %v3497, %v3545
    %v3547 = vand.u32 %v2269, 4294901760
    %v3548 = vsub.f32 %v2269, %v3547
    %v3549 = vand.u32 %v3548, 4294901760
    %3550 = vmatmul.f32.gmra.mxu0 %v3549
    %v3551 = vpop.f32.mrf.mxu0
    %v3552 = vadd.f32 %v3502, %v3551
    %v3553 = vand.u32 %v2333, 4294901760
    %v3554 = vsub.f32 %v2333, %v3553
    %v3555 = vand.u32 %v3554, 4294901760
    %3556 = vmatmul.f32.gmra.mxu0 %v3555
    %v3557 = vpop.f32.mrf.mxu0
    %v3558 = vadd.f32 %v3507, %v3557
    %3559 = vdwg.mxu0
    %v3560 = vand.u32 %v2456, 4294901760
    %v3561 = vsub.f32 %v2456, %v3560
    %v3562 = vand.u32 %v3561, 4294901760
    %3563 = vmatpush.msra.mxu0 %v3562
    %v3564 = vand.u32 %v2455, 4294901760
    %v3565 = vsub.f32 %v2455, %v3564
    %v3566 = vand.u32 %v3565, 4294901760
    %3567 = vmatpush.msra.mxu0 %v3566
    %v3568 = vand.u32 %v2454, 4294901760
    %v3569 = vsub.f32 %v2454, %v3568
    %v3570 = vand.u32 %v3569, 4294901760
    %3571 = vmatpush.msra.mxu0 %v3570
    %v3572 = vand.u32 %v2453, 4294901760
    %v3573 = vsub.f32 %v2453, %v3572
    %v3574 = vand.u32 %v3573, 4294901760
    %3575 = vmatpush.msra.mxu0 %v3574
    %v3576 = vand.u32 %v2452, 4294901760
    %v3577 = vsub.f32 %v2452, %v3576
    %v3578 = vand.u32 %v3577, 4294901760
    %3579 = vmatpush.msra.mxu0 %v3578
    %v3580 = vand.u32 %v2451, 4294901760
    %v3581 = vsub.f32 %v2451, %v3580
    %v3582 = vand.u32 %v3581, 4294901760
    %3583 = vmatpush.msra.mxu0 %v3582
    %v3584 = vand.u32 %v2450, 4294901760
    %v3585 = vsub.f32 %v2450, %v3584
    %v3586 = vand.u32 %v3585, 4294901760
    %3587 = vmatpush.msra.mxu0 %v3586
    %v3588 = vand.u32 %v2449, 4294901760
    %v3589 = vsub.f32 %v2449, %v3588
    %v3590 = vand.u32 %v3589, 4294901760
    %3591 = vmatpush.msra.mxu0 %v3590
    %v3592 = vand.u32 %v2448, 4294901760
    %v3593 = vsub.f32 %v2448, %v3592
    %v3594 = vand.u32 %v3593, 4294901760
    %3595 = vmatpush.msra.mxu0 %v3594
    %v3596 = vand.u32 %v2447, 4294901760
    %v3597 = vsub.f32 %v2447, %v3596
    %v3598 = vand.u32 %v3597, 4294901760
    %3599 = vmatpush.msra.mxu0 %v3598
    %v3600 = vand.u32 %v2446, 4294901760
    %v3601 = vsub.f32 %v2446, %v3600
    %v3602 = vand.u32 %v3601, 4294901760
    %3603 = vmatpush.msra.mxu0 %v3602
    %v3604 = vand.u32 %v2445, 4294901760
    %v3605 = vsub.f32 %v2445, %v3604
    %v3606 = vand.u32 %v3605, 4294901760
    %3607 = vmatpush.msra.mxu0 %v3606
    %v3608 = vand.u32 %v2444, 4294901760
    %v3609 = vsub.f32 %v2444, %v3608
    %v3610 = vand.u32 %v3609, 4294901760
    %3611 = vmatpush.msra.mxu0 %v3610
    %v3612 = vand.u32 %v2443, 4294901760
    %v3613 = vsub.f32 %v2443, %v3612
    %v3614 = vand.u32 %v3613, 4294901760
    %3615 = vmatpush.msra.mxu0 %v3614
    %v3616 = vand.u32 %v2442, 4294901760
    %v3617 = vsub.f32 %v2442, %v3616
    %v3618 = vand.u32 %v3617, 4294901760
    %3619 = vmatpush.msra.mxu0 %v3618
    %v3620 = vand.u32 %v2441, 4294901760
    %v3621 = vsub.f32 %v2441, %v3620
    %v3622 = vand.u32 %v3621, 4294901760
    %3623 = vmatpush.msra.mxu0 %v3622
    %v3624 = vand.u32 %v2205, 4294901760
    %3625 = vmatmul.f32.gmra.mxu0 %v3624
    %v3626 = vpop.f32.mrf.mxu0
    %v3627 = vadd.f32 %v3546, %v3626
    %v3628 = vand.u32 %v2269, 4294901760
    %3629 = vmatmul.f32.gmra.mxu0 %v3628
    %v3630 = vpop.f32.mrf.mxu0
    %v3631 = vadd.f32 %v3552, %v3630
    %v3632 = vand.u32 %v2333, 4294901760
    %3633 = vmatmul.f32.gmra.mxu0 %v3632
    %v3634 = vpop.f32.mrf.mxu0
    %v3635 = vadd.f32 %v3558, %v3634
    %3636 = vdwg.mxu0
    %v3637 = vand.u32 %v2456, 4294901760
    %3638 = vmatpush.msra.mxu0 %v3637
    %v3639 = vand.u32 %v2455, 4294901760
    %3640 = vmatpush.msra.mxu0 %v3639
    %v3641 = vand.u32 %v2454, 4294901760
    %3642 = vmatpush.msra.mxu0 %v3641
    %v3643 = vand.u32 %v2453, 4294901760
    %3644 = vmatpush.msra.mxu0 %v3643
    %v3645 = vand.u32 %v2452, 4294901760
    %3646 = vmatpush.msra.mxu0 %v3645
    %v3647 = vand.u32 %v2451, 4294901760
    %3648 = vmatpush.msra.mxu0 %v3647
    %v3649 = vand.u32 %v2450, 4294901760
    %3650 = vmatpush.msra.mxu0 %v3649
    %v3651 = vand.u32 %v2449, 4294901760
    %3652 = vmatpush.msra.mxu0 %v3651
    %v3653 = vand.u32 %v2448, 4294901760
    %3654 = vmatpush.msra.mxu0 %v3653
    %v3655 = vand.u32 %v2447, 4294901760
    %3656 = vmatpush.msra.mxu0 %v3655
    %v3657 = vand.u32 %v2446, 4294901760
    %3658 = vmatpush.msra.mxu0 %v3657
    %v3659 = vand.u32 %v2445, 4294901760
    %3660 = vmatpush.msra.mxu0 %v3659
    %v3661 = vand.u32 %v2444, 4294901760
    %3662 = vmatpush.msra.mxu0 %v3661
    %v3663 = vand.u32 %v2443, 4294901760
    %3664 = vmatpush.msra.mxu0 %v3663
    %v3665 = vand.u32 %v2442, 4294901760
    %3666 = vmatpush.msra.mxu0 %v3665
    %v3667 = vand.u32 %v2441, 4294901760
    %3668 = vmatpush.msra.mxu0 %v3667
    %v3669 = vand.u32 %v2205, 4294901760
    %3670 = vmatmul.f32.gmra.mxu0 %v3669
    %v3671 = vpop.f32.mrf.mxu0
    %v3672 = vadd.f32 %v3627, %v3671
    %v3673 = vand.u32 %v2269, 4294901760
    %3674 = vmatmul.f32.gmra.mxu0 %v3673
    %v3675 = vpop.f32.mrf.mxu0
    %v3676 = vadd.f32 %v3631, %v3675
    %v3677 = vand.u32 %v2333, 4294901760
    %3678 = vmatmul.f32.gmra.mxu0 %v3677
    %v3679 = vpop.f32.mrf.mxu0
    %v3680 = vadd.f32 %v3635, %v3679
    %3681 = vdwg.mxu0
    %v3682 = vand.u32 %v2472, 4294901760
    %3683 = vmatpush.msra.mxu0 %v3682
    %v3684 = vand.u32 %v2471, 4294901760
    %3685 = vmatpush.msra.mxu0 %v3684
    %v3686 = vand.u32 %v2470, 4294901760
    %3687 = vmatpush.msra.mxu0 %v3686
    %v3688 = vand.u32 %v2469, 4294901760
    %3689 = vmatpush.msra.mxu0 %v3688
    %v3690 = vand.u32 %v2468, 4294901760
    %3691 = vmatpush.msra.mxu0 %v3690
    %v3692 = vand.u32 %v2467, 4294901760
    %3693 = vmatpush.msra.mxu0 %v3692
    %v3694 = vand.u32 %v2466, 4294901760
    %3695 = vmatpush.msra.mxu0 %v3694
    %v3696 = vand.u32 %v2465, 4294901760
    %3697 = vmatpush.msra.mxu0 %v3696
    %v3698 = vand.u32 %v2464, 4294901760
    %3699 = vmatpush.msra.mxu0 %v3698
    %v3700 = vand.u32 %v2463, 4294901760
    %3701 = vmatpush.msra.mxu0 %v3700
    %v3702 = vand.u32 %v2462, 4294901760
    %3703 = vmatpush.msra.mxu0 %v3702
    %v3704 = vand.u32 %v2461, 4294901760
    %3705 = vmatpush.msra.mxu0 %v3704
    %v3706 = vand.u32 %v2460, 4294901760
    %3707 = vmatpush.msra.mxu0 %v3706
    %v3708 = vand.u32 %v2459, 4294901760
    %3709 = vmatpush.msra.mxu0 %v3708
    %v3710 = vand.u32 %v2458, 4294901760
    %3711 = vmatpush.msra.mxu0 %v3710
    %v3712 = vand.u32 %v2457, 4294901760
    %3713 = vmatpush.msra.mxu0 %v3712
    %v3714 = vand.u32 %v2212, 4294901760
    %v3715 = vsub.f32 %v2212, %v3714
    %v3716 = vand.u32 %v3715, 4294901760
    %v3717 = vsub.f32 %v3715, %v3716
    %v3718 = vand.u32 %v3717, 4294901760
    %3719 = vmatmul.f32.gmra.mxu0 %v3718
    %v3720 = vpop.f32.mrf.mxu0
    %v3721 = vadd.f32 %v3672, %v3720
    %v3722 = vand.u32 %v2276, 4294901760
    %v3723 = vsub.f32 %v2276, %v3722
    %v3724 = vand.u32 %v3723, 4294901760
    %v3725 = vsub.f32 %v3723, %v3724
    %v3726 = vand.u32 %v3725, 4294901760
    %3727 = vmatmul.f32.gmra.mxu0 %v3726
    %v3728 = vpop.f32.mrf.mxu0
    %v3729 = vadd.f32 %v3676, %v3728
    %v3730 = vand.u32 %v2340, 4294901760
    %v3731 = vsub.f32 %v2340, %v3730
    %v3732 = vand.u32 %v3731, 4294901760
    %v3733 = vsub.f32 %v3731, %v3732
    %v3734 = vand.u32 %v3733, 4294901760
    %3735 = vmatmul.f32.gmra.mxu0 %v3734
    %v3736 = vpop.f32.mrf.mxu0
    %v3737 = vadd.f32 %v3680, %v3736
    %3738 = vdwg.mxu0
    %v3739 = vand.u32 %v2472, 4294901760
    %v3740 = vsub.f32 %v2472, %v3739
    %v3741 = vand.u32 %v3740, 4294901760
    %v3742 = vsub.f32 %v3740, %v3741
    %v3743 = vand.u32 %v3742, 4294901760
    %3744 = vmatpush.msra.mxu0 %v3743
    %v3745 = vand.u32 %v2471, 4294901760
    %v3746 = vsub.f32 %v2471, %v3745
    %v3747 = vand.u32 %v3746, 4294901760
    %v3748 = vsub.f32 %v3746, %v3747
    %v3749 = vand.u32 %v3748, 4294901760
    %3750 = vmatpush.msra.mxu0 %v3749
    %v3751 = vand.u32 %v2470, 4294901760
    %v3752 = vsub.f32 %v2470, %v3751
    %v3753 = vand.u32 %v3752, 4294901760
    %v3754 = vsub.f32 %v3752, %v3753
    %v3755 = vand.u32 %v3754, 4294901760
    %3756 = vmatpush.msra.mxu0 %v3755
    %v3757 = vand.u32 %v2469, 4294901760
    %v3758 = vsub.f32 %v2469, %v3757
    %v3759 = vand.u32 %v3758, 4294901760
    %v3760 = vsub.f32 %v3758, %v3759
    %v3761 = vand.u32 %v3760, 4294901760
    %3762 = vmatpush.msra.mxu0 %v3761
    %v3763 = vand.u32 %v2468, 4294901760
    %v3764 = vsub.f32 %v2468, %v3763
    %v3765 = vand.u32 %v3764, 4294901760
    %v3766 = vsub.f32 %v3764, %v3765
    %v3767 = vand.u32 %v3766, 4294901760
    %3768 = vmatpush.msra.mxu0 %v3767
    %v3769 = vand.u32 %v2467, 4294901760
    %v3770 = vsub.f32 %v2467, %v3769
    %v3771 = vand.u32 %v3770, 4294901760
    %v3772 = vsub.f32 %v3770, %v3771
    %v3773 = vand.u32 %v3772, 4294901760
    %3774 = vmatpush.msra.mxu0 %v3773
    %v3775 = vand.u32 %v2466, 4294901760
    %v3776 = vsub.f32 %v2466, %v3775
    %v3777 = vand.u32 %v3776, 4294901760
    %v3778 = vsub.f32 %v3776, %v3777
    %v3779 = vand.u32 %v3778, 4294901760
    %3780 = vmatpush.msra.mxu0 %v3779
    %v3781 = vand.u32 %v2465, 4294901760
    %v3782 = vsub.f32 %v2465, %v3781
    %v3783 = vand.u32 %v3782, 4294901760
    %v3784 = vsub.f32 %v3782, %v3783
    %v3785 = vand.u32 %v3784, 4294901760
    %3786 = vmatpush.msra.mxu0 %v3785
    %v3787 = vand.u32 %v2464, 4294901760
    %v3788 = vsub.f32 %v2464, %v3787
    %v3789 = vand.u32 %v3788, 4294901760
    %v3790 = vsub.f32 %v3788, %v3789
    %v3791 = vand.u32 %v3790, 4294901760
    %3792 = vmatpush.msra.mxu0 %v3791
    %v3793 = vand.u32 %v2463, 4294901760
    %v3794 = vsub.f32 %v2463, %v3793
    %v3795 = vand.u32 %v3794, 4294901760
    %v3796 = vsub.f32 %v3794, %v3795
    %v3797 = vand.u32 %v3796, 4294901760
    %3798 = vmatpush.msra.mxu0 %v3797
    %v3799 = vand.u32 %v2462, 4294901760
    %v3800 = vsub.f32 %v2462, %v3799
    %v3801 = vand.u32 %v3800, 4294901760
    %v3802 = vsub.f32 %v3800, %v3801
    %v3803 = vand.u32 %v3802, 4294901760
    %3804 = vmatpush.msra.mxu0 %v3803
    %v3805 = vand.u32 %v2461, 4294901760
    %v3806 = vsub.f32 %v2461, %v3805
    %v3807 = vand.u32 %v3806, 4294901760
    %v3808 = vsub.f32 %v3806, %v3807
    %v3809 = vand.u32 %v3808, 4294901760
    %3810 = vmatpush.msra.mxu0 %v3809
    %v3811 = vand.u32 %v2460, 4294901760
    %v3812 = vsub.f32 %v2460, %v3811
    %v3813 = vand.u32 %v3812, 4294901760
    %v3814 = vsub.f32 %v3812, %v3813
    %v3815 = vand.u32 %v3814, 4294901760
    %3816 = vmatpush.msra.mxu0 %v3815
    %v3817 = vand.u32 %v2459, 4294901760
    %v3818 = vsub.f32 %v2459, %v3817
    %v3819 = vand.u32 %v3818, 4294901760
    %v3820 = vsub.f32 %v3818, %v3819
    %v3821 = vand.u32 %v3820, 4294901760
    %3822 = vmatpush.msra.mxu0 %v3821
    %v3823 = vand.u32 %v2458, 4294901760
    %v3824 = vsub.f32 %v2458, %v3823
    %v3825 = vand.u32 %v3824, 4294901760
    %v3826 = vsub.f32 %v3824, %v3825
    %v3827 = vand.u32 %v3826, 4294901760
    %3828 = vmatpush.msra.mxu0 %v3827
    %v3829 = vand.u32 %v2457, 4294901760
    %v3830 = vsub.f32 %v2457, %v3829
    %v3831 = vand.u32 %v3830, 4294901760
    %v3832 = vsub.f32 %v3830, %v3831
    %v3833 = vand.u32 %v3832, 4294901760
    %3834 = vmatpush.msra.mxu0 %v3833
    %v3835 = vand.u32 %v2212, 4294901760
    %3836 = vmatmul.f32.gmra.mxu0 %v3835
    %v3837 = vpop.f32.mrf.mxu0
    %v3838 = vadd.f32 %v3721, %v3837
    %v3839 = vand.u32 %v2276, 4294901760
    %3840 = vmatmul.f32.gmra.mxu0 %v3839
    %v3841 = vpop.f32.mrf.mxu0
    %v3842 = vadd.f32 %v3729, %v3841
    %v3843 = vand.u32 %v2340, 4294901760
    %3844 = vmatmul.f32.gmra.mxu0 %v3843
    %v3845 = vpop.f32.mrf.mxu0
    %v3846 = vadd.f32 %v3737, %v3845
    %3847 = vdwg.mxu0
    %v3848 = vand.u32 %v2472, 4294901760
    %v3849 = vsub.f32 %v2472, %v3848
    %3850 = vmatpush.msra.mxu0 %v3849
    %v3851 = vand.u32 %v2471, 4294901760
    %v3852 = vsub.f32 %v2471, %v3851
    %3853 = vmatpush.msra.mxu0 %v3852
    %v3854 = vand.u32 %v2470, 4294901760
    %v3855 = vsub.f32 %v2470, %v3854
    %3856 = vmatpush.msra.mxu0 %v3855
    %v3857 = vand.u32 %v2469, 4294901760
    %v3858 = vsub.f32 %v2469, %v3857
    %3859 = vmatpush.msra.mxu0 %v3858
    %v3860 = vand.u32 %v2468, 4294901760
    %v3861 = vsub.f32 %v2468, %v3860
    %3862 = vmatpush.msra.mxu0 %v3861
    %v3863 = vand.u32 %v2467, 4294901760
    %v3864 = vsub.f32 %v2467, %v3863
    %3865 = vmatpush.msra.mxu0 %v3864
    %v3866 = vand.u32 %v2466, 4294901760
    %v3867 = vsub.f32 %v2466, %v3866
    %3868 = vmatpush.msra.mxu0 %v3867
    %v3869 = vand.u32 %v2465, 4294901760
    %v3870 = vsub.f32 %v2465, %v3869
    %3871 = vmatpush.msra.mxu0 %v3870
    %v3872 = vand.u32 %v2464, 4294901760
    %v3873 = vsub.f32 %v2464, %v3872
    %3874 = vmatpush.msra.mxu0 %v3873
    %v3875 = vand.u32 %v2463, 4294901760
    %v3876 = vsub.f32 %v2463, %v3875
    %3877 = vmatpush.msra.mxu0 %v3876
    %v3878 = vand.u32 %v2462, 4294901760
    %v3879 = vsub.f32 %v2462, %v3878
    %3880 = vmatpush.msra.mxu0 %v3879
    %v3881 = vand.u32 %v2461, 4294901760
    %v3882 = vsub.f32 %v2461, %v3881
    %3883 = vmatpush.msra.mxu0 %v3882
    %v3884 = vand.u32 %v2460, 4294901760
    %v3885 = vsub.f32 %v2460, %v3884
    %3886 = vmatpush.msra.mxu0 %v3885
    %v3887 = vand.u32 %v2459, 4294901760
    %v3888 = vsub.f32 %v2459, %v3887
    %3889 = vmatpush.msra.mxu0 %v3888
    %v3890 = vand.u32 %v2458, 4294901760
    %v3891 = vsub.f32 %v2458, %v3890
    %3892 = vmatpush.msra.mxu0 %v3891
    %v3893 = vand.u32 %v2457, 4294901760
    %v3894 = vsub.f32 %v2457, %v3893
    %3895 = vmatpush.msra.mxu0 %v3894
    %v3896 = vand.u32 %v2212, 4294901760
    %v3897 = vsub.f32 %v2212, %v3896
    %3898 = vmatmul.f32.gmra.mxu0 %v3897
    %v3899 = vpop.f32.mrf.mxu0
    %v3900 = vadd.f32 %v3838, %v3899
    %v3901 = vand.u32 %v2276, 4294901760
    %v3902 = vsub.f32 %v2276, %v3901
    %3903 = vmatmul.f32.gmra.mxu0 %v3902
    %v3904 = vpop.f32.mrf.mxu0
    %v3905 = vadd.f32 %v3842, %v3904
    %v3906 = vand.u32 %v2340, 4294901760
    %v3907 = vsub.f32 %v2340, %v3906
    %3908 = vmatmul.f32.gmra.mxu0 %v3907
    %v3909 = vpop.f32.mrf.mxu0
    %v3910 = vadd.f32 %v3846, %v3909
    %3911 = vdwg.mxu0
    %v3912 = vand.u32 %v2472, 4294901760
    %3913 = vmatpush.msra.mxu0 %v3912
    %v3914 = vand.u32 %v2471, 4294901760
    %3915 = vmatpush.msra.mxu0 %v3914
    %v3916 = vand.u32 %v2470, 4294901760
    %3917 = vmatpush.msra.mxu0 %v3916
    %v3918 = vand.u32 %v2469, 4294901760
    %3919 = vmatpush.msra.mxu0 %v3918
    %v3920 = vand.u32 %v2468, 4294901760
    %3921 = vmatpush.msra.mxu0 %v3920
    %v3922 = vand.u32 %v2467, 4294901760
    %3923 = vmatpush.msra.mxu0 %v3922
    %v3924 = vand.u32 %v2466, 4294901760
    %3925 = vmatpush.msra.mxu0 %v3924
    %v3926 = vand.u32 %v2465, 4294901760
    %3927 = vmatpush.msra.mxu0 %v3926
    %v3928 = vand.u32 %v2464, 4294901760
    %3929 = vmatpush.msra.mxu0 %v3928
    %v3930 = vand.u32 %v2463, 4294901760
    %3931 = vmatpush.msra.mxu0 %v3930
    %v3932 = vand.u32 %v2462, 4294901760
    %3933 = vmatpush.msra.mxu0 %v3932
    %v3934 = vand.u32 %v2461, 4294901760
    %3935 = vmatpush.msra.mxu0 %v3934
    %v3936 = vand.u32 %v2460, 4294901760
    %3937 = vmatpush.msra.mxu0 %v3936
    %v3938 = vand.u32 %v2459, 4294901760
    %3939 = vmatpush.msra.mxu0 %v3938
    %v3940 = vand.u32 %v2458, 4294901760
    %3941 = vmatpush.msra.mxu0 %v3940
    %v3942 = vand.u32 %v2457, 4294901760
    %3943 = vmatpush.msra.mxu0 %v3942
    %v3944 = vand.u32 %v2212, 4294901760
    %v3945 = vsub.f32 %v2212, %v3944
    %v3946 = vand.u32 %v3945, 4294901760
    %3947 = vmatmul.f32.gmra.mxu0 %v3946
    %v3948 = vpop.f32.mrf.mxu0
    %v3949 = vadd.f32 %v3900, %v3948
    %v3950 = vand.u32 %v2276, 4294901760
    %v3951 = vsub.f32 %v2276, %v3950
    %v3952 = vand.u32 %v3951, 4294901760
    %3953 = vmatmul.f32.gmra.mxu0 %v3952
    %v3954 = vpop.f32.mrf.mxu0
    %v3955 = vadd.f32 %v3905, %v3954
    %v3956 = vand.u32 %v2340, 4294901760
    %v3957 = vsub.f32 %v2340, %v3956
    %v3958 = vand.u32 %v3957, 4294901760
    %3959 = vmatmul.f32.gmra.mxu0 %v3958
    %v3960 = vpop.f32.mrf.mxu0
    %v3961 = vadd.f32 %v3910, %v3960
    %3962 = vdwg.mxu0
    %v3963 = vand.u32 %v2472, 4294901760
    %v3964 = vsub.f32 %v2472, %v3963
    %v3965 = vand.u32 %v3964, 4294901760
    %3966 = vmatpush.msra.mxu0 %v3965
    %v3967 = vand.u32 %v2471, 4294901760
    %v3968 = vsub.f32 %v2471, %v3967
    %v3969 = vand.u32 %v3968, 4294901760
    %3970 = vmatpush.msra.mxu0 %v3969
    %v3971 = vand.u32 %v2470, 4294901760
    %v3972 = vsub.f32 %v2470, %v3971
    %v3973 = vand.u32 %v3972, 4294901760
    %3974 = vmatpush.msra.mxu0 %v3973
    %v3975 = vand.u32 %v2469, 4294901760
    %v3976 = vsub.f32 %v2469, %v3975
    %v3977 = vand.u32 %v3976, 4294901760
    %3978 = vmatpush.msra.mxu0 %v3977
    %v3979 = vand.u32 %v2468, 4294901760
    %v3980 = vsub.f32 %v2468, %v3979
    %v3981 = vand.u32 %v3980, 4294901760
    %3982 = vmatpush.msra.mxu0 %v3981
    %v3983 = vand.u32 %v2467, 4294901760
    %v3984 = vsub.f32 %v2467, %v3983
    %v3985 = vand.u32 %v3984, 4294901760
    %3986 = vmatpush.msra.mxu0 %v3985
    %v3987 = vand.u32 %v2466, 4294901760
    %v3988 = vsub.f32 %v2466, %v3987
    %v3989 = vand.u32 %v3988, 4294901760
    %3990 = vmatpush.msra.mxu0 %v3989
    %v3991 = vand.u32 %v2465, 4294901760
    %v3992 = vsub.f32 %v2465, %v3991
    %v3993 = vand.u32 %v3992, 4294901760
    %3994 = vmatpush.msra.mxu0 %v3993
    %v3995 = vand.u32 %v2464, 4294901760
    %v3996 = vsub.f32 %v2464, %v3995
    %v3997 = vand.u32 %v3996, 4294901760
    %3998 = vmatpush.msra.mxu0 %v3997
    %v3999 = vand.u32 %v2463, 4294901760
    %v4000 = vsub.f32 %v2463, %v3999
    %v4001 = vand.u32 %v4000, 4294901760
    %4002 = vmatpush.msra.mxu0 %v4001
    %v4003 = vand.u32 %v2462, 4294901760
    %v4004 = vsub.f32 %v2462, %v4003
    %v4005 = vand.u32 %v4004, 4294901760
    %4006 = vmatpush.msra.mxu0 %v4005
    %v4007 = vand.u32 %v2461, 4294901760
    %v4008 = vsub.f32 %v2461, %v4007
    %v4009 = vand.u32 %v4008, 4294901760
    %4010 = vmatpush.msra.mxu0 %v4009
    %v4011 = vand.u32 %v2460, 4294901760
    %v4012 = vsub.f32 %v2460, %v4011
    %v4013 = vand.u32 %v4012, 4294901760
    %4014 = vmatpush.msra.mxu0 %v4013
    %v4015 = vand.u32 %v2459, 4294901760
    %v4016 = vsub.f32 %v2459, %v4015
    %v4017 = vand.u32 %v4016, 4294901760
    %4018 = vmatpush.msra.mxu0 %v4017
    %v4019 = vand.u32 %v2458, 4294901760
    %v4020 = vsub.f32 %v2458, %v4019
    %v4021 = vand.u32 %v4020, 4294901760
    %4022 = vmatpush.msra.mxu0 %v4021
    %v4023 = vand.u32 %v2457, 4294901760
    %v4024 = vsub.f32 %v2457, %v4023
    %v4025 = vand.u32 %v4024, 4294901760
    %4026 = vmatpush.msra.mxu0 %v4025
    %v4027 = vand.u32 %v2212, 4294901760
    %4028 = vmatmul.f32.gmra.mxu0 %v4027
    %v4029 = vpop.f32.mrf.mxu0
    %v4030 = vadd.f32 %v3949, %v4029
    %v4031 = vand.u32 %v2276, 4294901760
    %4032 = vmatmul.f32.gmra.mxu0 %v4031
    %v4033 = vpop.f32.mrf.mxu0
    %v4034 = vadd.f32 %v3955, %v4033
    %v4035 = vand.u32 %v2340, 4294901760
    %4036 = vmatmul.f32.gmra.mxu0 %v4035
    %v4037 = vpop.f32.mrf.mxu0
    %v4038 = vadd.f32 %v3961, %v4037
    %4039 = vdwg.mxu0
    %v4040 = vand.u32 %v2472, 4294901760
    %4041 = vmatpush.msra.mxu0 %v4040
    %v4042 = vand.u32 %v2471, 4294901760
    %4043 = vmatpush.msra.mxu0 %v4042
    %v4044 = vand.u32 %v2470, 4294901760
    %4045 = vmatpush.msra.mxu0 %v4044
    %v4046 = vand.u32 %v2469, 4294901760
    %4047 = vmatpush.msra.mxu0 %v4046
    %v4048 = vand.u32 %v2468, 4294901760
    %4049 = vmatpush.msra.mxu0 %v4048
    %v4050 = vand.u32 %v2467, 4294901760
    %4051 = vmatpush.msra.mxu0 %v4050
    %v4052 = vand.u32 %v2466, 4294901760
    %4053 = vmatpush.msra.mxu0 %v4052
    %v4054 = vand.u32 %v2465, 4294901760
    %4055 = vmatpush.msra.mxu0 %v4054
    %v4056 = vand.u32 %v2464, 4294901760
    %4057 = vmatpush.msra.mxu0 %v4056
    %v4058 = vand.u32 %v2463, 4294901760
    %4059 = vmatpush.msra.mxu0 %v4058
    %v4060 = vand.u32 %v2462, 4294901760
    %4061 = vmatpush.msra.mxu0 %v4060
    %v4062 = vand.u32 %v2461, 4294901760
    %4063 = vmatpush.msra.mxu0 %v4062
    %v4064 = vand.u32 %v2460, 4294901760
    %4065 = vmatpush.msra.mxu0 %v4064
    %v4066 = vand.u32 %v2459, 4294901760
    %4067 = vmatpush.msra.mxu0 %v4066
    %v4068 = vand.u32 %v2458, 4294901760
    %4069 = vmatpush.msra.mxu0 %v4068
    %v4070 = vand.u32 %v2457, 4294901760
    %4071 = vmatpush.msra.mxu0 %v4070
    %v4072 = vand.u32 %v2212, 4294901760
    %4073 = vmatmul.f32.gmra.mxu0 %v4072
    %v4074 = vpop.f32.mrf.mxu0
    %v4075 = vadd.f32 %v4030, %v4074
    %v4076 = vand.u32 %v2276, 4294901760
    %4077 = vmatmul.f32.gmra.mxu0 %v4076
    %v4078 = vpop.f32.mrf.mxu0
    %v4079 = vadd.f32 %v4034, %v4078
    %v4080 = vand.u32 %v2340, 4294901760
    %4081 = vmatmul.f32.gmra.mxu0 %v4080
    %v4082 = vpop.f32.mrf.mxu0
    %v4083 = vadd.f32 %v4038, %v4082
    %4084 = vdwg.mxu0
    %v4085 = vand.u32 %v2360, 4294901760
    %4086 = vmatpush.msra.mxu0 %v4085
    %v4087 = vand.u32 %v2359, 4294901760
    %4088 = vmatpush.msra.mxu0 %v4087
    %v4089 = vand.u32 %v2358, 4294901760
    %4090 = vmatpush.msra.mxu0 %v4089
    %v4091 = vand.u32 %v2357, 4294901760
    %4092 = vmatpush.msra.mxu0 %v4091
    %v4093 = vand.u32 %v2356, 4294901760
    %4094 = vmatpush.msra.mxu0 %v4093
    %v4095 = vand.u32 %v2355, 4294901760
    %4096 = vmatpush.msra.mxu0 %v4095
    %v4097 = vand.u32 %v2354, 4294901760
    %4098 = vmatpush.msra.mxu0 %v4097
    %v4099 = vand.u32 %v2353, 4294901760
    %4100 = vmatpush.msra.mxu0 %v4099
    %v4101 = vand.u32 %v2352, 4294901760
    %4102 = vmatpush.msra.mxu0 %v4101
    %v4103 = vand.u32 %v2351, 4294901760
    %4104 = vmatpush.msra.mxu0 %v4103
    %v4105 = vand.u32 %v2350, 4294901760
    %4106 = vmatpush.msra.mxu0 %v4105
    %v4107 = vand.u32 %v2349, 4294901760
    %4108 = vmatpush.msra.mxu0 %v4107
    %v4109 = vand.u32 %v2348, 4294901760
    %4110 = vmatpush.msra.mxu0 %v4109
    %v4111 = vand.u32 %v2347, 4294901760
    %4112 = vmatpush.msra.mxu0 %v4111
    %v4113 = vand.u32 %v2346, 4294901760
    %4114 = vmatpush.msra.mxu0 %v4113
    %v4115 = vand.u32 %v2345, 4294901760
    %4116 = vmatpush.msra.mxu0 %v4115
    %v4117 = vand.u32 %v1999, 4294901760
    %v4118 = vsub.f32 %v1999, %v4117
    %v4119 = vand.u32 %v4118, 4294901760
    %v4120 = vsub.f32 %v4118, %v4119
    %v4121 = vand.u32 %v4120, 4294901760
    %4122 = vmatmul.f32.gmra.mxu0 %v4121
    %v4123 = vpop.f32.mrf.mxu0
    %v4124 = vadd.f32 %v4075, %v4123
    %v4125 = vand.u32 %v2063, 4294901760
    %v4126 = vsub.f32 %v2063, %v4125
    %v4127 = vand.u32 %v4126, 4294901760
    %v4128 = vsub.f32 %v4126, %v4127
    %v4129 = vand.u32 %v4128, 4294901760
    %4130 = vmatmul.f32.gmra.mxu0 %v4129
    %v4131 = vpop.f32.mrf.mxu0
    %v4132 = vadd.f32 %v4079, %v4131
    %v4133 = vand.u32 %v2127, 4294901760
    %v4134 = vsub.f32 %v2127, %v4133
    %v4135 = vand.u32 %v4134, 4294901760
    %v4136 = vsub.f32 %v4134, %v4135
    %v4137 = vand.u32 %v4136, 4294901760
    %4138 = vmatmul.f32.gmra.mxu0 %v4137
    %v4139 = vpop.f32.mrf.mxu0
    %v4140 = vadd.f32 %v4083, %v4139
    %4141 = vdwg.mxu0
    %v4142 = vand.u32 %v2360, 4294901760
    %v4143 = vsub.f32 %v2360, %v4142
    %v4144 = vand.u32 %v4143, 4294901760
    %v4145 = vsub.f32 %v4143, %v4144
    %v4146 = vand.u32 %v4145, 4294901760
    %4147 = vmatpush.msra.mxu0 %v4146
    %v4148 = vand.u32 %v2359, 4294901760
    %v4149 = vsub.f32 %v2359, %v4148
    %v4150 = vand.u32 %v4149, 4294901760
    %v4151 = vsub.f32 %v4149, %v4150
    %v4152 = vand.u32 %v4151, 4294901760
    %4153 = vmatpush.msra.mxu0 %v4152
    %v4154 = vand.u32 %v2358, 4294901760
    %v4155 = vsub.f32 %v2358, %v4154
    %v4156 = vand.u32 %v4155, 4294901760
    %v4157 = vsub.f32 %v4155, %v4156
    %v4158 = vand.u32 %v4157, 4294901760
    %4159 = vmatpush.msra.mxu0 %v4158
    %v4160 = vand.u32 %v2357, 4294901760
    %v4161 = vsub.f32 %v2357, %v4160
    %v4162 = vand.u32 %v4161, 4294901760
    %v4163 = vsub.f32 %v4161, %v4162
    %v4164 = vand.u32 %v4163, 4294901760
    %4165 = vmatpush.msra.mxu0 %v4164
    %v4166 = vand.u32 %v2356, 4294901760
    %v4167 = vsub.f32 %v2356, %v4166
    %v4168 = vand.u32 %v4167, 4294901760
    %v4169 = vsub.f32 %v4167, %v4168
    %v4170 = vand.u32 %v4169, 4294901760
    %4171 = vmatpush.msra.mxu0 %v4170
    %v4172 = vand.u32 %v2355, 4294901760
    %v4173 = vsub.f32 %v2355, %v4172
    %v4174 = vand.u32 %v4173, 4294901760
    %v4175 = vsub.f32 %v4173, %v4174
    %v4176 = vand.u32 %v4175, 4294901760
    %4177 = vmatpush.msra.mxu0 %v4176
    %v4178 = vand.u32 %v2354, 4294901760
    %v4179 = vsub.f32 %v2354, %v4178
    %v4180 = vand.u32 %v4179, 4294901760
    %v4181 = vsub.f32 %v4179, %v4180
    %v4182 = vand.u32 %v4181, 4294901760
    %4183 = vmatpush.msra.mxu0 %v4182
    %v4184 = vand.u32 %v2353, 4294901760
    %v4185 = vsub.f32 %v2353, %v4184
    %v4186 = vand.u32 %v4185, 4294901760
    %v4187 = vsub.f32 %v4185, %v4186
    %v4188 = vand.u32 %v4187, 4294901760
    %4189 = vmatpush.msra.mxu0 %v4188
    %v4190 = vand.u32 %v2352, 4294901760
    %v4191 = vsub.f32 %v2352, %v4190
    %v4192 = vand.u32 %v4191, 4294901760
    %v4193 = vsub.f32 %v4191, %v4192
    %v4194 = vand.u32 %v4193, 4294901760
    %4195 = vmatpush.msra.mxu0 %v4194
    %v4196 = vand.u32 %v2351, 4294901760
    %v4197 = vsub.f32 %v2351, %v4196
    %v4198 = vand.u32 %v4197, 4294901760
    %v4199 = vsub.f32 %v4197, %v4198
    %v4200 = vand.u32 %v4199, 4294901760
    %4201 = vmatpush.msra.mxu0 %v4200
    %v4202 = vand.u32 %v2350, 4294901760
    %v4203 = vsub.f32 %v2350, %v4202
    %v4204 = vand.u32 %v4203, 4294901760
    %v4205 = vsub.f32 %v4203, %v4204
    %v4206 = vand.u32 %v4205, 4294901760
    %4207 = vmatpush.msra.mxu0 %v4206
    %v4208 = vand.u32 %v2349, 4294901760
    %v4209 = vsub.f32 %v2349, %v4208
    %v4210 = vand.u32 %v4209, 4294901760
    %v4211 = vsub.f32 %v4209, %v4210
    %v4212 = vand.u32 %v4211, 4294901760
    %4213 = vmatpush.msra.mxu0 %v4212
    %v4214 = vand.u32 %v2348, 4294901760
    %v4215 = vsub.f32 %v2348, %v4214
    %v4216 = vand.u32 %v4215, 4294901760
    %v4217 = vsub.f32 %v4215, %v4216
    %v4218 = vand.u32 %v4217, 4294901760
    %4219 = vmatpush.msra.mxu0 %v4218
    %v4220 = vand.u32 %v2347, 4294901760
    %v4221 = vsub.f32 %v2347, %v4220
    %v4222 = vand.u32 %v4221, 4294901760
    %v4223 = vsub.f32 %v4221, %v4222
    %v4224 = vand.u32 %v4223, 4294901760
    %4225 = vmatpush.msra.mxu0 %v4224
    %v4226 = vand.u32 %v2346, 4294901760
    %v4227 = vsub.f32 %v2346, %v4226
    %v4228 = vand.u32 %v4227, 4294901760
    %v4229 = vsub.f32 %v4227, %v4228
    %v4230 = vand.u32 %v4229, 4294901760
    %4231 = vmatpush.msra.mxu0 %v4230
    %v4232 = vand.u32 %v2345, 4294901760
    %v4233 = vsub.f32 %v2345, %v4232
    %v4234 = vand.u32 %v4233, 4294901760
    %v4235 = vsub.f32 %v4233, %v4234
    %v4236 = vand.u32 %v4235, 4294901760
    %4237 = vmatpush.msra.mxu0 %v4236
    %v4238 = vand.u32 %v1999, 4294901760
    %4239 = vmatmul.f32.gmra.mxu0 %v4238
    %v4240 = vpop.f32.mrf.mxu0
    %v4241 = vadd.f32 %v4124, %v4240
    %v4242 = vand.u32 %v2063, 4294901760
    %4243 = vmatmul.f32.gmra.mxu0 %v4242
    %v4244 = vpop.f32.mrf.mxu0
    %v4245 = vadd.f32 %v4132, %v4244
    %v4246 = vand.u32 %v2127, 4294901760
    %4247 = vmatmul.f32.gmra.mxu0 %v4246
    %v4248 = vpop.f32.mrf.mxu0
    %v4249 = vadd.f32 %v4140, %v4248
    %4250 = vdwg.mxu0
    %v4251 = vand.u32 %v2360, 4294901760
    %v4252 = vsub.f32 %v2360, %v4251
    %4253 = vmatpush.msra.mxu0 %v4252
    %v4254 = vand.u32 %v2359, 4294901760
    %v4255 = vsub.f32 %v2359, %v4254
    %4256 = vmatpush.msra.mxu0 %v4255
    %v4257 = vand.u32 %v2358, 4294901760
    %v4258 = vsub.f32 %v2358, %v4257
    %4259 = vmatpush.msra.mxu0 %v4258
    %v4260 = vand.u32 %v2357, 4294901760
    %v4261 = vsub.f32 %v2357, %v4260
    %4262 = vmatpush.msra.mxu0 %v4261
    %v4263 = vand.u32 %v2356, 4294901760
    %v4264 = vsub.f32 %v2356, %v4263
    %4265 = vmatpush.msra.mxu0 %v4264
    %v4266 = vand.u32 %v2355, 4294901760
    %v4267 = vsub.f32 %v2355, %v4266
    %4268 = vmatpush.msra.mxu0 %v4267
    %v4269 = vand.u32 %v2354, 4294901760
    %v4270 = vsub.f32 %v2354, %v4269
    %4271 = vmatpush.msra.mxu0 %v4270
    %v4272 = vand.u32 %v2353, 4294901760
    %v4273 = vsub.f32 %v2353, %v4272
    %4274 = vmatpush.msra.mxu0 %v4273
    %v4275 = vand.u32 %v2352, 4294901760
    %v4276 = vsub.f32 %v2352, %v4275
    %4277 = vmatpush.msra.mxu0 %v4276
    %v4278 = vand.u32 %v2351, 4294901760
    %v4279 = vsub.f32 %v2351, %v4278
    %4280 = vmatpush.msra.mxu0 %v4279
    %v4281 = vand.u32 %v2350, 4294901760
    %v4282 = vsub.f32 %v2350, %v4281
    %4283 = vmatpush.msra.mxu0 %v4282
    %v4284 = vand.u32 %v2349, 4294901760
    %v4285 = vsub.f32 %v2349, %v4284
    %4286 = vmatpush.msra.mxu0 %v4285
    %v4287 = vand.u32 %v2348, 4294901760
    %v4288 = vsub.f32 %v2348, %v4287
    %4289 = vmatpush.msra.mxu0 %v4288
    %v4290 = vand.u32 %v2347, 4294901760
    %v4291 = vsub.f32 %v2347, %v4290
    %4292 = vmatpush.msra.mxu0 %v4291
    %v4293 = vand.u32 %v2346, 4294901760
    %v4294 = vsub.f32 %v2346, %v4293
    %4295 = vmatpush.msra.mxu0 %v4294
    %v4296 = vand.u32 %v2345, 4294901760
    %v4297 = vsub.f32 %v2345, %v4296
    %4298 = vmatpush.msra.mxu0 %v4297
    %v4299 = vand.u32 %v1999, 4294901760
    %v4300 = vsub.f32 %v1999, %v4299
    %4301 = vmatmul.f32.gmra.mxu0 %v4300
    %v4302 = vpop.f32.mrf.mxu0
    %v4303 = vadd.f32 %v4241, %v4302
    %v4304 = vand.u32 %v2063, 4294901760
    %v4305 = vsub.f32 %v2063, %v4304
    %4306 = vmatmul.f32.gmra.mxu0 %v4305
    %v4307 = vpop.f32.mrf.mxu0
    %v4308 = vadd.f32 %v4245, %v4307
    %v4309 = vand.u32 %v2127, 4294901760
    %v4310 = vsub.f32 %v2127, %v4309
    %4311 = vmatmul.f32.gmra.mxu0 %v4310
    %v4312 = vpop.f32.mrf.mxu0
    %v4313 = vadd.f32 %v4249, %v4312
    %4314 = vdwg.mxu0
    %v4315 = vand.u32 %v2360, 4294901760
    %4316 = vmatpush.msra.mxu0 %v4315
    %v4317 = vand.u32 %v2359, 4294901760
    %4318 = vmatpush.msra.mxu0 %v4317
    %v4319 = vand.u32 %v2358, 4294901760
    %4320 = vmatpush.msra.mxu0 %v4319
    %v4321 = vand.u32 %v2357, 4294901760
    %4322 = vmatpush.msra.mxu0 %v4321
    %v4323 = vand.u32 %v2356, 4294901760
    %4324 = vmatpush.msra.mxu0 %v4323
    %v4325 = vand.u32 %v2355, 4294901760
    %4326 = vmatpush.msra.mxu0 %v4325
    %v4327 = vand.u32 %v2354, 4294901760
    %4328 = vmatpush.msra.mxu0 %v4327
    %v4329 = vand.u32 %v2353, 4294901760
    %4330 = vmatpush.msra.mxu0 %v4329
    %v4331 = vand.u32 %v2352, 4294901760
    %4332 = vmatpush.msra.mxu0 %v4331
    %v4333 = vand.u32 %v2351, 4294901760
    %4334 = vmatpush.msra.mxu0 %v4333
    %v4335 = vand.u32 %v2350, 4294901760
    %4336 = vmatpush.msra.mxu0 %v4335
    %v4337 = vand.u32 %v2349, 4294901760
    %4338 = vmatpush.msra.mxu0 %v4337
    %v4339 = vand.u32 %v2348, 4294901760
    %4340 = vmatpush.msra.mxu0 %v4339
    %v4341 = vand.u32 %v2347, 4294901760
    %4342 = vmatpush.msra.mxu0 %v4341
    %v4343 = vand.u32 %v2346, 4294901760
    %4344 = vmatpush.msra.mxu0 %v4343
    %v4345 = vand.u32 %v2345, 4294901760
    %4346 = vmatpush.msra.mxu0 %v4345
    %v4347 = vand.u32 %v1999, 4294901760
    %v4348 = vsub.f32 %v1999, %v4347
    %v4349 = vand.u32 %v4348, 4294901760
    %4350 = vmatmul.f32.gmra.mxu0 %v4349
    %v4351 = vpop.f32.mrf.mxu0
    %v4352 = vadd.f32 %v4303, %v4351
    %v4353 = vand.u32 %v2063, 4294901760
    %v4354 = vsub.f32 %v2063, %v4353
    %v4355 = vand.u32 %v4354, 4294901760
    %4356 = vmatmul.f32.gmra.mxu0 %v4355
    %v4357 = vpop.f32.mrf.mxu0
    %v4358 = vadd.f32 %v4308, %v4357
    %v4359 = vand.u32 %v2127, 4294901760
    %v4360 = vsub.f32 %v2127, %v4359
    %v4361 = vand.u32 %v4360, 4294901760
    %4362 = vmatmul.f32.gmra.mxu0 %v4361
    %v4363 = vpop.f32.mrf.mxu0
    %v4364 = vadd.f32 %v4313, %v4363
    %4365 = vdwg.mxu0
    %v4366 = vand.u32 %v2360, 4294901760
    %v4367 = vsub.f32 %v2360, %v4366
    %v4368 = vand.u32 %v4367, 4294901760
    %4369 = vmatpush.msra.mxu0 %v4368
    %v4370 = vand.u32 %v2359, 4294901760
    %v4371 = vsub.f32 %v2359, %v4370
    %v4372 = vand.u32 %v4371, 4294901760
    %4373 = vmatpush.msra.mxu0 %v4372
    %v4374 = vand.u32 %v2358, 4294901760
    %v4375 = vsub.f32 %v2358, %v4374
    %v4376 = vand.u32 %v4375, 4294901760
    %4377 = vmatpush.msra.mxu0 %v4376
    %v4378 = vand.u32 %v2357, 4294901760
    %v4379 = vsub.f32 %v2357, %v4378
    %v4380 = vand.u32 %v4379, 4294901760
    %4381 = vmatpush.msra.mxu0 %v4380
    %v4382 = vand.u32 %v2356, 4294901760
    %v4383 = vsub.f32 %v2356, %v4382
    %v4384 = vand.u32 %v4383, 4294901760
    %4385 = vmatpush.msra.mxu0 %v4384
    %v4386 = vand.u32 %v2355, 4294901760
    %v4387 = vsub.f32 %v2355, %v4386
    %v4388 = vand.u32 %v4387, 4294901760
    %4389 = vmatpush.msra.mxu0 %v4388
    %v4390 = vand.u32 %v2354, 4294901760
    %v4391 = vsub.f32 %v2354, %v4390
    %v4392 = vand.u32 %v4391, 4294901760
    %4393 = vmatpush.msra.mxu0 %v4392
    %v4394 = vand.u32 %v2353, 4294901760
    %v4395 = vsub.f32 %v2353, %v4394
    %v4396 = vand.u32 %v4395, 4294901760
    %4397 = vmatpush.msra.mxu0 %v4396
    %v4398 = vand.u32 %v2352, 4294901760
    %v4399 = vsub.f32 %v2352, %v4398
    %v4400 = vand.u32 %v4399, 4294901760
    %4401 = vmatpush.msra.mxu0 %v4400
    %v4402 = vand.u32 %v2351, 4294901760
    %v4403 = vsub.f32 %v2351, %v4402
    %v4404 = vand.u32 %v4403, 4294901760
    %4405 = vmatpush.msra.mxu0 %v4404
    %v4406 = vand.u32 %v2350, 4294901760
    %v4407 = vsub.f32 %v2350, %v4406
    %v4408 = vand.u32 %v4407, 4294901760
    %4409 = vmatpush.msra.mxu0 %v4408
    %v4410 = vand.u32 %v2349, 4294901760
    %v4411 = vsub.f32 %v2349, %v4410
    %v4412 = vand.u32 %v4411, 4294901760
    %4413 = vmatpush.msra.mxu0 %v4412
    %v4414 = vand.u32 %v2348, 4294901760
    %v4415 = vsub.f32 %v2348, %v4414
    %v4416 = vand.u32 %v4415, 4294901760
    %4417 = vmatpush.msra.mxu0 %v4416
    %v4418 = vand.u32 %v2347, 4294901760
    %v4419 = vsub.f32 %v2347, %v4418
    %v4420 = vand.u32 %v4419, 4294901760
    %4421 = vmatpush.msra.mxu0 %v4420
    %v4422 = vand.u32 %v2346, 4294901760
    %v4423 = vsub.f32 %v2346, %v4422
    %v4424 = vand.u32 %v4423, 4294901760
    %4425 = vmatpush.msra.mxu0 %v4424
    %v4426 = vand.u32 %v2345, 4294901760
    %v4427 = vsub.f32 %v2345, %v4426
    %v4428 = vand.u32 %v4427, 4294901760
    %4429 = vmatpush.msra.mxu0 %v4428
    %v4430 = vand.u32 %v1999, 4294901760
    %4431 = vmatmul.f32.gmra.mxu0 %v4430
    %v4432 = vpop.f32.mrf.mxu0
    %v4433 = vadd.f32 %v4352, %v4432
    %v4434 = vand.u32 %v2063, 4294901760
    %4435 = vmatmul.f32.gmra.mxu0 %v4434
    %v4436 = vpop.f32.mrf.mxu0
    %v4437 = vadd.f32 %v4358, %v4436
    %v4438 = vand.u32 %v2127, 4294901760
    %4439 = vmatmul.f32.gmra.mxu0 %v4438
    %v4440 = vpop.f32.mrf.mxu0
    %v4441 = vadd.f32 %v4364, %v4440
    %4442 = vdwg.mxu0
    %v4443 = vand.u32 %v2360, 4294901760
    %4444 = vmatpush.msra.mxu0 %v4443
    %v4445 = vand.u32 %v2359, 4294901760
    %4446 = vmatpush.msra.mxu0 %v4445
    %v4447 = vand.u32 %v2358, 4294901760
    %4448 = vmatpush.msra.mxu0 %v4447
    %v4449 = vand.u32 %v2357, 4294901760
    %4450 = vmatpush.msra.mxu0 %v4449
    %v4451 = vand.u32 %v2356, 4294901760
    %4452 = vmatpush.msra.mxu0 %v4451
    %v4453 = vand.u32 %v2355, 4294901760
    %4454 = vmatpush.msra.mxu0 %v4453
    %v4455 = vand.u32 %v2354, 4294901760
    %4456 = vmatpush.msra.mxu0 %v4455
    %v4457 = vand.u32 %v2353, 4294901760
    %4458 = vmatpush.msra.mxu0 %v4457
    %v4459 = vand.u32 %v2352, 4294901760
    %4460 = vmatpush.msra.mxu0 %v4459
    %v4461 = vand.u32 %v2351, 4294901760
    %4462 = vmatpush.msra.mxu0 %v4461
    %v4463 = vand.u32 %v2350, 4294901760
    %4464 = vmatpush.msra.mxu0 %v4463
    %v4465 = vand.u32 %v2349, 4294901760
    %4466 = vmatpush.msra.mxu0 %v4465
    %v4467 = vand.u32 %v2348, 4294901760
    %4468 = vmatpush.msra.mxu0 %v4467
    %v4469 = vand.u32 %v2347, 4294901760
    %4470 = vmatpush.msra.mxu0 %v4469
    %v4471 = vand.u32 %v2346, 4294901760
    %4472 = vmatpush.msra.mxu0 %v4471
    %v4473 = vand.u32 %v2345, 4294901760
    %4474 = vmatpush.msra.mxu0 %v4473
    %v4475 = vand.u32 %v1999, 4294901760
    %4476 = vmatmul.f32.gmra.mxu0 %v4475
    %v4477 = vpop.f32.mrf.mxu0
    %v4478 = vadd.f32 %v4433, %v4477
    %v4479 = vand.u32 %v2063, 4294901760
    %4480 = vmatmul.f32.gmra.mxu0 %v4479
    %v4481 = vpop.f32.mrf.mxu0
    %v4482 = vadd.f32 %v4437, %v4481
    %v4483 = vand.u32 %v2127, 4294901760
    %4484 = vmatmul.f32.gmra.mxu0 %v4483
    %v4485 = vpop.f32.mrf.mxu0
    %v4486 = vadd.f32 %v4441, %v4485
    %4487 = vdwg.mxu0
    %v4488 = vand.u32 %v2376, 4294901760
    %4489 = vmatpush.msra.mxu0 %v4488
    %v4490 = vand.u32 %v2375, 4294901760
    %4491 = vmatpush.msra.mxu0 %v4490
    %v4492 = vand.u32 %v2374, 4294901760
    %4493 = vmatpush.msra.mxu0 %v4492
    %v4494 = vand.u32 %v2373, 4294901760
    %4495 = vmatpush.msra.mxu0 %v4494
    %v4496 = vand.u32 %v2372, 4294901760
    %4497 = vmatpush.msra.mxu0 %v4496
    %v4498 = vand.u32 %v2371, 4294901760
    %4499 = vmatpush.msra.mxu0 %v4498
    %v4500 = vand.u32 %v2370, 4294901760
    %4501 = vmatpush.msra.mxu0 %v4500
    %v4502 = vand.u32 %v2369, 4294901760
    %4503 = vmatpush.msra.mxu0 %v4502
    %v4504 = vand.u32 %v2368, 4294901760
    %4505 = vmatpush.msra.mxu0 %v4504
    %v4506 = vand.u32 %v2367, 4294901760
    %4507 = vmatpush.msra.mxu0 %v4506
    %v4508 = vand.u32 %v2366, 4294901760
    %4509 = vmatpush.msra.mxu0 %v4508
    %v4510 = vand.u32 %v2365, 4294901760
    %4511 = vmatpush.msra.mxu0 %v4510
    %v4512 = vand.u32 %v2364, 4294901760
    %4513 = vmatpush.msra.mxu0 %v4512
    %v4514 = vand.u32 %v2363, 4294901760
    %4515 = vmatpush.msra.mxu0 %v4514
    %v4516 = vand.u32 %v2362, 4294901760
    %4517 = vmatpush.msra.mxu0 %v4516
    %v4518 = vand.u32 %v2361, 4294901760
    %4519 = vmatpush.msra.mxu0 %v4518
    %v4520 = vand.u32 %v2006, 4294901760
    %v4521 = vsub.f32 %v2006, %v4520
    %v4522 = vand.u32 %v4521, 4294901760
    %v4523 = vsub.f32 %v4521, %v4522
    %v4524 = vand.u32 %v4523, 4294901760
    %4525 = vmatmul.f32.gmra.mxu0 %v4524
    %v4526 = vpop.f32.mrf.mxu0
    %v4527 = vadd.f32 %v4478, %v4526
    %v4528 = vand.u32 %v2070, 4294901760
    %v4529 = vsub.f32 %v2070, %v4528
    %v4530 = vand.u32 %v4529, 4294901760
    %v4531 = vsub.f32 %v4529, %v4530
    %v4532 = vand.u32 %v4531, 4294901760
    %4533 = vmatmul.f32.gmra.mxu0 %v4532
    %v4534 = vpop.f32.mrf.mxu0
    %v4535 = vadd.f32 %v4482, %v4534
    %v4536 = vand.u32 %v2134, 4294901760
    %v4537 = vsub.f32 %v2134, %v4536
    %v4538 = vand.u32 %v4537, 4294901760
    %v4539 = vsub.f32 %v4537, %v4538
    %v4540 = vand.u32 %v4539, 4294901760
    %4541 = vmatmul.f32.gmra.mxu0 %v4540
    %v4542 = vpop.f32.mrf.mxu0
    %v4543 = vadd.f32 %v4486, %v4542
    %4544 = vdwg.mxu0
    %v4545 = vand.u32 %v2376, 4294901760
    %v4546 = vsub.f32 %v2376, %v4545
    %v4547 = vand.u32 %v4546, 4294901760
    %v4548 = vsub.f32 %v4546, %v4547
    %v4549 = vand.u32 %v4548, 4294901760
    %4550 = vmatpush.msra.mxu0 %v4549
    %v4551 = vand.u32 %v2375, 4294901760
    %v4552 = vsub.f32 %v2375, %v4551
    %v4553 = vand.u32 %v4552, 4294901760
    %v4554 = vsub.f32 %v4552, %v4553
    %v4555 = vand.u32 %v4554, 4294901760
    %4556 = vmatpush.msra.mxu0 %v4555
    %v4557 = vand.u32 %v2374, 4294901760
    %v4558 = vsub.f32 %v2374, %v4557
    %v4559 = vand.u32 %v4558, 4294901760
    %v4560 = vsub.f32 %v4558, %v4559
    %v4561 = vand.u32 %v4560, 4294901760
    %4562 = vmatpush.msra.mxu0 %v4561
    %v4563 = vand.u32 %v2373, 4294901760
    %v4564 = vsub.f32 %v2373, %v4563
    %v4565 = vand.u32 %v4564, 4294901760
    %v4566 = vsub.f32 %v4564, %v4565
    %v4567 = vand.u32 %v4566, 4294901760
    %4568 = vmatpush.msra.mxu0 %v4567
    %v4569 = vand.u32 %v2372, 4294901760
    %v4570 = vsub.f32 %v2372, %v4569
    %v4571 = vand.u32 %v4570, 4294901760
    %v4572 = vsub.f32 %v4570, %v4571
    %v4573 = vand.u32 %v4572, 4294901760
    %4574 = vmatpush.msra.mxu0 %v4573
    %v4575 = vand.u32 %v2371, 4294901760
    %v4576 = vsub.f32 %v2371, %v4575
    %v4577 = vand.u32 %v4576, 4294901760
    %v4578 = vsub.f32 %v4576, %v4577
    %v4579 = vand.u32 %v4578, 4294901760
    %4580 = vmatpush.msra.mxu0 %v4579
    %v4581 = vand.u32 %v2370, 4294901760
    %v4582 = vsub.f32 %v2370, %v4581
    %v4583 = vand.u32 %v4582, 4294901760
    %v4584 = vsub.f32 %v4582, %v4583
    %v4585 = vand.u32 %v4584, 4294901760
    %4586 = vmatpush.msra.mxu0 %v4585
    %v4587 = vand.u32 %v2369, 4294901760
    %v4588 = vsub.f32 %v2369, %v4587
    %v4589 = vand.u32 %v4588, 4294901760
    %v4590 = vsub.f32 %v4588, %v4589
    %v4591 = vand.u32 %v4590, 4294901760
    %4592 = vmatpush.msra.mxu0 %v4591
    %v4593 = vand.u32 %v2368, 4294901760
    %v4594 = vsub.f32 %v2368, %v4593
    %v4595 = vand.u32 %v4594, 4294901760
    %v4596 = vsub.f32 %v4594, %v4595
    %v4597 = vand.u32 %v4596, 4294901760
    %4598 = vmatpush.msra.mxu0 %v4597
    %v4599 = vand.u32 %v2367, 4294901760
    %v4600 = vsub.f32 %v2367, %v4599
    %v4601 = vand.u32 %v4600, 4294901760
    %v4602 = vsub.f32 %v4600, %v4601
    %v4603 = vand.u32 %v4602, 4294901760
    %4604 = vmatpush.msra.mxu0 %v4603
    %v4605 = vand.u32 %v2366, 4294901760
    %v4606 = vsub.f32 %v2366, %v4605
    %v4607 = vand.u32 %v4606, 4294901760
    %v4608 = vsub.f32 %v4606, %v4607
    %v4609 = vand.u32 %v4608, 4294901760
    %4610 = vmatpush.msra.mxu0 %v4609
    %v4611 = vand.u32 %v2365, 4294901760
    %v4612 = vsub.f32 %v2365, %v4611
    %v4613 = vand.u32 %v4612, 4294901760
    %v4614 = vsub.f32 %v4612, %v4613
    %v4615 = vand.u32 %v4614, 4294901760
    %4616 = vmatpush.msra.mxu0 %v4615
    %v4617 = vand.u32 %v2364, 4294901760
    %v4618 = vsub.f32 %v2364, %v4617
    %v4619 = vand.u32 %v4618, 4294901760
    %v4620 = vsub.f32 %v4618, %v4619
    %v4621 = vand.u32 %v4620, 4294901760
    %4622 = vmatpush.msra.mxu0 %v4621
    %v4623 = vand.u32 %v2363, 4294901760
    %v4624 = vsub.f32 %v2363, %v4623
    %v4625 = vand.u32 %v4624, 4294901760
    %v4626 = vsub.f32 %v4624, %v4625
    %v4627 = vand.u32 %v4626, 4294901760
    %4628 = vmatpush.msra.mxu0 %v4627
    %v4629 = vand.u32 %v2362, 4294901760
    %v4630 = vsub.f32 %v2362, %v4629
    %v4631 = vand.u32 %v4630, 4294901760
    %v4632 = vsub.f32 %v4630, %v4631
    %v4633 = vand.u32 %v4632, 4294901760
    %4634 = vmatpush.msra.mxu0 %v4633
    %v4635 = vand.u32 %v2361, 4294901760
    %v4636 = vsub.f32 %v2361, %v4635
    %v4637 = vand.u32 %v4636, 4294901760
    %v4638 = vsub.f32 %v4636, %v4637
    %v4639 = vand.u32 %v4638, 4294901760
    %4640 = vmatpush.msra.mxu0 %v4639
    %v4641 = vand.u32 %v2006, 4294901760
    %4642 = vmatmul.f32.gmra.mxu0 %v4641
    %v4643 = vpop.f32.mrf.mxu0
    %v4644 = vadd.f32 %v4527, %v4643
    %v4645 = vand.u32 %v2070, 4294901760
    %4646 = vmatmul.f32.gmra.mxu0 %v4645
    %v4647 = vpop.f32.mrf.mxu0
    %v4648 = vadd.f32 %v4535, %v4647
    %v4649 = vand.u32 %v2134, 4294901760
    %4650 = vmatmul.f32.gmra.mxu0 %v4649
    %v4651 = vpop.f32.mrf.mxu0
    %v4652 = vadd.f32 %v4543, %v4651
    %4653 = vdwg.mxu0
    %v4654 = vand.u32 %v2376, 4294901760
    %v4655 = vsub.f32 %v2376, %v4654
    %4656 = vmatpush.msra.mxu0 %v4655
    %v4657 = vand.u32 %v2375, 4294901760
    %v4658 = vsub.f32 %v2375, %v4657
    %4659 = vmatpush.msra.mxu0 %v4658
    %v4660 = vand.u32 %v2374, 4294901760
    %v4661 = vsub.f32 %v2374, %v4660
    %4662 = vmatpush.msra.mxu0 %v4661
    %v4663 = vand.u32 %v2373, 4294901760
    %v4664 = vsub.f32 %v2373, %v4663
    %4665 = vmatpush.msra.mxu0 %v4664
    %v4666 = vand.u32 %v2372, 4294901760
    %v4667 = vsub.f32 %v2372, %v4666
    %4668 = vmatpush.msra.mxu0 %v4667
    %v4669 = vand.u32 %v2371, 4294901760
    %v4670 = vsub.f32 %v2371, %v4669
    %4671 = vmatpush.msra.mxu0 %v4670
    %v4672 = vand.u32 %v2370, 4294901760
    %v4673 = vsub.f32 %v2370, %v4672
    %4674 = vmatpush.msra.mxu0 %v4673
    %v4675 = vand.u32 %v2369, 4294901760
    %v4676 = vsub.f32 %v2369, %v4675
    %4677 = vmatpush.msra.mxu0 %v4676
    %v4678 = vand.u32 %v2368, 4294901760
    %v4679 = vsub.f32 %v2368, %v4678
    %4680 = vmatpush.msra.mxu0 %v4679
    %v4681 = vand.u32 %v2367, 4294901760
    %v4682 = vsub.f32 %v2367, %v4681
    %4683 = vmatpush.msra.mxu0 %v4682
    %v4684 = vand.u32 %v2366, 4294901760
    %v4685 = vsub.f32 %v2366, %v4684
    %4686 = vmatpush.msra.mxu0 %v4685
    %v4687 = vand.u32 %v2365, 4294901760
    %v4688 = vsub.f32 %v2365, %v4687
    %4689 = vmatpush.msra.mxu0 %v4688
    %v4690 = vand.u32 %v2364, 4294901760
    %v4691 = vsub.f32 %v2364, %v4690
    %4692 = vmatpush.msra.mxu0 %v4691
    %v4693 = vand.u32 %v2363, 4294901760
    %v4694 = vsub.f32 %v2363, %v4693
    %4695 = vmatpush.msra.mxu0 %v4694
    %v4696 = vand.u32 %v2362, 4294901760
    %v4697 = vsub.f32 %v2362, %v4696
    %4698 = vmatpush.msra.mxu0 %v4697
    %v4699 = vand.u32 %v2361, 4294901760
    %v4700 = vsub.f32 %v2361, %v4699
    %4701 = vmatpush.msra.mxu0 %v4700
    %v4702 = vand.u32 %v2006, 4294901760
    %v4703 = vsub.f32 %v2006, %v4702
    %4704 = vmatmul.f32.gmra.mxu0 %v4703
    %v4705 = vpop.f32.mrf.mxu0
    %v4706 = vadd.f32 %v4644, %v4705
    %v4707 = vand.u32 %v2070, 4294901760
    %v4708 = vsub.f32 %v2070, %v4707
    %4709 = vmatmul.f32.gmra.mxu0 %v4708
    %v4710 = vpop.f32.mrf.mxu0
    %v4711 = vadd.f32 %v4648, %v4710
    %v4712 = vand.u32 %v2134, 4294901760
    %v4713 = vsub.f32 %v2134, %v4712
    %4714 = vmatmul.f32.gmra.mxu0 %v4713
    %v4715 = vpop.f32.mrf.mxu0
    %v4716 = vadd.f32 %v4652, %v4715
    %4717 = vdwg.mxu0
    %v4718 = vand.u32 %v2376, 4294901760
    %4719 = vmatpush.msra.mxu0 %v4718
    %v4720 = vand.u32 %v2375, 4294901760
    %4721 = vmatpush.msra.mxu0 %v4720
    %v4722 = vand.u32 %v2374, 4294901760
    %4723 = vmatpush.msra.mxu0 %v4722
    %v4724 = vand.u32 %v2373, 4294901760
    %4725 = vmatpush.msra.mxu0 %v4724
    %v4726 = vand.u32 %v2372, 4294901760
    %4727 = vmatpush.msra.mxu0 %v4726
    %v4728 = vand.u32 %v2371, 4294901760
    %4729 = vmatpush.msra.mxu0 %v4728
    %v4730 = vand.u32 %v2370, 4294901760
    %4731 = vmatpush.msra.mxu0 %v4730
    %v4732 = vand.u32 %v2369, 4294901760
    %4733 = vmatpush.msra.mxu0 %v4732
    %v4734 = vand.u32 %v2368, 4294901760
    %4735 = vmatpush.msra.mxu0 %v4734
    %v4736 = vand.u32 %v2367, 4294901760
    %4737 = vmatpush.msra.mxu0 %v4736
    %v4738 = vand.u32 %v2366, 4294901760
    %4739 = vmatpush.msra.mxu0 %v4738
    %v4740 = vand.u32 %v2365, 4294901760
    %4741 = vmatpush.msra.mxu0 %v4740
    %v4742 = vand.u32 %v2364, 4294901760
    %4743 = vmatpush.msra.mxu0 %v4742
    %v4744 = vand.u32 %v2363, 4294901760
    %4745 = vmatpush.msra.mxu0 %v4744
    %v4746 = vand.u32 %v2362, 4294901760
    %4747 = vmatpush.msra.mxu0 %v4746
    %v4748 = vand.u32 %v2361, 4294901760
    %4749 = vmatpush.msra.mxu0 %v4748
    %v4750 = vand.u32 %v2006, 4294901760
    %v4751 = vsub.f32 %v2006, %v4750
    %v4752 = vand.u32 %v4751, 4294901760
    %4753 = vmatmul.f32.gmra.mxu0 %v4752
    %v4754 = vpop.f32.mrf.mxu0
    %v4755 = vadd.f32 %v4706, %v4754
    %v4756 = vand.u32 %v2070, 4294901760
    %v4757 = vsub.f32 %v2070, %v4756
    %v4758 = vand.u32 %v4757, 4294901760
    %4759 = vmatmul.f32.gmra.mxu0 %v4758
    %v4760 = vpop.f32.mrf.mxu0
    %v4761 = vadd.f32 %v4711, %v4760
    %v4762 = vand.u32 %v2134, 4294901760
    %v4763 = vsub.f32 %v2134, %v4762
    %v4764 = vand.u32 %v4763, 4294901760
    %4765 = vmatmul.f32.gmra.mxu0 %v4764
    %v4766 = vpop.f32.mrf.mxu0
    %v4767 = vadd.f32 %v4716, %v4766
    %4768 = vdwg.mxu0
    %v4769 = vand.u32 %v2376, 4294901760
    %v4770 = vsub.f32 %v2376, %v4769
    %v4771 = vand.u32 %v4770, 4294901760
    %4772 = vmatpush.msra.mxu0 %v4771
    %v4773 = vand.u32 %v2375, 4294901760
    %v4774 = vsub.f32 %v2375, %v4773
    %v4775 = vand.u32 %v4774, 4294901760
    %4776 = vmatpush.msra.mxu0 %v4775
    %v4777 = vand.u32 %v2374, 4294901760
    %v4778 = vsub.f32 %v2374, %v4777
    %v4779 = vand.u32 %v4778, 4294901760
    %4780 = vmatpush.msra.mxu0 %v4779
    %v4781 = vand.u32 %v2373, 4294901760
    %v4782 = vsub.f32 %v2373, %v4781
    %v4783 = vand.u32 %v4782, 4294901760
    %4784 = vmatpush.msra.mxu0 %v4783
    %v4785 = vand.u32 %v2372, 4294901760
    %v4786 = vsub.f32 %v2372, %v4785
    %v4787 = vand.u32 %v4786, 4294901760
    %4788 = vmatpush.msra.mxu0 %v4787
    %v4789 = vand.u32 %v2371, 4294901760
    %v4790 = vsub.f32 %v2371, %v4789
    %v4791 = vand.u32 %v4790, 4294901760
    %4792 = vmatpush.msra.mxu0 %v4791
    %v4793 = vand.u32 %v2370, 4294901760
    %v4794 = vsub.f32 %v2370, %v4793
    %v4795 = vand.u32 %v4794, 4294901760
    %4796 = vmatpush.msra.mxu0 %v4795
    %v4797 = vand.u32 %v2369, 4294901760
    %v4798 = vsub.f32 %v2369, %v4797
    %v4799 = vand.u32 %v4798, 4294901760
    %4800 = vmatpush.msra.mxu0 %v4799
    %v4801 = vand.u32 %v2368, 4294901760
    %v4802 = vsub.f32 %v2368, %v4801
    %v4803 = vand.u32 %v4802, 4294901760
    %4804 = vmatpush.msra.mxu0 %v4803
    %v4805 = vand.u32 %v2367, 4294901760
    %v4806 = vsub.f32 %v2367, %v4805
    %v4807 = vand.u32 %v4806, 4294901760
    %4808 = vmatpush.msra.mxu0 %v4807
    %v4809 = vand.u32 %v2366, 4294901760
    %v4810 = vsub.f32 %v2366, %v4809
    %v4811 = vand.u32 %v4810, 4294901760
    %4812 = vmatpush.msra.mxu0 %v4811
    %v4813 = vand.u32 %v2365, 4294901760
    %v4814 = vsub.f32 %v2365, %v4813
    %v4815 = vand.u32 %v4814, 4294901760
    %4816 = vmatpush.msra.mxu0 %v4815
    %v4817 = vand.u32 %v2364, 4294901760
    %v4818 = vsub.f32 %v2364, %v4817
    %v4819 = vand.u32 %v4818, 4294901760
    %4820 = vmatpush.msra.mxu0 %v4819
    %v4821 = vand.u32 %v2363, 4294901760
    %v4822 = vsub.f32 %v2363, %v4821
    %v4823 = vand.u32 %v4822, 4294901760
    %4824 = vmatpush.msra.mxu0 %v4823
    %v4825 = vand.u32 %v2362, 4294901760
    %v4826 = vsub.f32 %v2362, %v4825
    %v4827 = vand.u32 %v4826, 4294901760
    %4828 = vmatpush.msra.mxu0 %v4827
    %v4829 = vand.u32 %v2361, 4294901760
    %v4830 = vsub.f32 %v2361, %v4829
    %v4831 = vand.u32 %v4830, 4294901760
    %4832 = vmatpush.msra.mxu0 %v4831
    %v4833 = vand.u32 %v2006, 4294901760
    %4834 = vmatmul.f32.gmra.mxu0 %v4833
    %v4835 = vpop.f32.mrf.mxu0
    %v4836 = vadd.f32 %v4755, %v4835
    %v4837 = vand.u32 %v2070, 4294901760
    %4838 = vmatmul.f32.gmra.mxu0 %v4837
    %v4839 = vpop.f32.mrf.mxu0
    %v4840 = vadd.f32 %v4761, %v4839
    %v4841 = vand.u32 %v2134, 4294901760
    %4842 = vmatmul.f32.gmra.mxu0 %v4841
    %v4843 = vpop.f32.mrf.mxu0
    %v4844 = vadd.f32 %v4767, %v4843
    %4845 = vdwg.mxu0
    %v4846 = vand.u32 %v2376, 4294901760
    %4847 = vmatpush.msra.mxu0 %v4846
    %v4848 = vand.u32 %v2375, 4294901760
    %4849 = vmatpush.msra.mxu0 %v4848
    %v4850 = vand.u32 %v2374, 4294901760
    %4851 = vmatpush.msra.mxu0 %v4850
    %v4852 = vand.u32 %v2373, 4294901760
    %4853 = vmatpush.msra.mxu0 %v4852
    %v4854 = vand.u32 %v2372, 4294901760
    %4855 = vmatpush.msra.mxu0 %v4854
    %v4856 = vand.u32 %v2371, 4294901760
    %4857 = vmatpush.msra.mxu0 %v4856
    %v4858 = vand.u32 %v2370, 4294901760
    %4859 = vmatpush.msra.mxu0 %v4858
    %v4860 = vand.u32 %v2369, 4294901760
    %4861 = vmatpush.msra.mxu0 %v4860
    %v4862 = vand.u32 %v2368, 4294901760
    %4863 = vmatpush.msra.mxu0 %v4862
    %v4864 = vand.u32 %v2367, 4294901760
    %4865 = vmatpush.msra.mxu0 %v4864
    %v4866 = vand.u32 %v2366, 4294901760
    %4867 = vmatpush.msra.mxu0 %v4866
    %v4868 = vand.u32 %v2365, 4294901760
    %4869 = vmatpush.msra.mxu0 %v4868
    %v4870 = vand.u32 %v2364, 4294901760
    %4871 = vmatpush.msra.mxu0 %v4870
    %v4872 = vand.u32 %v2363, 4294901760
    %4873 = vmatpush.msra.mxu0 %v4872
    %v4874 = vand.u32 %v2362, 4294901760
    %4875 = vmatpush.msra.mxu0 %v4874
    %v4876 = vand.u32 %v2361, 4294901760
    %4877 = vmatpush.msra.mxu0 %v4876
    %v4878 = vand.u32 %v2006, 4294901760
    %4879 = vmatmul.f32.gmra.mxu0 %v4878
    %v4880 = vpop.f32.mrf.mxu0
    %v4881 = vadd.f32 %v4836, %v4880
    %v4882 = vand.u32 %v2070, 4294901760
    %4883 = vmatmul.f32.gmra.mxu0 %v4882
    %v4884 = vpop.f32.mrf.mxu0
    %v4885 = vadd.f32 %v4840, %v4884
    %v4886 = vand.u32 %v2134, 4294901760
    %4887 = vmatmul.f32.gmra.mxu0 %v4886
    %v4888 = vpop.f32.mrf.mxu0
    %v4889 = vadd.f32 %v4844, %v4888
    %4890 = vdwg.mxu0
    %v4891 = vand.u32 %v2392, 4294901760
    %4892 = vmatpush.msra.mxu0 %v4891
    %v4893 = vand.u32 %v2391, 4294901760
    %4894 = vmatpush.msra.mxu0 %v4893
    %v4895 = vand.u32 %v2390, 4294901760
    %4896 = vmatpush.msra.mxu0 %v4895
    %v4897 = vand.u32 %v2389, 4294901760
    %4898 = vmatpush.msra.mxu0 %v4897
    %v4899 = vand.u32 %v2388, 4294901760
    %4900 = vmatpush.msra.mxu0 %v4899
    %v4901 = vand.u32 %v2387, 4294901760
    %4902 = vmatpush.msra.mxu0 %v4901
    %v4903 = vand.u32 %v2386, 4294901760
    %4904 = vmatpush.msra.mxu0 %v4903
    %v4905 = vand.u32 %v2385, 4294901760
    %4906 = vmatpush.msra.mxu0 %v4905
    %v4907 = vand.u32 %v2384, 4294901760
    %4908 = vmatpush.msra.mxu0 %v4907
    %v4909 = vand.u32 %v2383, 4294901760
    %4910 = vmatpush.msra.mxu0 %v4909
    %v4911 = vand.u32 %v2382, 4294901760
    %4912 = vmatpush.msra.mxu0 %v4911
    %v4913 = vand.u32 %v2381, 4294901760
    %4914 = vmatpush.msra.mxu0 %v4913
    %v4915 = vand.u32 %v2380, 4294901760
    %4916 = vmatpush.msra.mxu0 %v4915
    %v4917 = vand.u32 %v2379, 4294901760
    %4918 = vmatpush.msra.mxu0 %v4917
    %v4919 = vand.u32 %v2378, 4294901760
    %4920 = vmatpush.msra.mxu0 %v4919
    %v4921 = vand.u32 %v2377, 4294901760
    %4922 = vmatpush.msra.mxu0 %v4921
    %v4923 = vand.u32 %v2013, 4294901760
    %v4924 = vsub.f32 %v2013, %v4923
    %v4925 = vand.u32 %v4924, 4294901760
    %v4926 = vsub.f32 %v4924, %v4925
    %v4927 = vand.u32 %v4926, 4294901760
    %4928 = vmatmul.f32.gmra.mxu0 %v4927
    %v4929 = vpop.f32.mrf.mxu0
    %v4930 = vadd.f32 %v4881, %v4929
    %v4931 = vand.u32 %v2077, 4294901760
    %v4932 = vsub.f32 %v2077, %v4931
    %v4933 = vand.u32 %v4932, 4294901760
    %v4934 = vsub.f32 %v4932, %v4933
    %v4935 = vand.u32 %v4934, 4294901760
    %4936 = vmatmul.f32.gmra.mxu0 %v4935
    %v4937 = vpop.f32.mrf.mxu0
    %v4938 = vadd.f32 %v4885, %v4937
    %v4939 = vand.u32 %v2141, 4294901760
    %v4940 = vsub.f32 %v2141, %v4939
    %v4941 = vand.u32 %v4940, 4294901760
    %v4942 = vsub.f32 %v4940, %v4941
    %v4943 = vand.u32 %v4942, 4294901760
    %4944 = vmatmul.f32.gmra.mxu0 %v4943
    %v4945 = vpop.f32.mrf.mxu0
    %v4946 = vadd.f32 %v4889, %v4945
    %4947 = vdwg.mxu0
    %v4948 = vand.u32 %v2392, 4294901760
    %v4949 = vsub.f32 %v2392, %v4948
    %v4950 = vand.u32 %v4949, 4294901760
    %v4951 = vsub.f32 %v4949, %v4950
    %v4952 = vand.u32 %v4951, 4294901760
    %4953 = vmatpush.msra.mxu0 %v4952
    %v4954 = vand.u32 %v2391, 4294901760
    %v4955 = vsub.f32 %v2391, %v4954
    %v4956 = vand.u32 %v4955, 4294901760
    %v4957 = vsub.f32 %v4955, %v4956
    %v4958 = vand.u32 %v4957, 4294901760
    %4959 = vmatpush.msra.mxu0 %v4958
    %v4960 = vand.u32 %v2390, 4294901760
    %v4961 = vsub.f32 %v2390, %v4960
    %v4962 = vand.u32 %v4961, 4294901760
    %v4963 = vsub.f32 %v4961, %v4962
    %v4964 = vand.u32 %v4963, 4294901760
    %4965 = vmatpush.msra.mxu0 %v4964
    %v4966 = vand.u32 %v2389, 4294901760
    %v4967 = vsub.f32 %v2389, %v4966
    %v4968 = vand.u32 %v4967, 4294901760
    %v4969 = vsub.f32 %v4967, %v4968
    %v4970 = vand.u32 %v4969, 4294901760
    %4971 = vmatpush.msra.mxu0 %v4970
    %v4972 = vand.u32 %v2388, 4294901760
    %v4973 = vsub.f32 %v2388, %v4972
    %v4974 = vand.u32 %v4973, 4294901760
    %v4975 = vsub.f32 %v4973, %v4974
    %v4976 = vand.u32 %v4975, 4294901760
    %4977 = vmatpush.msra.mxu0 %v4976
    %v4978 = vand.u32 %v2387, 4294901760
    %v4979 = vsub.f32 %v2387, %v4978
    %v4980 = vand.u32 %v4979, 4294901760
    %v4981 = vsub.f32 %v4979, %v4980
    %v4982 = vand.u32 %v4981, 4294901760
    %4983 = vmatpush.msra.mxu0 %v4982
    %v4984 = vand.u32 %v2386, 4294901760
    %v4985 = vsub.f32 %v2386, %v4984
    %v4986 = vand.u32 %v4985, 4294901760
    %v4987 = vsub.f32 %v4985, %v4986
    %v4988 = vand.u32 %v4987, 4294901760
    %4989 = vmatpush.msra.mxu0 %v4988
    %v4990 = vand.u32 %v2385, 4294901760
    %v4991 = vsub.f32 %v2385, %v4990
    %v4992 = vand.u32 %v4991, 4294901760
    %v4993 = vsub.f32 %v4991, %v4992
    %v4994 = vand.u32 %v4993, 4294901760
    %4995 = vmatpush.msra.mxu0 %v4994
    %v4996 = vand.u32 %v2384, 4294901760
    %v4997 = vsub.f32 %v2384, %v4996
    %v4998 = vand.u32 %v4997, 4294901760
    %v4999 = vsub.f32 %v4997, %v4998
    %v5000 = vand.u32 %v4999, 4294901760
    %5001 = vmatpush.msra.mxu0 %v5000
    %v5002 = vand.u32 %v2383, 4294901760
    %v5003 = vsub.f32 %v2383, %v5002
    %v5004 = vand.u32 %v5003, 4294901760
    %v5005 = vsub.f32 %v5003, %v5004
    %v5006 = vand.u32 %v5005, 4294901760
    %5007 = vmatpush.msra.mxu0 %v5006
    %v5008 = vand.u32 %v2382, 4294901760
    %v5009 = vsub.f32 %v2382, %v5008
    %v5010 = vand.u32 %v5009, 4294901760
    %v5011 = vsub.f32 %v5009, %v5010
    %v5012 = vand.u32 %v5011, 4294901760
    %5013 = vmatpush.msra.mxu0 %v5012
    %v5014 = vand.u32 %v2381, 4294901760
    %v5015 = vsub.f32 %v2381, %v5014
    %v5016 = vand.u32 %v5015, 4294901760
    %v5017 = vsub.f32 %v5015, %v5016
    %v5018 = vand.u32 %v5017, 4294901760
    %5019 = vmatpush.msra.mxu0 %v5018
    %v5020 = vand.u32 %v2380, 4294901760
    %v5021 = vsub.f32 %v2380, %v5020
    %v5022 = vand.u32 %v5021, 4294901760
    %v5023 = vsub.f32 %v5021, %v5022
    %v5024 = vand.u32 %v5023, 4294901760
    %5025 = vmatpush.msra.mxu0 %v5024
    %v5026 = vand.u32 %v2379, 4294901760
    %v5027 = vsub.f32 %v2379, %v5026
    %v5028 = vand.u32 %v5027, 4294901760
    %v5029 = vsub.f32 %v5027, %v5028
    %v5030 = vand.u32 %v5029, 4294901760
    %5031 = vmatpush.msra.mxu0 %v5030
    %v5032 = vand.u32 %v2378, 4294901760
    %v5033 = vsub.f32 %v2378, %v5032
    %v5034 = vand.u32 %v5033, 4294901760
    %v5035 = vsub.f32 %v5033, %v5034
    %v5036 = vand.u32 %v5035, 4294901760
    %5037 = vmatpush.msra.mxu0 %v5036
    %v5038 = vand.u32 %v2377, 4294901760
    %v5039 = vsub.f32 %v2377, %v5038
    %v5040 = vand.u32 %v5039, 4294901760
    %v5041 = vsub.f32 %v5039, %v5040
    %v5042 = vand.u32 %v5041, 4294901760
    %5043 = vmatpush.msra.mxu0 %v5042
    %v5044 = vand.u32 %v2013, 4294901760
    %5045 = vmatmul.f32.gmra.mxu0 %v5044
    %v5046 = vpop.f32.mrf.mxu0
    %v5047 = vadd.f32 %v4930, %v5046
    %v5048 = vand.u32 %v2077, 4294901760
    %5049 = vmatmul.f32.gmra.mxu0 %v5048
    %v5050 = vpop.f32.mrf.mxu0
    %v5051 = vadd.f32 %v4938, %v5050
    %v5052 = vand.u32 %v2141, 4294901760
    %5053 = vmatmul.f32.gmra.mxu0 %v5052
    %v5054 = vpop.f32.mrf.mxu0
    %v5055 = vadd.f32 %v4946, %v5054
    %5056 = vdwg.mxu0
    %v5057 = vand.u32 %v2392, 4294901760
    %v5058 = vsub.f32 %v2392, %v5057
    %5059 = vmatpush.msra.mxu0 %v5058
    %v5060 = vand.u32 %v2391, 4294901760
    %v5061 = vsub.f32 %v2391, %v5060
    %5062 = vmatpush.msra.mxu0 %v5061
    %v5063 = vand.u32 %v2390, 4294901760
    %v5064 = vsub.f32 %v2390, %v5063
    %5065 = vmatpush.msra.mxu0 %v5064
    %v5066 = vand.u32 %v2389, 4294901760
    %v5067 = vsub.f32 %v2389, %v5066
    %5068 = vmatpush.msra.mxu0 %v5067
    %v5069 = vand.u32 %v2388, 4294901760
    %v5070 = vsub.f32 %v2388, %v5069
    %5071 = vmatpush.msra.mxu0 %v5070
    %v5072 = vand.u32 %v2387, 4294901760
    %v5073 = vsub.f32 %v2387, %v5072
    %5074 = vmatpush.msra.mxu0 %v5073
    %v5075 = vand.u32 %v2386, 4294901760
    %v5076 = vsub.f32 %v2386, %v5075
    %5077 = vmatpush.msra.mxu0 %v5076
    %v5078 = vand.u32 %v2385, 4294901760
    %v5079 = vsub.f32 %v2385, %v5078
    %5080 = vmatpush.msra.mxu0 %v5079
    %v5081 = vand.u32 %v2384, 4294901760
    %v5082 = vsub.f32 %v2384, %v5081
    %5083 = vmatpush.msra.mxu0 %v5082
    %v5084 = vand.u32 %v2383, 4294901760
    %v5085 = vsub.f32 %v2383, %v5084
    %5086 = vmatpush.msra.mxu0 %v5085
    %v5087 = vand.u32 %v2382, 4294901760
    %v5088 = vsub.f32 %v2382, %v5087
    %5089 = vmatpush.msra.mxu0 %v5088
    %v5090 = vand.u32 %v2381, 4294901760
    %v5091 = vsub.f32 %v2381, %v5090
    %5092 = vmatpush.msra.mxu0 %v5091
    %v5093 = vand.u32 %v2380, 4294901760
    %v5094 = vsub.f32 %v2380, %v5093
    %5095 = vmatpush.msra.mxu0 %v5094
    %v5096 = vand.u32 %v2379, 4294901760
    %v5097 = vsub.f32 %v2379, %v5096
    %5098 = vmatpush.msra.mxu0 %v5097
    %v5099 = vand.u32 %v2378, 4294901760
    %v5100 = vsub.f32 %v2378, %v5099
    %5101 = vmatpush.msra.mxu0 %v5100
    %v5102 = vand.u32 %v2377, 4294901760
    %v5103 = vsub.f32 %v2377, %v5102
    %5104 = vmatpush.msra.mxu0 %v5103
    %v5105 = vand.u32 %v2013, 4294901760
    %v5106 = vsub.f32 %v2013, %v5105
    %5107 = vmatmul.f32.gmra.mxu0 %v5106
    %v5108 = vpop.f32.mrf.mxu0
    %v5109 = vadd.f32 %v5047, %v5108
    %v5110 = vand.u32 %v2077, 4294901760
    %v5111 = vsub.f32 %v2077, %v5110
    %5112 = vmatmul.f32.gmra.mxu0 %v5111
    %v5113 = vpop.f32.mrf.mxu0
    %v5114 = vadd.f32 %v5051, %v5113
    %v5115 = vand.u32 %v2141, 4294901760
    %v5116 = vsub.f32 %v2141, %v5115
    %5117 = vmatmul.f32.gmra.mxu0 %v5116
    %v5118 = vpop.f32.mrf.mxu0
    %v5119 = vadd.f32 %v5055, %v5118
    %5120 = vdwg.mxu0
    %v5121 = vand.u32 %v2392, 4294901760
    %5122 = vmatpush.msra.mxu0 %v5121
    %v5123 = vand.u32 %v2391, 4294901760
    %5124 = vmatpush.msra.mxu0 %v5123
    %v5125 = vand.u32 %v2390, 4294901760
    %5126 = vmatpush.msra.mxu0 %v5125
    %v5127 = vand.u32 %v2389, 4294901760
    %5128 = vmatpush.msra.mxu0 %v5127
    %v5129 = vand.u32 %v2388, 4294901760
    %5130 = vmatpush.msra.mxu0 %v5129
    %v5131 = vand.u32 %v2387, 4294901760
    %5132 = vmatpush.msra.mxu0 %v5131
    %v5133 = vand.u32 %v2386, 4294901760
    %5134 = vmatpush.msra.mxu0 %v5133
    %v5135 = vand.u32 %v2385, 4294901760
    %5136 = vmatpush.msra.mxu0 %v5135
    %v5137 = vand.u32 %v2384, 4294901760
    %5138 = vmatpush.msra.mxu0 %v5137
    %v5139 = vand.u32 %v2383, 4294901760
    %5140 = vmatpush.msra.mxu0 %v5139
    %v5141 = vand.u32 %v2382, 4294901760
    %5142 = vmatpush.msra.mxu0 %v5141
    %v5143 = vand.u32 %v2381, 4294901760
    %5144 = vmatpush.msra.mxu0 %v5143
    %v5145 = vand.u32 %v2380, 4294901760
    %5146 = vmatpush.msra.mxu0 %v5145
    %v5147 = vand.u32 %v2379, 4294901760
    %5148 = vmatpush.msra.mxu0 %v5147
    %v5149 = vand.u32 %v2378, 4294901760
    %5150 = vmatpush.msra.mxu0 %v5149
    %v5151 = vand.u32 %v2377, 4294901760
    %5152 = vmatpush.msra.mxu0 %v5151
    %v5153 = vand.u32 %v2013, 4294901760
    %v5154 = vsub.f32 %v2013, %v5153
    %v5155 = vand.u32 %v5154, 4294901760
    %5156 = vmatmul.f32.gmra.mxu0 %v5155
    %v5157 = vpop.f32.mrf.mxu0
    %v5158 = vadd.f32 %v5109, %v5157
    %v5159 = vand.u32 %v2077, 4294901760
    %v5160 = vsub.f32 %v2077, %v5159
    %v5161 = vand.u32 %v5160, 4294901760
    %5162 = vmatmul.f32.gmra.mxu0 %v5161
    %v5163 = vpop.f32.mrf.mxu0
    %v5164 = vadd.f32 %v5114, %v5163
    %v5165 = vand.u32 %v2141, 4294901760
    %v5166 = vsub.f32 %v2141, %v5165
    %v5167 = vand.u32 %v5166, 4294901760
    %5168 = vmatmul.f32.gmra.mxu0 %v5167
    %v5169 = vpop.f32.mrf.mxu0
    %v5170 = vadd.f32 %v5119, %v5169
    %5171 = vdwg.mxu0
    %v5172 = vand.u32 %v2392, 4294901760
    %v5173 = vsub.f32 %v2392, %v5172
    %v5174 = vand.u32 %v5173, 4294901760
    %5175 = vmatpush.msra.mxu0 %v5174
    %v5176 = vand.u32 %v2391, 4294901760
    %v5177 = vsub.f32 %v2391, %v5176
    %v5178 = vand.u32 %v5177, 4294901760
    %5179 = vmatpush.msra.mxu0 %v5178
    %v5180 = vand.u32 %v2390, 4294901760
    %v5181 = vsub.f32 %v2390, %v5180
    %v5182 = vand.u32 %v5181, 4294901760
    %5183 = vmatpush.msra.mxu0 %v5182
    %v5184 = vand.u32 %v2389, 4294901760
    %v5185 = vsub.f32 %v2389, %v5184
    %v5186 = vand.u32 %v5185, 4294901760
    %5187 = vmatpush.msra.mxu0 %v5186
    %v5188 = vand.u32 %v2388, 4294901760
    %v5189 = vsub.f32 %v2388, %v5188
    %v5190 = vand.u32 %v5189, 4294901760
    %5191 = vmatpush.msra.mxu0 %v5190
    %v5192 = vand.u32 %v2387, 4294901760
    %v5193 = vsub.f32 %v2387, %v5192
    %v5194 = vand.u32 %v5193, 4294901760
    %5195 = vmatpush.msra.mxu0 %v5194
    %v5196 = vand.u32 %v2386, 4294901760
    %v5197 = vsub.f32 %v2386, %v5196
    %v5198 = vand.u32 %v5197, 4294901760
    %5199 = vmatpush.msra.mxu0 %v5198
    %v5200 = vand.u32 %v2385, 4294901760
    %v5201 = vsub.f32 %v2385, %v5200
    %v5202 = vand.u32 %v5201, 4294901760
    %5203 = vmatpush.msra.mxu0 %v5202
    %v5204 = vand.u32 %v2384, 4294901760
    %v5205 = vsub.f32 %v2384, %v5204
    %v5206 = vand.u32 %v5205, 4294901760
    %5207 = vmatpush.msra.mxu0 %v5206
    %v5208 = vand.u32 %v2383, 4294901760
    %v5209 = vsub.f32 %v2383, %v5208
    %v5210 = vand.u32 %v5209, 4294901760
    %5211 = vmatpush.msra.mxu0 %v5210
    %v5212 = vand.u32 %v2382, 4294901760
    %v5213 = vsub.f32 %v2382, %v5212
    %v5214 = vand.u32 %v5213, 4294901760
    %5215 = vmatpush.msra.mxu0 %v5214
    %v5216 = vand.u32 %v2381, 4294901760
    %v5217 = vsub.f32 %v2381, %v5216
    %v5218 = vand.u32 %v5217, 4294901760
    %5219 = vmatpush.msra.mxu0 %v5218
    %v5220 = vand.u32 %v2380, 4294901760
    %v5221 = vsub.f32 %v2380, %v5220
    %v5222 = vand.u32 %v5221, 4294901760
    %5223 = vmatpush.msra.mxu0 %v5222
    %v5224 = vand.u32 %v2379, 4294901760
    %v5225 = vsub.f32 %v2379, %v5224
    %v5226 = vand.u32 %v5225, 4294901760
    %5227 = vmatpush.msra.mxu0 %v5226
    %v5228 = vand.u32 %v2378, 4294901760
    %v5229 = vsub.f32 %v2378, %v5228
    %v5230 = vand.u32 %v5229, 4294901760
    %5231 = vmatpush.msra.mxu0 %v5230
    %v5232 = vand.u32 %v2377, 4294901760
    %v5233 = vsub.f32 %v2377, %v5232
    %v5234 = vand.u32 %v5233, 4294901760
    %5235 = vmatpush.msra.mxu0 %v5234
    %v5236 = vand.u32 %v2013, 4294901760
    %5237 = vmatmul.f32.gmra.mxu0 %v5236
    %v5238 = vpop.f32.mrf.mxu0
    %v5239 = vadd.f32 %v5158, %v5238
    %v5240 = vand.u32 %v2077, 4294901760
    %5241 = vmatmul.f32.gmra.mxu0 %v5240
    %v5242 = vpop.f32.mrf.mxu0
    %v5243 = vadd.f32 %v5164, %v5242
    %v5244 = vand.u32 %v2141, 4294901760
    %5245 = vmatmul.f32.gmra.mxu0 %v5244
    %v5246 = vpop.f32.mrf.mxu0
    %v5247 = vadd.f32 %v5170, %v5246
    %5248 = vdwg.mxu0
    %v5249 = vand.u32 %v2392, 4294901760
    %5250 = vmatpush.msra.mxu0 %v5249
    %v5251 = vand.u32 %v2391, 4294901760
    %5252 = vmatpush.msra.mxu0 %v5251
    %v5253 = vand.u32 %v2390, 4294901760
    %5254 = vmatpush.msra.mxu0 %v5253
    %v5255 = vand.u32 %v2389, 4294901760
    %5256 = vmatpush.msra.mxu0 %v5255
    %v5257 = vand.u32 %v2388, 4294901760
    %5258 = vmatpush.msra.mxu0 %v5257
    %v5259 = vand.u32 %v2387, 4294901760
    %5260 = vmatpush.msra.mxu0 %v5259
    %v5261 = vand.u32 %v2386, 4294901760
    %5262 = vmatpush.msra.mxu0 %v5261
    %v5263 = vand.u32 %v2385, 4294901760
    %5264 = vmatpush.msra.mxu0 %v5263
    %v5265 = vand.u32 %v2384, 4294901760
    %5266 = vmatpush.msra.mxu0 %v5265
    %v5267 = vand.u32 %v2383, 4294901760
    %5268 = vmatpush.msra.mxu0 %v5267
    %v5269 = vand.u32 %v2382, 4294901760
    %5270 = vmatpush.msra.mxu0 %v5269
    %v5271 = vand.u32 %v2381, 4294901760
    %5272 = vmatpush.msra.mxu0 %v5271
    %v5273 = vand.u32 %v2380, 4294901760
    %5274 = vmatpush.msra.mxu0 %v5273
    %v5275 = vand.u32 %v2379, 4294901760
    %5276 = vmatpush.msra.mxu0 %v5275
    %v5277 = vand.u32 %v2378, 4294901760
    %5278 = vmatpush.msra.mxu0 %v5277
    %v5279 = vand.u32 %v2377, 4294901760
    %5280 = vmatpush.msra.mxu0 %v5279
    %v5281 = vand.u32 %v2013, 4294901760
    %5282 = vmatmul.f32.gmra.mxu0 %v5281
    %v5283 = vpop.f32.mrf.mxu0
    %v5284 = vadd.f32 %v5239, %v5283
    %v5285 = vand.u32 %v2077, 4294901760
    %5286 = vmatmul.f32.gmra.mxu0 %v5285
    %v5287 = vpop.f32.mrf.mxu0
    %v5288 = vadd.f32 %v5243, %v5287
    %v5289 = vand.u32 %v2141, 4294901760
    %5290 = vmatmul.f32.gmra.mxu0 %v5289
    %v5291 = vpop.f32.mrf.mxu0
    %v5292 = vadd.f32 %v5247, %v5291
    %5293 = vdwg.mxu0
    %v5294 = vand.u32 %v2408, 4294901760
    %5295 = vmatpush.msra.mxu0 %v5294
    %v5296 = vand.u32 %v2407, 4294901760
    %5297 = vmatpush.msra.mxu0 %v5296
    %v5298 = vand.u32 %v2406, 4294901760
    %5299 = vmatpush.msra.mxu0 %v5298
    %v5300 = vand.u32 %v2405, 4294901760
    %5301 = vmatpush.msra.mxu0 %v5300
    %v5302 = vand.u32 %v2404, 4294901760
    %5303 = vmatpush.msra.mxu0 %v5302
    %v5304 = vand.u32 %v2403, 4294901760
    %5305 = vmatpush.msra.mxu0 %v5304
    %v5306 = vand.u32 %v2402, 4294901760
    %5307 = vmatpush.msra.mxu0 %v5306
    %v5308 = vand.u32 %v2401, 4294901760
    %5309 = vmatpush.msra.mxu0 %v5308
    %v5310 = vand.u32 %v2400, 4294901760
    %5311 = vmatpush.msra.mxu0 %v5310
    %v5312 = vand.u32 %v2399, 4294901760
    %5313 = vmatpush.msra.mxu0 %v5312
    %v5314 = vand.u32 %v2398, 4294901760
    %5315 = vmatpush.msra.mxu0 %v5314
    %v5316 = vand.u32 %v2397, 4294901760
    %5317 = vmatpush.msra.mxu0 %v5316
    %v5318 = vand.u32 %v2396, 4294901760
    %5319 = vmatpush.msra.mxu0 %v5318
    %v5320 = vand.u32 %v2395, 4294901760
    %5321 = vmatpush.msra.mxu0 %v5320
    %v5322 = vand.u32 %v2394, 4294901760
    %5323 = vmatpush.msra.mxu0 %v5322
    %v5324 = vand.u32 %v2393, 4294901760
    %5325 = vmatpush.msra.mxu0 %v5324
    %v5326 = vand.u32 %v2020, 4294901760
    %v5327 = vsub.f32 %v2020, %v5326
    %v5328 = vand.u32 %v5327, 4294901760
    %v5329 = vsub.f32 %v5327, %v5328
    %v5330 = vand.u32 %v5329, 4294901760
    %5331 = vmatmul.f32.gmra.mxu0 %v5330
    %v5332 = vpop.f32.mrf.mxu0
    %v5333 = vadd.f32 %v5284, %v5332
    %v5334 = vand.u32 %v2084, 4294901760
    %v5335 = vsub.f32 %v2084, %v5334
    %v5336 = vand.u32 %v5335, 4294901760
    %v5337 = vsub.f32 %v5335, %v5336
    %v5338 = vand.u32 %v5337, 4294901760
    %5339 = vmatmul.f32.gmra.mxu0 %v5338
    %v5340 = vpop.f32.mrf.mxu0
    %v5341 = vadd.f32 %v5288, %v5340
    %v5342 = vand.u32 %v2148, 4294901760
    %v5343 = vsub.f32 %v2148, %v5342
    %v5344 = vand.u32 %v5343, 4294901760
    %v5345 = vsub.f32 %v5343, %v5344
    %v5346 = vand.u32 %v5345, 4294901760
    %5347 = vmatmul.f32.gmra.mxu0 %v5346
    %v5348 = vpop.f32.mrf.mxu0
    %v5349 = vadd.f32 %v5292, %v5348
    %5350 = vdwg.mxu0
    %v5351 = vand.u32 %v2408, 4294901760
    %v5352 = vsub.f32 %v2408, %v5351
    %v5353 = vand.u32 %v5352, 4294901760
    %v5354 = vsub.f32 %v5352, %v5353
    %v5355 = vand.u32 %v5354, 4294901760
    %5356 = vmatpush.msra.mxu0 %v5355
    %v5357 = vand.u32 %v2407, 4294901760
    %v5358 = vsub.f32 %v2407, %v5357
    %v5359 = vand.u32 %v5358, 4294901760
    %v5360 = vsub.f32 %v5358, %v5359
    %v5361 = vand.u32 %v5360, 4294901760
    %5362 = vmatpush.msra.mxu0 %v5361
    %v5363 = vand.u32 %v2406, 4294901760
    %v5364 = vsub.f32 %v2406, %v5363
    %v5365 = vand.u32 %v5364, 4294901760
    %v5366 = vsub.f32 %v5364, %v5365
    %v5367 = vand.u32 %v5366, 4294901760
    %5368 = vmatpush.msra.mxu0 %v5367
    %v5369 = vand.u32 %v2405, 4294901760
    %v5370 = vsub.f32 %v2405, %v5369
    %v5371 = vand.u32 %v5370, 4294901760
    %v5372 = vsub.f32 %v5370, %v5371
    %v5373 = vand.u32 %v5372, 4294901760
    %5374 = vmatpush.msra.mxu0 %v5373
    %v5375 = vand.u32 %v2404, 4294901760
    %v5376 = vsub.f32 %v2404, %v5375
    %v5377 = vand.u32 %v5376, 4294901760
    %v5378 = vsub.f32 %v5376, %v5377
    %v5379 = vand.u32 %v5378, 4294901760
    %5380 = vmatpush.msra.mxu0 %v5379
    %v5381 = vand.u32 %v2403, 4294901760
    %v5382 = vsub.f32 %v2403, %v5381
    %v5383 = vand.u32 %v5382, 4294901760
    %v5384 = vsub.f32 %v5382, %v5383
    %v5385 = vand.u32 %v5384, 4294901760
    %5386 = vmatpush.msra.mxu0 %v5385
    %v5387 = vand.u32 %v2402, 4294901760
    %v5388 = vsub.f32 %v2402, %v5387
    %v5389 = vand.u32 %v5388, 4294901760
    %v5390 = vsub.f32 %v5388, %v5389
    %v5391 = vand.u32 %v5390, 4294901760
    %5392 = vmatpush.msra.mxu0 %v5391
    %v5393 = vand.u32 %v2401, 4294901760
    %v5394 = vsub.f32 %v2401, %v5393
    %v5395 = vand.u32 %v5394, 4294901760
    %v5396 = vsub.f32 %v5394, %v5395
    %v5397 = vand.u32 %v5396, 4294901760
    %5398 = vmatpush.msra.mxu0 %v5397
    %v5399 = vand.u32 %v2400, 4294901760
    %v5400 = vsub.f32 %v2400, %v5399
    %v5401 = vand.u32 %v5400, 4294901760
    %v5402 = vsub.f32 %v5400, %v5401
    %v5403 = vand.u32 %v5402, 4294901760
    %5404 = vmatpush.msra.mxu0 %v5403
    %v5405 = vand.u32 %v2399, 4294901760
    %v5406 = vsub.f32 %v2399, %v5405
    %v5407 = vand.u32 %v5406, 4294901760
    %v5408 = vsub.f32 %v5406, %v5407
    %v5409 = vand.u32 %v5408, 4294901760
    %5410 = vmatpush.msra.mxu0 %v5409
    %v5411 = vand.u32 %v2398, 4294901760
    %v5412 = vsub.f32 %v2398, %v5411
    %v5413 = vand.u32 %v5412, 4294901760
    %v5414 = vsub.f32 %v5412, %v5413
    %v5415 = vand.u32 %v5414, 4294901760
    %5416 = vmatpush.msra.mxu0 %v5415
    %v5417 = vand.u32 %v2397, 4294901760
    %v5418 = vsub.f32 %v2397, %v5417
    %v5419 = vand.u32 %v5418, 4294901760
    %v5420 = vsub.f32 %v5418, %v5419
    %v5421 = vand.u32 %v5420, 4294901760
    %5422 = vmatpush.msra.mxu0 %v5421
    %v5423 = vand.u32 %v2396, 4294901760
    %v5424 = vsub.f32 %v2396, %v5423
    %v5425 = vand.u32 %v5424, 4294901760
    %v5426 = vsub.f32 %v5424, %v5425
    %v5427 = vand.u32 %v5426, 4294901760
    %5428 = vmatpush.msra.mxu0 %v5427
    %v5429 = vand.u32 %v2395, 4294901760
    %v5430 = vsub.f32 %v2395, %v5429
    %v5431 = vand.u32 %v5430, 4294901760
    %v5432 = vsub.f32 %v5430, %v5431
    %v5433 = vand.u32 %v5432, 4294901760
    %5434 = vmatpush.msra.mxu0 %v5433
    %v5435 = vand.u32 %v2394, 4294901760
    %v5436 = vsub.f32 %v2394, %v5435
    %v5437 = vand.u32 %v5436, 4294901760
    %v5438 = vsub.f32 %v5436, %v5437
    %v5439 = vand.u32 %v5438, 4294901760
    %5440 = vmatpush.msra.mxu0 %v5439
    %v5441 = vand.u32 %v2393, 4294901760
    %v5442 = vsub.f32 %v2393, %v5441
    %v5443 = vand.u32 %v5442, 4294901760
    %v5444 = vsub.f32 %v5442, %v5443
    %v5445 = vand.u32 %v5444, 4294901760
    %5446 = vmatpush.msra.mxu0 %v5445
    %v5447 = vand.u32 %v2020, 4294901760
    %5448 = vmatmul.f32.gmra.mxu0 %v5447
    %v5449 = vpop.f32.mrf.mxu0
    %v5450 = vadd.f32 %v5333, %v5449
    %v5451 = vand.u32 %v2084, 4294901760
    %5452 = vmatmul.f32.gmra.mxu0 %v5451
    %v5453 = vpop.f32.mrf.mxu0
    %v5454 = vadd.f32 %v5341, %v5453
    %v5455 = vand.u32 %v2148, 4294901760
    %5456 = vmatmul.f32.gmra.mxu0 %v5455
    %v5457 = vpop.f32.mrf.mxu0
    %v5458 = vadd.f32 %v5349, %v5457
    %5459 = vdwg.mxu0
    %v5460 = vand.u32 %v2408, 4294901760
    %v5461 = vsub.f32 %v2408, %v5460
    %5462 = vmatpush.msra.mxu0 %v5461
    %v5463 = vand.u32 %v2407, 4294901760
    %v5464 = vsub.f32 %v2407, %v5463
    %5465 = vmatpush.msra.mxu0 %v5464
    %v5466 = vand.u32 %v2406, 4294901760
    %v5467 = vsub.f32 %v2406, %v5466
    %5468 = vmatpush.msra.mxu0 %v5467
    %v5469 = vand.u32 %v2405, 4294901760
    %v5470 = vsub.f32 %v2405, %v5469
    %5471 = vmatpush.msra.mxu0 %v5470
    %v5472 = vand.u32 %v2404, 4294901760
    %v5473 = vsub.f32 %v2404, %v5472
    %5474 = vmatpush.msra.mxu0 %v5473
    %v5475 = vand.u32 %v2403, 4294901760
    %v5476 = vsub.f32 %v2403, %v5475
    %5477 = vmatpush.msra.mxu0 %v5476
    %v5478 = vand.u32 %v2402, 4294901760
    %v5479 = vsub.f32 %v2402, %v5478
    %5480 = vmatpush.msra.mxu0 %v5479
    %v5481 = vand.u32 %v2401, 4294901760
    %v5482 = vsub.f32 %v2401, %v5481
    %5483 = vmatpush.msra.mxu0 %v5482
    %v5484 = vand.u32 %v2400, 4294901760
    %v5485 = vsub.f32 %v2400, %v5484
    %5486 = vmatpush.msra.mxu0 %v5485
    %v5487 = vand.u32 %v2399, 4294901760
    %v5488 = vsub.f32 %v2399, %v5487
    %5489 = vmatpush.msra.mxu0 %v5488
    %v5490 = vand.u32 %v2398, 4294901760
    %v5491 = vsub.f32 %v2398, %v5490
    %5492 = vmatpush.msra.mxu0 %v5491
    %v5493 = vand.u32 %v2397, 4294901760
    %v5494 = vsub.f32 %v2397, %v5493
    %5495 = vmatpush.msra.mxu0 %v5494
    %v5496 = vand.u32 %v2396, 4294901760
    %v5497 = vsub.f32 %v2396, %v5496
    %5498 = vmatpush.msra.mxu0 %v5497
    %v5499 = vand.u32 %v2395, 4294901760
    %v5500 = vsub.f32 %v2395, %v5499
    %5501 = vmatpush.msra.mxu0 %v5500
    %v5502 = vand.u32 %v2394, 4294901760
    %v5503 = vsub.f32 %v2394, %v5502
    %5504 = vmatpush.msra.mxu0 %v5503
    %v5505 = vand.u32 %v2393, 4294901760
    %v5506 = vsub.f32 %v2393, %v5505
    %5507 = vmatpush.msra.mxu0 %v5506
    %v5508 = vand.u32 %v2020, 4294901760
    %v5509 = vsub.f32 %v2020, %v5508
    %5510 = vmatmul.f32.gmra.mxu0 %v5509
    %v5511 = vpop.f32.mrf.mxu0
    %v5512 = vadd.f32 %v5450, %v5511
    %v5513 = vand.u32 %v2084, 4294901760
    %v5514 = vsub.f32 %v2084, %v5513
    %5515 = vmatmul.f32.gmra.mxu0 %v5514
    %v5516 = vpop.f32.mrf.mxu0
    %v5517 = vadd.f32 %v5454, %v5516
    %v5518 = vand.u32 %v2148, 4294901760
    %v5519 = vsub.f32 %v2148, %v5518
    %5520 = vmatmul.f32.gmra.mxu0 %v5519
    %v5521 = vpop.f32.mrf.mxu0
    %v5522 = vadd.f32 %v5458, %v5521
    %5523 = vdwg.mxu0
    %v5524 = vand.u32 %v2408, 4294901760
    %5525 = vmatpush.msra.mxu0 %v5524
    %v5526 = vand.u32 %v2407, 4294901760
    %5527 = vmatpush.msra.mxu0 %v5526
    %v5528 = vand.u32 %v2406, 4294901760
    %5529 = vmatpush.msra.mxu0 %v5528
    %v5530 = vand.u32 %v2405, 4294901760
    %5531 = vmatpush.msra.mxu0 %v5530
    %v5532 = vand.u32 %v2404, 4294901760
    %5533 = vmatpush.msra.mxu0 %v5532
    %v5534 = vand.u32 %v2403, 4294901760
    %5535 = vmatpush.msra.mxu0 %v5534
    %v5536 = vand.u32 %v2402, 4294901760
    %5537 = vmatpush.msra.mxu0 %v5536
    %v5538 = vand.u32 %v2401, 4294901760
    %5539 = vmatpush.msra.mxu0 %v5538
    %v5540 = vand.u32 %v2400, 4294901760
    %5541 = vmatpush.msra.mxu0 %v5540
    %v5542 = vand.u32 %v2399, 4294901760
    %5543 = vmatpush.msra.mxu0 %v5542
    %v5544 = vand.u32 %v2398, 4294901760
    %5545 = vmatpush.msra.mxu0 %v5544
    %v5546 = vand.u32 %v2397, 4294901760
    %5547 = vmatpush.msra.mxu0 %v5546
    %v5548 = vand.u32 %v2396, 4294901760
    %5549 = vmatpush.msra.mxu0 %v5548
    %v5550 = vand.u32 %v2395, 4294901760
    %5551 = vmatpush.msra.mxu0 %v5550
    %v5552 = vand.u32 %v2394, 4294901760
    %5553 = vmatpush.msra.mxu0 %v5552
    %v5554 = vand.u32 %v2393, 4294901760
    %5555 = vmatpush.msra.mxu0 %v5554
    %v5556 = vand.u32 %v2020, 4294901760
    %v5557 = vsub.f32 %v2020, %v5556
    %v5558 = vand.u32 %v5557, 4294901760
    %5559 = vmatmul.f32.gmra.mxu0 %v5558
    %v5560 = vpop.f32.mrf.mxu0
    %v5561 = vadd.f32 %v5512, %v5560
    %v5562 = vand.u32 %v2084, 4294901760
    %v5563 = vsub.f32 %v2084, %v5562
    %v5564 = vand.u32 %v5563, 4294901760
    %5565 = vmatmul.f32.gmra.mxu0 %v5564
    %v5566 = vpop.f32.mrf.mxu0
    %v5567 = vadd.f32 %v5517, %v5566
    %v5568 = vand.u32 %v2148, 4294901760
    %v5569 = vsub.f32 %v2148, %v5568
    %v5570 = vand.u32 %v5569, 4294901760
    %5571 = vmatmul.f32.gmra.mxu0 %v5570
    %v5572 = vpop.f32.mrf.mxu0
    %v5573 = vadd.f32 %v5522, %v5572
    %5574 = vdwg.mxu0
    %v5575 = vand.u32 %v2408, 4294901760
    %v5576 = vsub.f32 %v2408, %v5575
    %v5577 = vand.u32 %v5576, 4294901760
    %5578 = vmatpush.msra.mxu0 %v5577
    %v5579 = vand.u32 %v2407, 4294901760
    %v5580 = vsub.f32 %v2407, %v5579
    %v5581 = vand.u32 %v5580, 4294901760
    %5582 = vmatpush.msra.mxu0 %v5581
    %v5583 = vand.u32 %v2406, 4294901760
    %v5584 = vsub.f32 %v2406, %v5583
    %v5585 = vand.u32 %v5584, 4294901760
    %5586 = vmatpush.msra.mxu0 %v5585
    %v5587 = vand.u32 %v2405, 4294901760
    %v5588 = vsub.f32 %v2405, %v5587
    %v5589 = vand.u32 %v5588, 4294901760
    %5590 = vmatpush.msra.mxu0 %v5589
    %v5591 = vand.u32 %v2404, 4294901760
    %v5592 = vsub.f32 %v2404, %v5591
    %v5593 = vand.u32 %v5592, 4294901760
    %5594 = vmatpush.msra.mxu0 %v5593
    %v5595 = vand.u32 %v2403, 4294901760
    %v5596 = vsub.f32 %v2403, %v5595
    %v5597 = vand.u32 %v5596, 4294901760
    %5598 = vmatpush.msra.mxu0 %v5597
    %v5599 = vand.u32 %v2402, 4294901760
    %v5600 = vsub.f32 %v2402, %v5599
    %v5601 = vand.u32 %v5600, 4294901760
    %5602 = vmatpush.msra.mxu0 %v5601
    %v5603 = vand.u32 %v2401, 4294901760
    %v5604 = vsub.f32 %v2401, %v5603
    %v5605 = vand.u32 %v5604, 4294901760
    %5606 = vmatpush.msra.mxu0 %v5605
    %v5607 = vand.u32 %v2400, 4294901760
    %v5608 = vsub.f32 %v2400, %v5607
    %v5609 = vand.u32 %v5608, 4294901760
    %5610 = vmatpush.msra.mxu0 %v5609
    %v5611 = vand.u32 %v2399, 4294901760
    %v5612 = vsub.f32 %v2399, %v5611
    %v5613 = vand.u32 %v5612, 4294901760
    %5614 = vmatpush.msra.mxu0 %v5613
    %v5615 = vand.u32 %v2398, 4294901760
    %v5616 = vsub.f32 %v2398, %v5615
    %v5617 = vand.u32 %v5616, 4294901760
    %5618 = vmatpush.msra.mxu0 %v5617
    %v5619 = vand.u32 %v2397, 4294901760
    %v5620 = vsub.f32 %v2397, %v5619
    %v5621 = vand.u32 %v5620, 4294901760
    %5622 = vmatpush.msra.mxu0 %v5621
    %v5623 = vand.u32 %v2396, 4294901760
    %v5624 = vsub.f32 %v2396, %v5623
    %v5625 = vand.u32 %v5624, 4294901760
    %5626 = vmatpush.msra.mxu0 %v5625
    %v5627 = vand.u32 %v2395, 4294901760
    %v5628 = vsub.f32 %v2395, %v5627
    %v5629 = vand.u32 %v5628, 4294901760
    %5630 = vmatpush.msra.mxu0 %v5629
    %v5631 = vand.u32 %v2394, 4294901760
    %v5632 = vsub.f32 %v2394, %v5631
    %v5633 = vand.u32 %v5632, 4294901760
    %5634 = vmatpush.msra.mxu0 %v5633
    %v5635 = vand.u32 %v2393, 4294901760
    %v5636 = vsub.f32 %v2393, %v5635
    %v5637 = vand.u32 %v5636, 4294901760
    %5638 = vmatpush.msra.mxu0 %v5637
    %v5639 = vand.u32 %v2020, 4294901760
    %5640 = vmatmul.f32.gmra.mxu0 %v5639
    %v5641 = vpop.f32.mrf.mxu0
    %v5642 = vadd.f32 %v5561, %v5641
    %v5643 = vand.u32 %v2084, 4294901760
    %5644 = vmatmul.f32.gmra.mxu0 %v5643
    %v5645 = vpop.f32.mrf.mxu0
    %v5646 = vadd.f32 %v5567, %v5645
    %v5647 = vand.u32 %v2148, 4294901760
    %5648 = vmatmul.f32.gmra.mxu0 %v5647
    %v5649 = vpop.f32.mrf.mxu0
    %v5650 = vadd.f32 %v5573, %v5649
    %5651 = vdwg.mxu0
    %v5652 = vand.u32 %v2408, 4294901760
    %5653 = vmatpush.msra.mxu0 %v5652
    %v5654 = vand.u32 %v2407, 4294901760
    %5655 = vmatpush.msra.mxu0 %v5654
    %v5656 = vand.u32 %v2406, 4294901760
    %5657 = vmatpush.msra.mxu0 %v5656
    %v5658 = vand.u32 %v2405, 4294901760
    %5659 = vmatpush.msra.mxu0 %v5658
    %v5660 = vand.u32 %v2404, 4294901760
    %5661 = vmatpush.msra.mxu0 %v5660
    %v5662 = vand.u32 %v2403, 4294901760
    %5663 = vmatpush.msra.mxu0 %v5662
    %v5664 = vand.u32 %v2402, 4294901760
    %5665 = vmatpush.msra.mxu0 %v5664
    %v5666 = vand.u32 %v2401, 4294901760
    %5667 = vmatpush.msra.mxu0 %v5666
    %v5668 = vand.u32 %v2400, 4294901760
    %5669 = vmatpush.msra.mxu0 %v5668
    %v5670 = vand.u32 %v2399, 4294901760
    %5671 = vmatpush.msra.mxu0 %v5670
    %v5672 = vand.u32 %v2398, 4294901760
    %5673 = vmatpush.msra.mxu0 %v5672
    %v5674 = vand.u32 %v2397, 4294901760
    %5675 = vmatpush.msra.mxu0 %v5674
    %v5676 = vand.u32 %v2396, 4294901760
    %5677 = vmatpush.msra.mxu0 %v5676
    %v5678 = vand.u32 %v2395, 4294901760
    %5679 = vmatpush.msra.mxu0 %v5678
    %v5680 = vand.u32 %v2394, 4294901760
    %5681 = vmatpush.msra.mxu0 %v5680
    %v5682 = vand.u32 %v2393, 4294901760
    %5683 = vmatpush.msra.mxu0 %v5682
    %v5684 = vand.u32 %v2020, 4294901760
    %5685 = vmatmul.f32.gmra.mxu0 %v5684
    %v5686 = vpop.f32.mrf.mxu0
    %v5687 = vadd.f32 %v5642, %v5686
    %v5688 = vand.u32 %v2084, 4294901760
    %5689 = vmatmul.f32.gmra.mxu0 %v5688
    %v5690 = vpop.f32.mrf.mxu0
    %v5691 = vadd.f32 %v5646, %v5690
    %v5692 = vand.u32 %v2148, 4294901760
    %5693 = vmatmul.f32.gmra.mxu0 %v5692
    %v5694 = vpop.f32.mrf.mxu0
    %v5695 = vadd.f32 %v5650, %v5694
    %5696 = vdwg.mxu0
    %v5697 = vld [vmem:[%s4] sm:$0x1]
    %v5699 = vperm.slane %v5697, 0
    %v5701 = vadd.f32 %v5687, %v5699
    %v5702 = vadd.f32 %v5691, %v5699
    %v5703 = vadd.f32 %v5695, %v5699
    %v5704 = vmul.f32 %v5701, %v5701
    %v5705 = vmul.f32 %v5702, %v5702
    %v5706 = vmul.f32 %v5703, %v5703
    %vm5707 = vcmask 261120
    %v5708 = vsel %vm5707, %v5704, 0.0
    %5709 = vadd.xlane.f32.xlu0 %v5708
    %v5710 = vpop.xlane.xlu0 %5709
    %v5711 = vsel %vm5707, %v5705, 0.0
    %5712 = vadd.xlane.f32.xlu0 %v5711
    %v5713 = vpop.xlane.xlu0 %5712
    %v5714 = vsel %vm5707, %v5706, 0.0
    %5715 = vadd.xlane.f32.xlu0 %v5714
    %v5716 = vpop.xlane.xlu0 %5715
    %v5717 = vrsqrt.pop %v5710
    %v5718 = vmul.f32 %v5717, %v5710
    %v5719 = vmul.f32 %v5718, %v5717
    %v5720 = vmul.f32 0.5, %v5719
    %v5721 = vsub.f32 1.5, %v5720
    %v5722 = vmul.f32 %v5717, %v5721
    %v5723 = vmul.f32 %v5710, %v5722
    %vm5724 = vcmp.eq.f32.partialorder %v5710, inf
    %v5725 = vsel %vm5724, %v5710, %v5723
    %vm5726 = vcmp.eq.f32.partialorder %v5710, 0.0
    %v5727 = vand.u32 %v5710, 2147483648
    %v5728 = vsel %vm5726, %v5727, %v5725
    %v5729 = vrsqrt.pop %v5713
    %v5730 = vmul.f32 %v5729, %v5713
    %v5731 = vmul.f32 %v5730, %v5729
    %v5732 = vmul.f32 0.5, %v5731
    %v5733 = vsub.f32 1.5, %v5732
    %v5734 = vmul.f32 %v5729, %v5733
    %v5735 = vmul.f32 %v5713, %v5734
    %vm5736 = vcmp.eq.f32.partialorder %v5713, inf
    %v5737 = vsel %vm5736, %v5713, %v5735
    %vm5738 = vcmp.eq.f32.partialorder %v5713, 0.0
    %v5739 = vand.u32 %v5713, 2147483648
    %v5740 = vsel %vm5738, %v5739, %v5737
    %v5741 = vrsqrt.pop %v5716
    %v5742 = vmul.f32 %v5741, %v5716
    %v5743 = vmul.f32 %v5742, %v5741
    %v5744 = vmul.f32 0.5, %v5743
    %v5745 = vsub.f32 1.5, %v5744
    %v5746 = vmul.f32 %v5741, %v5745
    %v5747 = vmul.f32 %v5716, %v5746
    %vm5748 = vcmp.eq.f32.partialorder %v5716, inf
    %v5749 = vsel %vm5748, %v5716, %v5747
    %vm5750 = vcmp.eq.f32.partialorder %v5716, 0.0
    %v5751 = vand.u32 %v5716, 2147483648
    %v5752 = vsel %vm5750, %v5751, %v5749
    %v5753 = vmax.f32 %v5728, 1e-12
    %v5754 = vmax.f32 %v5740, 1e-12
    %v5755 = vmax.f32 %v5752, 1e-12
    %v5756 = vrcp.pop %v5753
    %v5757 = vmul.f32 %v5753, %v5756
    %v5758 = vsub.f32 1.0, %v5757
    %v5759 = vmul.f32 %v5756, %v5758
    %v5760 = vadd.f32 %v5756, %v5759
    %vm5761 = vweird.f32 %v5753
    %vm5762 = vweird.f32 %v5756
    %vm5763 = vmor %vm5761, %vm5762
    %v5764 = vsel %vm5763, %v5756, %v5760
    %v5765 = vand.u32 2147483647, %v5753
    %vm5766 = vcmp.eq.f32.partialorder %v5765, 8.507059e+37
    %v5767 = vand.u32 %v5753, 2147483648
    %v5768 = vor.u32 1.1754944e-38, %v5767
    %v5769 = vsel %vm5766, %v5768, %v5764
    %v5770 = vmul.f32 %v5701, %v5769
    %v5771 = vrcp.pop %v5754
    %v5772 = vmul.f32 %v5754, %v5771
    %v5773 = vsub.f32 1.0, %v5772
    %v5774 = vmul.f32 %v5771, %v5773
    %v5775 = vadd.f32 %v5771, %v5774
    %vm5776 = vweird.f32 %v5754
    %vm5777 = vweird.f32 %v5771
    %vm5778 = vmor %vm5776, %vm5777
    %v5779 = vsel %vm5778, %v5771, %v5775
    %v5780 = vand.u32 2147483647, %v5754
    %vm5781 = vcmp.eq.f32.partialorder %v5780, 8.507059e+37
    %v5782 = vand.u32 %v5754, 2147483648
    %v5783 = vor.u32 1.1754944e-38, %v5782
    %v5784 = vsel %vm5781, %v5783, %v5779
    %v5785 = vmul.f32 %v5702, %v5784
    %v5786 = vrcp.pop %v5755
    %v5787 = vmul.f32 %v5755, %v5786
    %v5788 = vsub.f32 1.0, %v5787
    %v5789 = vmul.f32 %v5786, %v5788
    %v5790 = vadd.f32 %v5786, %v5789
    %vm5791 = vweird.f32 %v5755
    %vm5792 = vweird.f32 %v5786
    %vm5793 = vmor %vm5791, %vm5792
    %v5794 = vsel %vm5793, %v5786, %v5790
    %v5795 = vand.u32 2147483647, %v5755
    %vm5796 = vcmp.eq.f32.partialorder %v5795, 8.507059e+37
    %v5797 = vand.u32 %v5755, 2147483648
    %v5798 = vor.u32 1.1754944e-38, %v5797
    %v5799 = vsel %vm5796, %v5798, %v5794
    %v5800 = vmul.f32 %v5703, %v5799
    %v5801 = vld [vmem:[%s1] sm:$0xff]
    %v5802 = vmul.f32 %v5801, %v5801
    %v5803 = vsel %vm5707, %v5802, 0.0
    %5804 = vadd.xlane.f32.xlu0 %v5803
    %v5805 = vpop.xlane.xlu0 %5804
    %v5806 = vrsqrt.pop %v5805
    %v5807 = vmul.f32 %v5806, %v5805
    %v5808 = vmul.f32 %v5807, %v5806
    %v5809 = vmul.f32 0.5, %v5808
    %v5810 = vsub.f32 1.5, %v5809
    %v5811 = vmul.f32 %v5806, %v5810
    %v5812 = vmul.f32 %v5805, %v5811
    %vm5813 = vcmp.eq.f32.partialorder %v5805, inf
    %v5814 = vsel %vm5813, %v5805, %v5812
    %vm5815 = vcmp.eq.f32.partialorder %v5805, 0.0
    %v5816 = vand.u32 %v5805, 2147483648
    %v5817 = vsel %vm5815, %v5816, %v5814
    %v5818 = vmax.f32 %v5817, 1e-12
    %v5819 = vrcp.pop %v5818
    %v5820 = vmul.f32 %v5818, %v5819
    %v5821 = vsub.f32 1.0, %v5820
    %v5822 = vmul.f32 %v5819, %v5821
    %v5823 = vadd.f32 %v5819, %v5822
    %vm5824 = vweird.f32 %v5818
    %vm5825 = vweird.f32 %v5819
    %vm5826 = vmor %vm5824, %vm5825
    %v5827 = vsel %vm5826, %v5819, %v5823
    %v5828 = vand.u32 2147483647, %v5818
    %vm5829 = vcmp.eq.f32.partialorder %v5828, 8.507059e+37
    %v5830 = vand.u32 %v5818, 2147483648
    %v5831 = vor.u32 1.1754944e-38, %v5830
    %v5832 = vsel %vm5829, %v5831, %v5827
    %v5833 = vmul.f32 %v5801, %v5832
    %v5834 = vmul.f32 %v5785, %v5770
    %v5835 = vsel %vm5707, %v5834, 0.0
    %5836 = vadd.xlane.f32.xlu0 %v5835
    %v5837 = vpop.xlane.xlu0 %5836
    %v5838 = vmul.f32 %v5800, %v5770
    %v5839 = vsel %vm5707, %v5838, 0.0
    %5840 = vadd.xlane.f32.xlu0 %v5839
    %v5841 = vpop.xlane.xlu0 %5840
    %v5842 = vmul.f32 %v5800, %v5785
    %v5843 = vsel %vm5707, %v5842, 0.0
    %5844 = vadd.xlane.f32.xlu0 %v5843
    %v5845 = vpop.xlane.xlu0 %5844
    %v5846 = vmul.f32 %v5833, %v5770
    %v5847 = vsel %vm5707, %v5846, 0.0
    %5848 = vadd.xlane.f32.xlu0 %v5847
    %v5849 = vpop.xlane.xlu0 %5848
    %v5850 = vmul.f32 %v5833, %v5785
    %v5851 = vsel %vm5707, %v5850, 0.0
    %5852 = vadd.xlane.f32.xlu0 %v5851
    %v5853 = vpop.xlane.xlu0 %5852
    %v5854 = vmul.f32 %v5833, %v5800
    %v5855 = vsel %vm5707, %v5854, 0.0
    %5856 = vadd.xlane.f32.xlu0 %v5855
    %v5857 = vpop.xlane.xlu0 %5856
    %vm5858 = vcmask 7168
    %v5859 = vsel %vm5858, %v5837, 0.0
    %vm5860 = vcmask 15360
    %v5861 = vsel %vm5860, %v5859, 0.0
    %vm5862 = vcmask 23552
    %v5863 = vsel %vm5862, %v5861, %v5841
    %vm5864 = vcmask 31744
    %v5865 = vsel %vm5864, %v5863, %v5845
    %vm5866 = vcmask 39936
    %v5867 = vsel %vm5866, %v5865, 0.0
    %vm5868 = vcmask 48128
    %v5869 = vsel %vm5868, %v5867, %v5849
    %vm5870 = vcmask 56320
    %v5871 = vsel %vm5870, %v5869, %v5853
    %vm5872 = vcmask 64512
    %v5873 = vsel %vm5872, %v5871, %v5857
    %5875 = vrot.lane.b32.xlu0 %v5873, 9
    %v5876 = vpop.permute.xlu0 %5875
    %5878 = vrot.lane.b32.xlu0 %v5873, 18
    %v5879 = vpop.permute.xlu0 %5878
    %5881 = vrot.lane.b32.xlu0 %v5873, 27
    %v5882 = vpop.permute.xlu0 %5881
    %vm5884 = vcmask 72704
    %v5885 = vsel %vm5884, %v5873, %v5876
    %vm5886 = vcmask 146432
    %v5887 = vsel %vm5886, %v5885, %v5879
    %vm5888 = vcmask 220160
    %v5889 = vsel %vm5888, %v5887, %v5882
    %v5890 = vld [vmem:[%s5] sm:$0x1]
    %v5892 = vperm.slane %v5890, 0
    %v5894 = vmul.f32 %v5889, %v5892
    %vm5895 = vcmask 293888
    %v5896 = vsel %vm5895, %v5894, 0.0
    %5897 = vadd.xlane.f32.xlu0 %v5896
    %v5898 = vpop.xlane.xlu0 %5897
    %v5899 = vrcp.pop 36.0
    %v5900 = vmul.f32 36.0, %v5899
    %v5901 = vsub.f32 1.0, %v5900
    %v5902 = vmul.f32 %v5899, %v5901
    %v5903 = vadd.f32 %v5899, %v5902
    %vm5904 = vweird.f32 %v5899
    %v5905 = vsel %vm5904, %v5899, %v5903
    %v5906 = vmul.f32 %v5898, %v5905
    %v5907 = vsub.f32 %v5894, %v5906
    %v5908 = vmul.f32 %v5907, %v5907
    %v5909 = vsel %vm5895, %v5908, 0.0
    %5910 = vadd.xlane.f32.xlu0 %v5909
    %v5911 = vpop.xlane.xlu0 %5910
    %v5912 = vmul.f32 %v5911, %v5905
    %v5913 = vadd.f32 %v5912, 1e-05
    %v5914 = vrsqrt.pop %v5913
    %v5915 = vmul.f32 %v5914, %v5913
    %v5916 = vmul.f32 %v5915, %v5914
    %v5917 = vmul.f32 0.5, %v5916
    %v5918 = vsub.f32 1.5, %v5917
    %v5919 = vmul.f32 %v5914, %v5918
    %v5920 = vmul.f32 %v5913, %v5919
    %vm5921 = vcmp.eq.f32.partialorder %v5913, inf
    %v5922 = vsel %vm5921, %v5913, %v5920
    %vm5923 = vcmp.eq.f32.partialorder %v5913, 0.0
    %v5924 = vand.u32 %v5913, 2147483648
    %v5925 = vsel %vm5923, %v5924, %v5922
    %v5926 = vrcp.pop %v5925
    %v5927 = vmul.f32 %v5925, %v5926
    %v5928 = vsub.f32 1.0, %v5927
    %v5929 = vmul.f32 %v5926, %v5928
    %v5930 = vadd.f32 %v5926, %v5929
    %vm5931 = vweird.f32 %v5925
    %vm5932 = vweird.f32 %v5926
    %vm5933 = vmor %vm5931, %vm5932
    %v5934 = vsel %vm5933, %v5926, %v5930
    %v5935 = vand.u32 2147483647, %v5925
    %vm5936 = vcmp.eq.f32.partialorder %v5935, 8.507059e+37
    %v5937 = vand.u32 %v5925, 2147483648
    %v5938 = vor.u32 1.1754944e-38, %v5937
    %v5939 = vsel %vm5936, %v5938, %v5934
    %v5940 = vmul.f32 %v5907, %v5939
    %v5941 = vld [vmem:[%s6] sm:$0x1]
    %v5943 = vperm.slane %v5941, 0
    %v5945 = vmul.f32 %v5940, %v5943
    %v5946 = vld [vmem:[%s7] sm:$0x1]
    %v5948 = vperm.slane %v5946, 0
    %v5950 = vadd.f32 %v5945, %v5948
    %vm5951 = vcmp.ge.f32.partialorder %v5950, 0.0
    %v5952 = vmul.f32 %v5950, 0.01
    %v5953 = vsel %vm5951, %v5950, %v5952
    %v5954 = vld [vmem:[%s8] sm:$0xff]
    %v5955 = vld [vmem:[%s8 + $0x8] sm:$0xff]
    %v5956 = vld [vmem:[%s8 + $0x10] sm:$0xff]
    %v5957 = vld [vmem:[%s8 + $0x18] sm:$0xff]
    %v5958 = vld [vmem:[%s8 + $0x20] sm:$0xf]
    %v5960 = vsel %vm5895, %v5953, 0
    %vm5962 = vcmask 1043456
    %v5964 = vsel %vm5962, %v5958, 0
    %5966 = vmatpush.msra.mxu0 0.0
    %5967 = vmatpush.msra.mxu0 0.0
    %5968 = vmatpush.msra.mxu0 0.0
    %5969 = vmatpush.msra.mxu0 0.0
    %5970 = vmatpush.msra.mxu0 0.0
    %5971 = vmatpush.msra.mxu0 0.0
    %5972 = vmatpush.msra.mxu0 0.0
    %5973 = vmatpush.msra.mxu0 0.0
    %5974 = vmatpush.msra.mxu0 0.0
    %5975 = vmatpush.msra.mxu0 0.0
    %5976 = vmatpush.msra.mxu0 0.0
    %v5977 = vand.u32 %v5964, 4294901760
    %5978 = vmatpush.msra.mxu0 %v5977
    %v5979 = vand.u32 %v5957, 4294901760
    %5980 = vmatpush.msra.mxu0 %v5979
    %v5981 = vand.u32 %v5956, 4294901760
    %5982 = vmatpush.msra.mxu0 %v5981
    %v5983 = vand.u32 %v5955, 4294901760
    %5984 = vmatpush.msra.mxu0 %v5983
    %v5985 = vand.u32 %v5954, 4294901760
    %5986 = vmatpush.msra.mxu0 %v5985
    %v5987 = vand.u32 %v5960, 4294901760
    %v5988 = vsub.f32 %v5960, %v5987
    %v5989 = vand.u32 %v5988, 4294901760
    %v5990 = vsub.f32 %v5988, %v5989
    %v5991 = vand.u32 %v5990, 4294901760
    %5992 = vmatmul.f32.gmra.mxu0 %v5991
    %v5993 = vpop.f32.mrf.mxu0
    %v5994 = vadd.f32 0.0, %v5993
    %5995 = vdwg.mxu0
    %5996 = vmatpush.msra.mxu0 0.0
    %5997 = vmatpush.msra.mxu0 0.0
    %5998 = vmatpush.msra.mxu0 0.0
    %5999 = vmatpush.msra.mxu0 0.0
    %6000 = vmatpush.msra.mxu0 0.0
    %6001 = vmatpush.msra.mxu0 0.0
    %6002 = vmatpush.msra.mxu0 0.0
    %6003 = vmatpush.msra.mxu0 0.0
    %6004 = vmatpush.msra.mxu0 0.0
    %6005 = vmatpush.msra.mxu0 0.0
    %6006 = vmatpush.msra.mxu0 0.0
    %v6007 = vand.u32 %v5964, 4294901760
    %v6008 = vsub.f32 %v5964, %v6007
    %v6009 = vand.u32 %v6008, 4294901760
    %v6010 = vsub.f32 %v6008, %v6009
    %v6011 = vand.u32 %v6010, 4294901760
    %6012 = vmatpush.msra.mxu0 %v6011
    %v6013 = vand.u32 %v5957, 4294901760
    %v6014 = vsub.f32 %v5957, %v6013
    %v6015 = vand.u32 %v6014, 4294901760
    %v6016 = vsub.f32 %v6014, %v6015
    %v6017 = vand.u32 %v6016, 4294901760
    %6018 = vmatpush.msra.mxu0 %v6017
    %v6019 = vand.u32 %v5956, 4294901760
    %v6020 = vsub.f32 %v5956, %v6019
    %v6021 = vand.u32 %v6020, 4294901760
    %v6022 = vsub.f32 %v6020, %v6021
    %v6023 = vand.u32 %v6022, 4294901760
    %6024 = vmatpush.msra.mxu0 %v6023
    %v6025 = vand.u32 %v5955, 4294901760
    %v6026 = vsub.f32 %v5955, %v6025
    %v6027 = vand.u32 %v6026, 4294901760
    %v6028 = vsub.f32 %v6026, %v6027
    %v6029 = vand.u32 %v6028, 4294901760
    %6030 = vmatpush.msra.mxu0 %v6029
    %v6031 = vand.u32 %v5954, 4294901760
    %v6032 = vsub.f32 %v5954, %v6031
    %v6033 = vand.u32 %v6032, 4294901760
    %v6034 = vsub.f32 %v6032, %v6033
    %v6035 = vand.u32 %v6034, 4294901760
    %6036 = vmatpush.msra.mxu0 %v6035
    %v6037 = vand.u32 %v5960, 4294901760
    %6038 = vmatmul.f32.gmra.mxu0 %v6037
    %v6039 = vpop.f32.mrf.mxu0
    %v6040 = vadd.f32 %v5994, %v6039
    %6041 = vdwg.mxu0
    %6042 = vmatpush.msra.mxu0 0.0
    %6043 = vmatpush.msra.mxu0 0.0
    %6044 = vmatpush.msra.mxu0 0.0
    %6045 = vmatpush.msra.mxu0 0.0
    %6046 = vmatpush.msra.mxu0 0.0
    %6047 = vmatpush.msra.mxu0 0.0
    %6048 = vmatpush.msra.mxu0 0.0
    %6049 = vmatpush.msra.mxu0 0.0
    %6050 = vmatpush.msra.mxu0 0.0
    %6051 = vmatpush.msra.mxu0 0.0
    %6052 = vmatpush.msra.mxu0 0.0
    %v6053 = vand.u32 %v5964, 4294901760
    %v6054 = vsub.f32 %v5964, %v6053
    %6055 = vmatpush.msra.mxu0 %v6054
    %v6056 = vand.u32 %v5957, 4294901760
    %v6057 = vsub.f32 %v5957, %v6056
    %6058 = vmatpush.msra.mxu0 %v6057
    %v6059 = vand.u32 %v5956, 4294901760
    %v6060 = vsub.f32 %v5956, %v6059
    %6061 = vmatpush.msra.mxu0 %v6060
    %v6062 = vand.u32 %v5955, 4294901760
    %v6063 = vsub.f32 %v5955, %v6062
    %6064 = vmatpush.msra.mxu0 %v6063
    %v6065 = vand.u32 %v5954, 4294901760
    %v6066 = vsub.f32 %v5954, %v6065
    %6067 = vmatpush.msra.mxu0 %v6066
    %v6068 = vand.u32 %v5960, 4294901760
    %v6069 = vsub.f32 %v5960, %v6068
    %6070 = vmatmul.f32.gmra.mxu0 %v6069
    %v6071 = vpop.f32.mrf.mxu0
    %v6072 = vadd.f32 %v6040, %v6071
    %6073 = vdwg.mxu0
    %6074 = vmatpush.msra.mxu0 0.0
    %6075 = vmatpush.msra.mxu0 0.0
    %6076 = vmatpush.msra.mxu0 0.0
    %6077 = vmatpush.msra.mxu0 0.0
    %6078 = vmatpush.msra.mxu0 0.0
    %6079 = vmatpush.msra.mxu0 0.0
    %6080 = vmatpush.msra.mxu0 0.0
    %6081 = vmatpush.msra.mxu0 0.0
    %6082 = vmatpush.msra.mxu0 0.0
    %6083 = vmatpush.msra.mxu0 0.0
    %6084 = vmatpush.msra.mxu0 0.0
    %v6085 = vand.u32 %v5964, 4294901760
    %6086 = vmatpush.msra.mxu0 %v6085
    %v6087 = vand.u32 %v5957, 4294901760
    %6088 = vmatpush.msra.mxu0 %v6087
    %v6089 = vand.u32 %v5956, 4294901760
    %6090 = vmatpush.msra.mxu0 %v6089
    %v6091 = vand.u32 %v5955, 4294901760
    %6092 = vmatpush.msra.mxu0 %v6091
    %v6093 = vand.u32 %v5954, 4294901760
    %6094 = vmatpush.msra.mxu0 %v6093
    %v6095 = vand.u32 %v5960, 4294901760
    %v6096 = vsub.f32 %v5960, %v6095
    %v6097 = vand.u32 %v6096, 4294901760
    %6098 = vmatmul.f32.gmra.mxu0 %v6097
    %v6099 = vpop.f32.mrf.mxu0
    %v6100 = vadd.f32 %v6072, %v6099
    %6101 = vdwg.mxu0
    %6102 = vmatpush.msra.mxu0 0.0
    %6103 = vmatpush.msra.mxu0 0.0
    %6104 = vmatpush.msra.mxu0 0.0
    %6105 = vmatpush.msra.mxu0 0.0
    %6106 = vmatpush.msra.mxu0 0.0
    %6107 = vmatpush.msra.mxu0 0.0
    %6108 = vmatpush.msra.mxu0 0.0
    %6109 = vmatpush.msra.mxu0 0.0
    %6110 = vmatpush.msra.mxu0 0.0
    %6111 = vmatpush.msra.mxu0 0.0
    %6112 = vmatpush.msra.mxu0 0.0
    %v6113 = vand.u32 %v5964, 4294901760
    %v6114 = vsub.f32 %v5964, %v6113
    %v6115 = vand.u32 %v6114, 4294901760
    %6116 = vmatpush.msra.mxu0 %v6115
    %v6117 = vand.u32 %v5957, 4294901760
    %v6118 = vsub.f32 %v5957, %v6117
    %v6119 = vand.u32 %v6118, 4294901760
    %6120 = vmatpush.msra.mxu0 %v6119
    %v6121 = vand.u32 %v5956, 4294901760
    %v6122 = vsub.f32 %v5956, %v6121
    %v6123 = vand.u32 %v6122, 4294901760
    %6124 = vmatpush.msra.mxu0 %v6123
    %v6125 = vand.u32 %v5955, 4294901760
    %v6126 = vsub.f32 %v5955, %v6125
    %v6127 = vand.u32 %v6126, 4294901760
    %6128 = vmatpush.msra.mxu0 %v6127
    %v6129 = vand.u32 %v5954, 4294901760
    %v6130 = vsub.f32 %v5954, %v6129
    %v6131 = vand.u32 %v6130, 4294901760
    %6132 = vmatpush.msra.mxu0 %v6131
    %v6133 = vand.u32 %v5960, 4294901760
    %6134 = vmatmul.f32.gmra.mxu0 %v6133
    %v6135 = vpop.f32.mrf.mxu0
    %v6136 = vadd.f32 %v6100, %v6135
    %6137 = vdwg.mxu0
    %6138 = vmatpush.msra.mxu0 0.0
    %6139 = vmatpush.msra.mxu0 0.0
    %6140 = vmatpush.msra.mxu0 0.0
    %6141 = vmatpush.msra.mxu0 0.0
    %6142 = vmatpush.msra.mxu0 0.0
    %6143 = vmatpush.msra.mxu0 0.0
    %6144 = vmatpush.msra.mxu0 0.0
    %6145 = vmatpush.msra.mxu0 0.0
    %6146 = vmatpush.msra.mxu0 0.0
    %6147 = vmatpush.msra.mxu0 0.0
    %6148 = vmatpush.msra.mxu0 0.0
    %v6149 = vand.u32 %v5964, 4294901760
    %6150 = vmatpush.msra.mxu0 %v6149
    %v6151 = vand.u32 %v5957, 4294901760
    %6152 = vmatpush.msra.mxu0 %v6151
    %v6153 = vand.u32 %v5956, 4294901760
    %6154 = vmatpush.msra.mxu0 %v6153
    %v6155 = vand.u32 %v5955, 4294901760
    %6156 = vmatpush.msra.mxu0 %v6155
    %v6157 = vand.u32 %v5954, 4294901760
    %6158 = vmatpush.msra.mxu0 %v6157
    %v6159 = vand.u32 %v5960, 4294901760
    %6160 = vmatmul.f32.gmra.mxu0 %v6159
    %v6161 = vpop.f32.mrf.mxu0
    %v6162 = vadd.f32 %v6136, %v6161
    %6163 = vdwg.mxu0
    %v6164 = vsel %vm5868, %v6162, %v5849
    %v6165 = vsel %vm5870, %v6164, %v5853
    %v6166 = vsel %vm5872, %v6165, %v5857
    %6167 = vst.msk [vmem:[#allocation2] sm:$0xff] %vm5884, %v6166
    // Predicated region
    $region38: #{_forward_jit.1} parent=1 // pred_check
      _
    $region39: #{_forward_jit.1} parent=1 // pred_check_branch
      %6169 = sbr.rel (0) target = $region41
    $region40: #{_forward_jit.1} parent=1 // pred_region
      // Predicated region
      $region42: #{_forward_jit.1} parent=40 // pred_check
        _
      $region43: #{_forward_jit.1} parent=40 // pred_check_branch
        %6171 = sbr.rel (0) target = $region45
      $region44: #{_forward_jit.1} parent=40 // pred_region
        // Predicated region
        $region46: #{_forward_jit.1} parent=44 // pred_check
          _
        $region47: #{_forward_jit.1} parent=44 // pred_check_branch
          %6173 = sbr.rel target = $region49
        $region48: #{_forward_jit.1} parent=44 // pred_region
          // Predicated region
          $region61: #{_forward_jit.1} parent=48 // pred_check
            _
          $region62: #{_forward_jit.1} parent=48 // pred_check_branch
            %6189 = sbr.rel (0) target = $region64
          $region63: #{_forward_jit.1} parent=48 // pred_region
            %s6191 = ssub.s32 4, 1
            loop: start=0, step=1, limit=1
            $region65: #{_forward_jit.1} parent=63 // loop_pre_header
              _
            $region66: #{_forward_jit.1} parent=63 // loop_header
              %s6193 = sphi 0, %s6197
              %p6194 = scmp.ge.s32.totalorder %s6193, 1
              %s6198 = sphi [#allocation2], [#allocation2]
              %s6199 = sphi %s9, %s9
            $region67: #{_forward_jit.1} parent=63 // loop_header_branch
              %6196 = sbr.rel (%p6194) target = $region71
            $region68: #{_forward_jit.1} parent=63 // loop_body
              %v6200 = vld [vmem:[%s6198] sm:%s6191]
              %6201 = vst [vmem:[%s6199] sm:%s6191] %v6200
            $region69: #{_forward_jit.1} parent=63 // loop_footer
              %s6197 = sadd.s32 1, %s6193
            $region70: #{_forward_jit.1} parent=63 // loop_footer_branch
              %6192 = sbr.rel target = $region66
            $region71: #{_forward_jit.1} parent=63 // loop_exit
              _
          $region64: #{_forward_jit.1} parent=48 // pred_fallthru
            _
        $region49: #{_forward_jit.1} parent=44 // pred_fallthru
          _
        // Predicated region
        $region50: #{_forward_jit.1} parent=44 // pred_check
          _
        $region51: #{_forward_jit.1} parent=44 // pred_check_branch
          %6175 = sbr.rel (0) target = $region53
        $region52: #{_forward_jit.1} parent=44 // pred_region
          %s6177 = ssub.s32 4, 1
          loop: start=0, step=1, limit=1
          $region54: #{_forward_jit.1} parent=52 // loop_pre_header
            _
          $region55: #{_forward_jit.1} parent=52 // loop_header
            %s6179 = sphi 0, %s6183
            %p6180 = scmp.ge.s32.totalorder %s6179, 1
            %s6184 = sphi [#allocation2], [#allocation2]
            %s6185 = sphi %s9, %s9
          $region56: #{_forward_jit.1} parent=52 // loop_header_branch
            %6182 = sbr.rel (%p6180) target = $region60
          $region57: #{_forward_jit.1} parent=52 // loop_body
            %v6186 = vld [vmem:[%s6184] sm:%s6177]
            %6187 = vst [vmem:[%s6185] sm:%s6177] %v6186
          $region58: #{_forward_jit.1} parent=52 // loop_footer
            %s6183 = sadd.s32 1, %s6179
          $region59: #{_forward_jit.1} parent=52 // loop_footer_branch
            %6178 = sbr.rel target = $region55
          $region60: #{_forward_jit.1} parent=52 // loop_exit
            _
        $region53: #{_forward_jit.1} parent=44 // pred_fallthru
          _
      $region45: #{_forward_jit.1} parent=40 // pred_fallthru
        _
      %6202 = vnop
    $region41: #{_forward_jit.1} parent=1 // pred_fallthru
      _
    // Predicated region
    $region72: #{_forward_jit.1} parent=1 // pred_check
      _
    $region73: #{_forward_jit.1} parent=1 // pred_check_branch
      %6204 = sbr.rel (0) target = $region75
    $region74: #{_forward_jit.1} parent=1 // pred_region
      _
    $region75: #{_forward_jit.1} parent=1 // pred_fallthru
      _

</llo_original>
